<compile_context>
chip_gen: v7x
topology: tpu7x:2x2x1
jax: 0.10.0
libtpu: 0.0.40
codegen_flags: <defaults>
</compile_context>

<pallas_src>
import numpy as np
import jax
import jax.numpy as jnp
from jax.experimental import pallas as pl
from jax.experimental.pallas import tpu as pltpu

LSTM_HIDDEN = 16
LSTM_LAYERS = 3
INPUT_DIM = 4

# Packed parameter slab layout (per layer, shape (PARAM_ROWS, 3*H)):
#   rows [0:16)  : W_ih^T  (layer 0 only uses rows 0:4, rest zero-padded)
#   rows [16:32) : W_hh^T
#   row  32      : b_ih
#   row  33      : b_hh
# Gate order along the 48 columns matches PyTorch: [r | z | n].
_W_IH_ROWS = LSTM_HIDDEN
_ROW_WHH = _W_IH_ROWS
_ROW_BIH = _W_IH_ROWS + LSTM_HIDDEN
_ROW_BHH = _ROW_BIH + 1
PARAM_ROWS = _ROW_BHH + 1  # 34


# ----------------------------------------------------------------------------
# Pallas kernel: full 3-layer GRU recurrence, fully unrolled, in VMEM/vregs.
# ----------------------------------------------------------------------------
def _node_attribute_kernel(x_ref, p_ref, out_ref):
    """x_ref: (B, T, 4); p_ref: (L, 34, 48); out_ref: (B, L*H)."""
    B, T, _ = x_ref.shape
    H = LSTM_HIDDEN
    G = 3 * H

    x = x_ref[...]  # tiny: load the whole input sequence once

    def gru_cell(x_t, h, w_ih, w_hh, b_r, b_z, b_in, b_hn):
        # Two fused matmuls per step instead of six per-gate ones.
        gi = jnp.dot(x_t, w_ih, preferred_element_type=jnp.float32)  # (B, 3H)
        gh = jnp.dot(h, w_hh, preferred_element_type=jnp.float32)    # (B, 3H)
        r = jax.nn.sigmoid(gi[:, 0:H] + gh[:, 0:H] + b_r)
        z = jax.nn.sigmoid(gi[:, H:2 * H] + gh[:, H:2 * H] + b_z)
        n = jnp.tanh(gi[:, 2 * H:G] + b_in + r * (gh[:, 2 * H:G] + b_hn))
        return (1.0 - z) * n + z * h

    # Layer 0 reads the raw input; layers 1/2 read the previous layer's hidden
    # outputs, kept as values (no VMEM scratch, no dead stores for layer 2).
    seq = [x[:, t, :] for t in range(T)]
    for layer in range(LSTM_LAYERS):
        in_dim = INPUT_DIM if layer == 0 else H
        p_l = p_ref[layer]                              # (34, 48)
        w_ih = p_l[0:in_dim, :]                         # (in_dim, 3H)
        w_hh = p_l[_ROW_WHH:_ROW_WHH + H, :]            # (H, 3H)
        b_ih = p_l[_ROW_BIH:_ROW_BIH + 1, :]            # (1, 3H)
        b_hh = p_l[_ROW_BHH:_ROW_BHH + 1, :]            # (1, 3H)
        # Combined r/z biases, hoisted out of the time loop.
        b_r = b_ih[:, 0:H] + b_hh[:, 0:H]
        b_z = b_ih[:, H:2 * H] + b_hh[:, H:2 * H]
        b_in = b_ih[:, 2 * H:G]
        b_hn = b_hh[:, 2 * H:G]

        h = jnp.zeros((B, H), jnp.float32)
        outs = []
        for t in range(T):  # fully unrolled: T is small and static
            h = gru_cell(seq[t], h, w_ih, w_hh, b_r, b_z, b_in, b_hn)
            outs.append(h)
        seq = outs
        # Final hidden state of this layer -> columns [layer*H, (layer+1)*H),
        # giving the (B, L*H) feature directly (matches hn.permute+reshape).
        out_ref[:, layer * H:(layer + 1) * H] = h


@jax.jit
def node_attribute_forward(trajs, param_slab, node_a=None):
    """Mirrors NodeAttribute.forward. trajs: (batch, seq, 4)."""
    B, T, _ = trajs.shape
    feat = pl.pallas_call(
        _node_attribute_kernel,
        out_shape=jax.ShapeDtypeStruct((B, LSTM_LAYERS * LSTM_HIDDEN), jnp.float32),
        in_specs=[pl.BlockSpec(memory_space=pltpu.MemorySpace.VMEM),
                  pl.BlockSpec(memory_space=pltpu.MemorySpace.VMEM)],
        out_specs=pl.BlockSpec(memory_space=pltpu.MemorySpace.VMEM),
    )(trajs.astype(jnp.float32), param_slab)
    if node_a is None:
        return feat
    return jnp.concatenate([feat, node_a.astype(jnp.float32)], axis=1)


# ----------------------------------------------------------------------------
# Deterministic parameter construction (orthogonal weights, zero biases),
# kept in the PyTorch layout, plus the packer into the kernel slab.
# ----------------------------------------------------------------------------
def _orthogonal(rng, shape):
    rows, cols = shape
    a = rng.standard_normal((max(rows, cols), min(rows, cols)))
    q, r = np.linalg.qr(a)
    q = q * np.sign(np.diag(r))
    if rows < cols:
        q = q.T
    return q[:rows, :cols].astype(np.float32)


def make_torch_params(seed=0):
    """Per layer: (w_ih (3H,in), w_hh (3H,H), b_ih (3H,), b_hh (3H,)) — torch layout."""
    rng = np.random.default_rng(seed)
    params = []
    for layer in range(LSTM_LAYERS):
        in_dim = INPUT_DIM if layer == 0 else LSTM_HIDDEN
        w_ih = _orthogonal(rng, (3 * LSTM_HIDDEN, in_dim))        # nn.init.orthogonal_
        w_hh = _orthogonal(rng, (3 * LSTM_HIDDEN, LSTM_HIDDEN))   # nn.init.orthogonal_
        b_ih = np.zeros((3 * LSTM_HIDDEN,), np.float32)           # nn.init.constant_(0)
        b_hh = np.zeros((3 * LSTM_HIDDEN,), np.float32)
        params.append((w_ih, w_hh, b_ih, b_hh))
    return params


def pack_params(torch_params):
    """Pack all layers' weights/biases into a single (L, 34, 3H) VMEM slab."""
    slabs = []
    for (w_ih, w_hh, b_ih, b_hh) in torch_params:
        in_dim = w_ih.shape[1]
        slab = np.zeros((PARAM_ROWS, 3 * LSTM_HIDDEN), np.float32)
        slab[0:in_dim, :] = w_ih.T                                 # r | z | n columns
        slab[_ROW_WHH:_ROW_WHH + LSTM_HIDDEN, :] = w_hh.T
        slab[_ROW_BIH, :] = b_ih
        slab[_ROW_BHH, :] = b_hh
        slabs.append(slab)
    return jnp.asarray(np.stack(slabs))                            # (L, 34, 48)


# ----------------------------------------------------------------------------
# NumPy reference (same math as torch.nn.GRU forward, torch weight layout).
# ----------------------------------------------------------------------------
def _sigmoid(x):
    return 1.0 / (1.0 + np.exp(-x))


def node_attribute_reference(trajs, torch_params, node_a=None):
    x = np.transpose(np.asarray(trajs, np.float32), (1, 0, 2))     # (T, B, IN)
    T, B, _ = x.shape
    H = LSTM_HIDDEN
    inp = x
    hs = []
    for (w_ih, w_hh, b_ih, b_hh) in torch_params:
        h = np.zeros((B, H), np.float32)
        outs = []
        for t in range(T):
            gi = inp[t] @ w_ih.T + b_ih
            gh = h @ w_hh.T + b_hh
            r = _sigmoid(gi[:, 0:H] + gh[:, 0:H])
            z = _sigmoid(gi[:, H:2 * H] + gh[:, H:2 * H])
            n = np.tanh(gi[:, 2 * H:] + r * gh[:, 2 * H:])
            h = (1.0 - z) * n + z * h
            outs.append(h)
        inp = np.stack(outs)
        hs.append(h)
    hn = np.stack(hs)                                              # (L, B, H)
    feat = hn.transpose(1, 0, 2).reshape(B, -1)
    if node_a is None:
        return feat
    return np.concatenate([feat, np.asarray(node_a, np.float32)], axis=1)


if __name__ == "__main__":
    B, T = 2, 8
    key = jax.random.PRNGKey(0)
    k_traj, k_node = jax.random.split(key)
    trajs = jax.random.normal(k_traj, (B, T, INPUT_DIM), dtype=jnp.float32)
    node_a = jax.random.normal(k_node, (B, 5), dtype=jnp.float32)

    torch_params = make_torch_params(seed=0)
    param_slab = pack_params(torch_params)

    out_plain = node_attribute_forward(trajs, param_slab)          # (B, 48)
    out_cat = node_attribute_forward(trajs, param_slab, node_a)    # (B, 53)
    jax.block_until_ready(out_plain)
    jax.block_until_ready(out_cat)

    feat_ref = node_attribute_reference(np.asarray(trajs), torch_params)
    cat_ref = node_attribute_reference(np.asarray(trajs), torch_params, np.asarray(node_a))
    np.testing.assert_allclose(np.asarray(out_plain), feat_ref, rtol=2e-2, atol=2e-2)
    np.testing.assert_allclose(np.asarray(out_cat), cat_ref, rtol=2e-2, atol=2e-2)
    assert out_plain.shape == (B, LSTM_LAYERS * LSTM_HIDDEN)
    assert out_cat.shape == (B, LSTM_LAYERS * LSTM_HIDDEN + 5)

    print("KERNEL_OK")
</pallas_src>

<mosaic_0001>
module attributes {stable_mosaic.version = 11 : i64} {
  func.func @_node_attribute_kernel(%arg0: memref<2x8x4xf32, #tpu.memory_space<vmem>>, %arg1: memref<3x34x48xf32, #tpu.memory_space<vmem>>, %arg2: memref<2x48xf32, #tpu.memory_space<vmem>>) attributes {dimension_semantics = [], scalar_prefetch = 0 : i64, scratch_operands = 0 : i64, tpu.core_type = #tpu.core_type<tc>} {
    %c0 = arith.constant 0 : index
    %c0_0 = arith.constant 0 : index
    %c0_1 = arith.constant 0 : index
    %0 = vector.load %arg0[%c0, %c0_0, %c0_1] : memref<2x8x4xf32, #tpu.memory_space<vmem>>, vector<2x8x4xf32>
    %1 = vector.extract_strided_slice %0 {offsets = [0, 0, 0], sizes = [2, 1, 4], strides = [1, 1, 1]} : vector<2x8x4xf32> to vector<2x1x4xf32>
    %2 = vector.shape_cast %1 : vector<2x1x4xf32> to vector<2x4xf32>
    %3 = vector.extract_strided_slice %0 {offsets = [0, 1, 0], sizes = [2, 1, 4], strides = [1, 1, 1]} : vector<2x8x4xf32> to vector<2x1x4xf32>
    %4 = vector.shape_cast %3 : vector<2x1x4xf32> to vector<2x4xf32>
    %5 = vector.extract_strided_slice %0 {offsets = [0, 2, 0], sizes = [2, 1, 4], strides = [1, 1, 1]} : vector<2x8x4xf32> to vector<2x1x4xf32>
    %6 = vector.shape_cast %5 : vector<2x1x4xf32> to vector<2x4xf32>
    %7 = vector.extract_strided_slice %0 {offsets = [0, 3, 0], sizes = [2, 1, 4], strides = [1, 1, 1]} : vector<2x8x4xf32> to vector<2x1x4xf32>
    %8 = vector.shape_cast %7 : vector<2x1x4xf32> to vector<2x4xf32>
    %9 = vector.extract_strided_slice %0 {offsets = [0, 4, 0], sizes = [2, 1, 4], strides = [1, 1, 1]} : vector<2x8x4xf32> to vector<2x1x4xf32>
    %10 = vector.shape_cast %9 : vector<2x1x4xf32> to vector<2x4xf32>
    %11 = vector.extract_strided_slice %0 {offsets = [0, 5, 0], sizes = [2, 1, 4], strides = [1, 1, 1]} : vector<2x8x4xf32> to vector<2x1x4xf32>
    %12 = vector.shape_cast %11 : vector<2x1x4xf32> to vector<2x4xf32>
    %13 = vector.extract_strided_slice %0 {offsets = [0, 6, 0], sizes = [2, 1, 4], strides = [1, 1, 1]} : vector<2x8x4xf32> to vector<2x1x4xf32>
    %14 = vector.shape_cast %13 : vector<2x1x4xf32> to vector<2x4xf32>
    %15 = vector.extract_strided_slice %0 {offsets = [0, 7, 0], sizes = [2, 1, 4], strides = [1, 1, 1]} : vector<2x8x4xf32> to vector<2x1x4xf32>
    %16 = vector.shape_cast %15 : vector<2x1x4xf32> to vector<2x4xf32>
    %c0_2 = arith.constant 0 : index
    %c0_3 = arith.constant 0 : index
    %c0_4 = arith.constant 0 : index
    %17 = vector.load %arg1[%c0_2, %c0_3, %c0_4] : memref<3x34x48xf32, #tpu.memory_space<vmem>>, vector<1x34x48xf32>
    %18 = vector.shape_cast %17 : vector<1x34x48xf32> to vector<34x48xf32>
    %19 = vector.extract_strided_slice %18 {offsets = [0, 0], sizes = [4, 48], strides = [1, 1]} : vector<34x48xf32> to vector<4x48xf32>
    %20 = vector.extract_strided_slice %18 {offsets = [16, 0], sizes = [16, 48], strides = [1, 1]} : vector<34x48xf32> to vector<16x48xf32>
    %21 = vector.extract_strided_slice %18 {offsets = [32, 0], sizes = [1, 48], strides = [1, 1]} : vector<34x48xf32> to vector<1x48xf32>
    %22 = vector.extract_strided_slice %18 {offsets = [33, 0], sizes = [1, 48], strides = [1, 1]} : vector<34x48xf32> to vector<1x48xf32>
    %23 = vector.extract_strided_slice %21 {offsets = [0, 0], sizes = [1, 16], strides = [1, 1]} : vector<1x48xf32> to vector<1x16xf32>
    %24 = vector.extract_strided_slice %22 {offsets = [0, 0], sizes = [1, 16], strides = [1, 1]} : vector<1x48xf32> to vector<1x16xf32>
    %25 = arith.addf %23, %24 : vector<1x16xf32>
    %26 = vector.extract_strided_slice %21 {offsets = [0, 16], sizes = [1, 16], strides = [1, 1]} : vector<1x48xf32> to vector<1x16xf32>
    %27 = vector.extract_strided_slice %22 {offsets = [0, 16], sizes = [1, 16], strides = [1, 1]} : vector<1x48xf32> to vector<1x16xf32>
    %28 = arith.addf %26, %27 : vector<1x16xf32>
    %29 = vector.extract_strided_slice %21 {offsets = [0, 32], sizes = [1, 16], strides = [1, 1]} : vector<1x48xf32> to vector<1x16xf32>
    %30 = vector.extract_strided_slice %22 {offsets = [0, 32], sizes = [1, 16], strides = [1, 1]} : vector<1x48xf32> to vector<1x16xf32>
    %cst = arith.constant 0.000000e+00 : f32
    %31 = vector.broadcast %cst : f32 to vector<2x16xf32>
    %cst_5 = arith.constant dense<0.000000e+00> : vector<2x48xf32>
    %32 = tpu.matmul %2, %19, %cst_5 {dimension_numbers = #tpu.dot_dimension_numbers<[1], [0], [0], [1], [0, 0, 1, 1], [], []>} : vector<2x4xf32>, vector<4x48xf32>, vector<2x48xf32> -> vector<2x48xf32>
    %cst_6 = arith.constant dense<0.000000e+00> : vector<2x48xf32>
    %33 = tpu.matmul %31, %20, %cst_6 {dimension_numbers = #tpu.dot_dimension_numbers<[1], [0], [0], [1], [0, 0, 1, 1], [], []>} : vector<2x16xf32>, vector<16x48xf32>, vector<2x48xf32> -> vector<2x48xf32>
    %34 = vector.extract_strided_slice %32 {offsets = [0, 0], sizes = [2, 16], strides = [1, 1]} : vector<2x48xf32> to vector<2x16xf32>
    %35 = vector.extract_strided_slice %33 {offsets = [0, 0], sizes = [2, 16], strides = [1, 1]} : vector<2x48xf32> to vector<2x16xf32>
    %36 = arith.addf %34, %35 : vector<2x16xf32>
    %37 = vector.broadcast %25 : vector<1x16xf32> to vector<2x16xf32>
    %38 = arith.addf %36, %37 : vector<2x16xf32>
    %39 = arith.negf %38 : vector<2x16xf32>
    %40 = math.exp %39 : vector<2x16xf32>
    %cst_7 = arith.constant 1.000000e+00 : f32
    %41 = vector.broadcast %cst_7 : f32 to vector<2x16xf32>
    %42 = arith.addf %41, %40 : vector<2x16xf32>
    %43 = arith.divf %41, %42 : vector<2x16xf32>
    %44 = vector.extract_strided_slice %32 {offsets = [0, 16], sizes = [2, 16], strides = [1, 1]} : vector<2x48xf32> to vector<2x16xf32>
    %45 = vector.extract_strided_slice %33 {offsets = [0, 16], sizes = [2, 16], strides = [1, 1]} : vector<2x48xf32> to vector<2x16xf32>
    %46 = arith.addf %44, %45 : vector<2x16xf32>
    %47 = vector.broadcast %28 : vector<1x16xf32> to vector<2x16xf32>
    %48 = arith.addf %46, %47 : vector<2x16xf32>
    %49 = arith.negf %48 : vector<2x16xf32>
    %50 = math.exp %49 : vector<2x16xf32>
    %cst_8 = arith.constant 1.000000e+00 : f32
    %51 = vector.broadcast %cst_8 : f32 to vector<2x16xf32>
    %52 = arith.addf %51, %50 : vector<2x16xf32>
    %53 = arith.divf %51, %52 : vector<2x16xf32>
    %54 = vector.extract_strided_slice %32 {offsets = [0, 32], sizes = [2, 16], strides = [1, 1]} : vector<2x48xf32> to vector<2x16xf32>
    %55 = vector.broadcast %29 : vector<1x16xf32> to vector<2x16xf32>
    %56 = arith.addf %54, %55 : vector<2x16xf32>
    %57 = vector.extract_strided_slice %33 {offsets = [0, 32], sizes = [2, 16], strides = [1, 1]} : vector<2x48xf32> to vector<2x16xf32>
    %58 = vector.broadcast %30 : vector<1x16xf32> to vector<2x16xf32>
    %59 = arith.addf %57, %58 : vector<2x16xf32>
    %60 = arith.mulf %43, %59 : vector<2x16xf32>
    %61 = arith.addf %56, %60 : vector<2x16xf32>
    %62 = math.tanh %61 : vector<2x16xf32>
    %cst_9 = arith.constant 1.000000e+00 : f32
    %63 = vector.broadcast %cst_9 : f32 to vector<2x16xf32>
    %64 = arith.subf %63, %53 : vector<2x16xf32>
    %65 = arith.mulf %64, %62 : vector<2x16xf32>
    %66 = arith.mulf %53, %31 : vector<2x16xf32>
    %67 = arith.addf %65, %66 : vector<2x16xf32>
    %cst_10 = arith.constant dense<0.000000e+00> : vector<2x48xf32>
    %68 = tpu.matmul %4, %19, %cst_10 {dimension_numbers = #tpu.dot_dimension_numbers<[1], [0], [0], [1], [0, 0, 1, 1], [], []>} : vector<2x4xf32>, vector<4x48xf32>, vector<2x48xf32> -> vector<2x48xf32>
    %cst_11 = arith.constant dense<0.000000e+00> : vector<2x48xf32>
    %69 = tpu.matmul %67, %20, %cst_11 {dimension_numbers = #tpu.dot_dimension_numbers<[1], [0], [0], [1], [0, 0, 1, 1], [], []>} : vector<2x16xf32>, vector<16x48xf32>, vector<2x48xf32> -> vector<2x48xf32>
    %70 = vector.extract_strided_slice %68 {offsets = [0, 0], sizes = [2, 16], strides = [1, 1]} : vector<2x48xf32> to vector<2x16xf32>
    %71 = vector.extract_strided_slice %69 {offsets = [0, 0], sizes = [2, 16], strides = [1, 1]} : vector<2x48xf32> to vector<2x16xf32>
    %72 = arith.addf %70, %71 : vector<2x16xf32>
    %73 = vector.broadcast %25 : vector<1x16xf32> to vector<2x16xf32>
    %74 = arith.addf %72, %73 : vector<2x16xf32>
    %75 = arith.negf %74 : vector<2x16xf32>
    %76 = math.exp %75 : vector<2x16xf32>
    %cst_12 = arith.constant 1.000000e+00 : f32
    %77 = vector.broadcast %cst_12 : f32 to vector<2x16xf32>
    %78 = arith.addf %77, %76 : vector<2x16xf32>
    %79 = arith.divf %77, %78 : vector<2x16xf32>
    %80 = vector.extract_strided_slice %68 {offsets = [0, 16], sizes = [2, 16], strides = [1, 1]} : vector<2x48xf32> to vector<2x16xf32>
    %81 = vector.extract_strided_slice %69 {offsets = [0, 16], sizes = [2, 16], strides = [1, 1]} : vector<2x48xf32> to vector<2x16xf32>
    %82 = arith.addf %80, %81 : vector<2x16xf32>
    %83 = vector.broadcast %28 : vector<1x16xf32> to vector<2x16xf32>
    %84 = arith.addf %82, %83 : vector<2x16xf32>
    %85 = arith.negf %84 : vector<2x16xf32>
    %86 = math.exp %85 : vector<2x16xf32>
    %cst_13 = arith.constant 1.000000e+00 : f32
    %87 = vector.broadcast %cst_13 : f32 to vector<2x16xf32>
    %88 = arith.addf %87, %86 : vector<2x16xf32>
    %89 = arith.divf %87, %88 : vector<2x16xf32>
    %90 = vector.extract_strided_slice %68 {offsets = [0, 32], sizes = [2, 16], strides = [1, 1]} : vector<2x48xf32> to vector<2x16xf32>
    %91 = vector.broadcast %29 : vector<1x16xf32> to vector<2x16xf32>
    %92 = arith.addf %90, %91 : vector<2x16xf32>
    %93 = vector.extract_strided_slice %69 {offsets = [0, 32], sizes = [2, 16], strides = [1, 1]} : vector<2x48xf32> to vector<2x16xf32>
    %94 = vector.broadcast %30 : vector<1x16xf32> to vector<2x16xf32>
    %95 = arith.addf %93, %94 : vector<2x16xf32>
    %96 = arith.mulf %79, %95 : vector<2x16xf32>
    %97 = arith.addf %92, %96 : vector<2x16xf32>
    %98 = math.tanh %97 : vector<2x16xf32>
    %cst_14 = arith.constant 1.000000e+00 : f32
    %99 = vector.broadcast %cst_14 : f32 to vector<2x16xf32>
    %100 = arith.subf %99, %89 : vector<2x16xf32>
    %101 = arith.mulf %100, %98 : vector<2x16xf32>
    %102 = arith.mulf %89, %67 : vector<2x16xf32>
    %103 = arith.addf %101, %102 : vector<2x16xf32>
    %cst_15 = arith.constant dense<0.000000e+00> : vector<2x48xf32>
    %104 = tpu.matmul %6, %19, %cst_15 {dimension_numbers = #tpu.dot_dimension_numbers<[1], [0], [0], [1], [0, 0, 1, 1], [], []>} : vector<2x4xf32>, vector<4x48xf32>, vector<2x48xf32> -> vector<2x48xf32>
    %cst_16 = arith.constant dense<0.000000e+00> : vector<2x48xf32>
    %105 = tpu.matmul %103, %20, %cst_16 {dimension_numbers = #tpu.dot_dimension_numbers<[1], [0], [0], [1], [0, 0, 1, 1], [], []>} : vector<2x16xf32>, vector<16x48xf32>, vector<2x48xf32> -> vector<2x48xf32>
    %106 = vector.extract_strided_slice %104 {offsets = [0, 0], sizes = [2, 16], strides = [1, 1]} : vector<2x48xf32> to vector<2x16xf32>
    %107 = vector.extract_strided_slice %105 {offsets = [0, 0], sizes = [2, 16], strides = [1, 1]} : vector<2x48xf32> to vector<2x16xf32>
    %108 = arith.addf %106, %107 : vector<2x16xf32>
    %109 = vector.broadcast %25 : vector<1x16xf32> to vector<2x16xf32>
    %110 = arith.addf %108, %109 : vector<2x16xf32>
    %111 = arith.negf %110 : vector<2x16xf32>
    %112 = math.exp %111 : vector<2x16xf32>
    %cst_17 = arith.constant 1.000000e+00 : f32
    %113 = vector.broadcast %cst_17 : f32 to vector<2x16xf32>
    %114 = arith.addf %113, %112 : vector<2x16xf32>
    %115 = arith.divf %113, %114 : vector<2x16xf32>
    %116 = vector.extract_strided_slice %104 {offsets = [0, 16], sizes = [2, 16], strides = [1, 1]} : vector<2x48xf32> to vector<2x16xf32>
    %117 = vector.extract_strided_slice %105 {offsets = [0, 16], sizes = [2, 16], strides = [1, 1]} : vector<2x48xf32> to vector<2x16xf32>
    %118 = arith.addf %116, %117 : vector<2x16xf32>
    %119 = vector.broadcast %28 : vector<1x16xf32> to vector<2x16xf32>
    %120 = arith.addf %118, %119 : vector<2x16xf32>
    %121 = arith.negf %120 : vector<2x16xf32>
    %122 = math.exp %121 : vector<2x16xf32>
    %cst_18 = arith.constant 1.000000e+00 : f32
    %123 = vector.broadcast %cst_18 : f32 to vector<2x16xf32>
    %124 = arith.addf %123, %122 : vector<2x16xf32>
    %125 = arith.divf %123, %124 : vector<2x16xf32>
    %126 = vector.extract_strided_slice %104 {offsets = [0, 32], sizes = [2, 16], strides = [1, 1]} : vector<2x48xf32> to vector<2x16xf32>
    %127 = vector.broadcast %29 : vector<1x16xf32> to vector<2x16xf32>
    %128 = arith.addf %126, %127 : vector<2x16xf32>
    %129 = vector.extract_strided_slice %105 {offsets = [0, 32], sizes = [2, 16], strides = [1, 1]} : vector<2x48xf32> to vector<2x16xf32>
    %130 = vector.broadcast %30 : vector<1x16xf32> to vector<2x16xf32>
    %131 = arith.addf %129, %130 : vector<2x16xf32>
    %132 = arith.mulf %115, %131 : vector<2x16xf32>
    %133 = arith.addf %128, %132 : vector<2x16xf32>
    %134 = math.tanh %133 : vector<2x16xf32>
    %cst_19 = arith.constant 1.000000e+00 : f32
    %135 = vector.broadcast %cst_19 : f32 to vector<2x16xf32>
    %136 = arith.subf %135, %125 : vector<2x16xf32>
    %137 = arith.mulf %136, %134 : vector<2x16xf32>
    %138 = arith.mulf %125, %103 : vector<2x16xf32>
    %139 = arith.addf %137, %138 : vector<2x16xf32>
    %cst_20 = arith.constant dense<0.000000e+00> : vector<2x48xf32>
    %140 = tpu.matmul %8, %19, %cst_20 {dimension_numbers = #tpu.dot_dimension_numbers<[1], [0], [0], [1], [0, 0, 1, 1], [], []>} : vector<2x4xf32>, vector<4x48xf32>, vector<2x48xf32> -> vector<2x48xf32>
    %cst_21 = arith.constant dense<0.000000e+00> : vector<2x48xf32>
    %141 = tpu.matmul %139, %20, %cst_21 {dimension_numbers = #tpu.dot_dimension_numbers<[1], [0], [0], [1], [0, 0, 1, 1], [], []>} : vector<2x16xf32>, vector<16x48xf32>, vector<2x48xf32> -> vector<2x48xf32>
    %142 = vector.extract_strided_slice %140 {offsets = [0, 0], sizes = [2, 16], strides = [1, 1]} : vector<2x48xf32> to vector<2x16xf32>
    %143 = vector.extract_strided_slice %141 {offsets = [0, 0], sizes = [2, 16], strides = [1, 1]} : vector<2x48xf32> to vector<2x16xf32>
    %144 = arith.addf %142, %143 : vector<2x16xf32>
    %145 = vector.broadcast %25 : vector<1x16xf32> to vector<2x16xf32>
    %146 = arith.addf %144, %145 : vector<2x16xf32>
    %147 = arith.negf %146 : vector<2x16xf32>
    %148 = math.exp %147 : vector<2x16xf32>
    %cst_22 = arith.constant 1.000000e+00 : f32
    %149 = vector.broadcast %cst_22 : f32 to vector<2x16xf32>
    %150 = arith.addf %149, %148 : vector<2x16xf32>
    %151 = arith.divf %149, %150 : vector<2x16xf32>
    %152 = vector.extract_strided_slice %140 {offsets = [0, 16], sizes = [2, 16], strides = [1, 1]} : vector<2x48xf32> to vector<2x16xf32>
    %153 = vector.extract_strided_slice %141 {offsets = [0, 16], sizes = [2, 16], strides = [1, 1]} : vector<2x48xf32> to vector<2x16xf32>
    %154 = arith.addf %152, %153 : vector<2x16xf32>
    %155 = vector.broadcast %28 : vector<1x16xf32> to vector<2x16xf32>
    %156 = arith.addf %154, %155 : vector<2x16xf32>
    %157 = arith.negf %156 : vector<2x16xf32>
    %158 = math.exp %157 : vector<2x16xf32>
    %cst_23 = arith.constant 1.000000e+00 : f32
    %159 = vector.broadcast %cst_23 : f32 to vector<2x16xf32>
    %160 = arith.addf %159, %158 : vector<2x16xf32>
    %161 = arith.divf %159, %160 : vector<2x16xf32>
    %162 = vector.extract_strided_slice %140 {offsets = [0, 32], sizes = [2, 16], strides = [1, 1]} : vector<2x48xf32> to vector<2x16xf32>
    %163 = vector.broadcast %29 : vector<1x16xf32> to vector<2x16xf32>
    %164 = arith.addf %162, %163 : vector<2x16xf32>
    %165 = vector.extract_strided_slice %141 {offsets = [0, 32], sizes = [2, 16], strides = [1, 1]} : vector<2x48xf32> to vector<2x16xf32>
    %166 = vector.broadcast %30 : vector<1x16xf32> to vector<2x16xf32>
    %167 = arith.addf %165, %166 : vector<2x16xf32>
    %168 = arith.mulf %151, %167 : vector<2x16xf32>
    %169 = arith.addf %164, %168 : vector<2x16xf32>
    %170 = math.tanh %169 : vector<2x16xf32>
    %cst_24 = arith.constant 1.000000e+00 : f32
    %171 = vector.broadcast %cst_24 : f32 to vector<2x16xf32>
    %172 = arith.subf %171, %161 : vector<2x16xf32>
    %173 = arith.mulf %172, %170 : vector<2x16xf32>
    %174 = arith.mulf %161, %139 : vector<2x16xf32>
    %175 = arith.addf %173, %174 : vector<2x16xf32>
    %cst_25 = arith.constant dense<0.000000e+00> : vector<2x48xf32>
    %176 = tpu.matmul %10, %19, %cst_25 {dimension_numbers = #tpu.dot_dimension_numbers<[1], [0], [0], [1], [0, 0, 1, 1], [], []>} : vector<2x4xf32>, vector<4x48xf32>, vector<2x48xf32> -> vector<2x48xf32>
    %cst_26 = arith.constant dense<0.000000e+00> : vector<2x48xf32>
    %177 = tpu.matmul %175, %20, %cst_26 {dimension_numbers = #tpu.dot_dimension_numbers<[1], [0], [0], [1], [0, 0, 1, 1], [], []>} : vector<2x16xf32>, vector<16x48xf32>, vector<2x48xf32> -> vector<2x48xf32>
    %178 = vector.extract_strided_slice %176 {offsets = [0, 0], sizes = [2, 16], strides = [1, 1]} : vector<2x48xf32> to vector<2x16xf32>
    %179 = vector.extract_strided_slice %177 {offsets = [0, 0], sizes = [2, 16], strides = [1, 1]} : vector<2x48xf32> to vector<2x16xf32>
    %180 = arith.addf %178, %179 : vector<2x16xf32>
    %181 = vector.broadcast %25 : vector<1x16xf32> to vector<2x16xf32>
    %182 = arith.addf %180, %181 : vector<2x16xf32>
    %183 = arith.negf %182 : vector<2x16xf32>
    %184 = math.exp %183 : vector<2x16xf32>
    %cst_27 = arith.constant 1.000000e+00 : f32
    %185 = vector.broadcast %cst_27 : f32 to vector<2x16xf32>
    %186 = arith.addf %185, %184 : vector<2x16xf32>
    %187 = arith.divf %185, %186 : vector<2x16xf32>
    %188 = vector.extract_strided_slice %176 {offsets = [0, 16], sizes = [2, 16], strides = [1, 1]} : vector<2x48xf32> to vector<2x16xf32>
    %189 = vector.extract_strided_slice %177 {offsets = [0, 16], sizes = [2, 16], strides = [1, 1]} : vector<2x48xf32> to vector<2x16xf32>
    %190 = arith.addf %188, %189 : vector<2x16xf32>
    %191 = vector.broadcast %28 : vector<1x16xf32> to vector<2x16xf32>
    %192 = arith.addf %190, %191 : vector<2x16xf32>
    %193 = arith.negf %192 : vector<2x16xf32>
    %194 = math.exp %193 : vector<2x16xf32>
    %cst_28 = arith.constant 1.000000e+00 : f32
    %195 = vector.broadcast %cst_28 : f32 to vector<2x16xf32>
    %196 = arith.addf %195, %194 : vector<2x16xf32>
    %197 = arith.divf %195, %196 : vector<2x16xf32>
    %198 = vector.extract_strided_slice %176 {offsets = [0, 32], sizes = [2, 16], strides = [1, 1]} : vector<2x48xf32> to vector<2x16xf32>
    %199 = vector.broadcast %29 : vector<1x16xf32> to vector<2x16xf32>
    %200 = arith.addf %198, %199 : vector<2x16xf32>
    %201 = vector.extract_strided_slice %177 {offsets = [0, 32], sizes = [2, 16], strides = [1, 1]} : vector<2x48xf32> to vector<2x16xf32>
    %202 = vector.broadcast %30 : vector<1x16xf32> to vector<2x16xf32>
    %203 = arith.addf %201, %202 : vector<2x16xf32>
    %204 = arith.mulf %187, %203 : vector<2x16xf32>
    %205 = arith.addf %200, %204 : vector<2x16xf32>
    %206 = math.tanh %205 : vector<2x16xf32>
    %cst_29 = arith.constant 1.000000e+00 : f32
    %207 = vector.broadcast %cst_29 : f32 to vector<2x16xf32>
    %208 = arith.subf %207, %197 : vector<2x16xf32>
    %209 = arith.mulf %208, %206 : vector<2x16xf32>
    %210 = arith.mulf %197, %175 : vector<2x16xf32>
    %211 = arith.addf %209, %210 : vector<2x16xf32>
    %cst_30 = arith.constant dense<0.000000e+00> : vector<2x48xf32>
    %212 = tpu.matmul %12, %19, %cst_30 {dimension_numbers = #tpu.dot_dimension_numbers<[1], [0], [0], [1], [0, 0, 1, 1], [], []>} : vector<2x4xf32>, vector<4x48xf32>, vector<2x48xf32> -> vector<2x48xf32>
    %cst_31 = arith.constant dense<0.000000e+00> : vector<2x48xf32>
    %213 = tpu.matmul %211, %20, %cst_31 {dimension_numbers = #tpu.dot_dimension_numbers<[1], [0], [0], [1], [0, 0, 1, 1], [], []>} : vector<2x16xf32>, vector<16x48xf32>, vector<2x48xf32> -> vector<2x48xf32>
    %214 = vector.extract_strided_slice %212 {offsets = [0, 0], sizes = [2, 16], strides = [1, 1]} : vector<2x48xf32> to vector<2x16xf32>
    %215 = vector.extract_strided_slice %213 {offsets = [0, 0], sizes = [2, 16], strides = [1, 1]} : vector<2x48xf32> to vector<2x16xf32>
    %216 = arith.addf %214, %215 : vector<2x16xf32>
    %217 = vector.broadcast %25 : vector<1x16xf32> to vector<2x16xf32>
    %218 = arith.addf %216, %217 : vector<2x16xf32>
    %219 = arith.negf %218 : vector<2x16xf32>
    %220 = math.exp %219 : vector<2x16xf32>
    %cst_32 = arith.constant 1.000000e+00 : f32
    %221 = vector.broadcast %cst_32 : f32 to vector<2x16xf32>
    %222 = arith.addf %221, %220 : vector<2x16xf32>
    %223 = arith.divf %221, %222 : vector<2x16xf32>
    %224 = vector.extract_strided_slice %212 {offsets = [0, 16], sizes = [2, 16], strides = [1, 1]} : vector<2x48xf32> to vector<2x16xf32>
    %225 = vector.extract_strided_slice %213 {offsets = [0, 16], sizes = [2, 16], strides = [1, 1]} : vector<2x48xf32> to vector<2x16xf32>
    %226 = arith.addf %224, %225 : vector<2x16xf32>
    %227 = vector.broadcast %28 : vector<1x16xf32> to vector<2x16xf32>
    %228 = arith.addf %226, %227 : vector<2x16xf32>
    %229 = arith.negf %228 : vector<2x16xf32>
    %230 = math.exp %229 : vector<2x16xf32>
    %cst_33 = arith.constant 1.000000e+00 : f32
    %231 = vector.broadcast %cst_33 : f32 to vector<2x16xf32>
    %232 = arith.addf %231, %230 : vector<2x16xf32>
    %233 = arith.divf %231, %232 : vector<2x16xf32>
    %234 = vector.extract_strided_slice %212 {offsets = [0, 32], sizes = [2, 16], strides = [1, 1]} : vector<2x48xf32> to vector<2x16xf32>
    %235 = vector.broadcast %29 : vector<1x16xf32> to vector<2x16xf32>
    %236 = arith.addf %234, %235 : vector<2x16xf32>
    %237 = vector.extract_strided_slice %213 {offsets = [0, 32], sizes = [2, 16], strides = [1, 1]} : vector<2x48xf32> to vector<2x16xf32>
    %238 = vector.broadcast %30 : vector<1x16xf32> to vector<2x16xf32>
    %239 = arith.addf %237, %238 : vector<2x16xf32>
    %240 = arith.mulf %223, %239 : vector<2x16xf32>
    %241 = arith.addf %236, %240 : vector<2x16xf32>
    %242 = math.tanh %241 : vector<2x16xf32>
    %cst_34 = arith.constant 1.000000e+00 : f32
    %243 = vector.broadcast %cst_34 : f32 to vector<2x16xf32>
    %244 = arith.subf %243, %233 : vector<2x16xf32>
    %245 = arith.mulf %244, %242 : vector<2x16xf32>
    %246 = arith.mulf %233, %211 : vector<2x16xf32>
    %247 = arith.addf %245, %246 : vector<2x16xf32>
    %cst_35 = arith.constant dense<0.000000e+00> : vector<2x48xf32>
    %248 = tpu.matmul %14, %19, %cst_35 {dimension_numbers = #tpu.dot_dimension_numbers<[1], [0], [0], [1], [0, 0, 1, 1], [], []>} : vector<2x4xf32>, vector<4x48xf32>, vector<2x48xf32> -> vector<2x48xf32>
    %cst_36 = arith.constant dense<0.000000e+00> : vector<2x48xf32>
    %249 = tpu.matmul %247, %20, %cst_36 {dimension_numbers = #tpu.dot_dimension_numbers<[1], [0], [0], [1], [0, 0, 1, 1], [], []>} : vector<2x16xf32>, vector<16x48xf32>, vector<2x48xf32> -> vector<2x48xf32>
    %250 = vector.extract_strided_slice %248 {offsets = [0, 0], sizes = [2, 16], strides = [1, 1]} : vector<2x48xf32> to vector<2x16xf32>
    %251 = vector.extract_strided_slice %249 {offsets = [0, 0], sizes = [2, 16], strides = [1, 1]} : vector<2x48xf32> to vector<2x16xf32>
    %252 = arith.addf %250, %251 : vector<2x16xf32>
    %253 = vector.broadcast %25 : vector<1x16xf32> to vector<2x16xf32>
    %254 = arith.addf %252, %253 : vector<2x16xf32>
    %255 = arith.negf %254 : vector<2x16xf32>
    %256 = math.exp %255 : vector<2x16xf32>
    %cst_37 = arith.constant 1.000000e+00 : f32
    %257 = vector.broadcast %cst_37 : f32 to vector<2x16xf32>
    %258 = arith.addf %257, %256 : vector<2x16xf32>
    %259 = arith.divf %257, %258 : vector<2x16xf32>
    %260 = vector.extract_strided_slice %248 {offsets = [0, 16], sizes = [2, 16], strides = [1, 1]} : vector<2x48xf32> to vector<2x16xf32>
    %261 = vector.extract_strided_slice %249 {offsets = [0, 16], sizes = [2, 16], strides = [1, 1]} : vector<2x48xf32> to vector<2x16xf32>
    %262 = arith.addf %260, %261 : vector<2x16xf32>
    %263 = vector.broadcast %28 : vector<1x16xf32> to vector<2x16xf32>
    %264 = arith.addf %262, %263 : vector<2x16xf32>
    %265 = arith.negf %264 : vector<2x16xf32>
    %266 = math.exp %265 : vector<2x16xf32>
    %cst_38 = arith.constant 1.000000e+00 : f32
    %267 = vector.broadcast %cst_38 : f32 to vector<2x16xf32>
    %268 = arith.addf %267, %266 : vector<2x16xf32>
    %269 = arith.divf %267, %268 : vector<2x16xf32>
    %270 = vector.extract_strided_slice %248 {offsets = [0, 32], sizes = [2, 16], strides = [1, 1]} : vector<2x48xf32> to vector<2x16xf32>
    %271 = vector.broadcast %29 : vector<1x16xf32> to vector<2x16xf32>
    %272 = arith.addf %270, %271 : vector<2x16xf32>
    %273 = vector.extract_strided_slice %249 {offsets = [0, 32], sizes = [2, 16], strides = [1, 1]} : vector<2x48xf32> to vector<2x16xf32>
    %274 = vector.broadcast %30 : vector<1x16xf32> to vector<2x16xf32>
    %275 = arith.addf %273, %274 : vector<2x16xf32>
    %276 = arith.mulf %259, %275 : vector<2x16xf32>
    %277 = arith.addf %272, %276 : vector<2x16xf32>
    %278 = math.tanh %277 : vector<2x16xf32>
    %cst_39 = arith.constant 1.000000e+00 : f32
    %279 = vector.broadcast %cst_39 : f32 to vector<2x16xf32>
    %280 = arith.subf %279, %269 : vector<2x16xf32>
    %281 = arith.mulf %280, %278 : vector<2x16xf32>
    %282 = arith.mulf %269, %247 : vector<2x16xf32>
    %283 = arith.addf %281, %282 : vector<2x16xf32>
    %cst_40 = arith.constant dense<0.000000e+00> : vector<2x48xf32>
    %284 = tpu.matmul %16, %19, %cst_40 {dimension_numbers = #tpu.dot_dimension_numbers<[1], [0], [0], [1], [0, 0, 1, 1], [], []>} : vector<2x4xf32>, vector<4x48xf32>, vector<2x48xf32> -> vector<2x48xf32>
    %cst_41 = arith.constant dense<0.000000e+00> : vector<2x48xf32>
    %285 = tpu.matmul %283, %20, %cst_41 {dimension_numbers = #tpu.dot_dimension_numbers<[1], [0], [0], [1], [0, 0, 1, 1], [], []>} : vector<2x16xf32>, vector<16x48xf32>, vector<2x48xf32> -> vector<2x48xf32>
    %286 = vector.extract_strided_slice %284 {offsets = [0, 0], sizes = [2, 16], strides = [1, 1]} : vector<2x48xf32> to vector<2x16xf32>
    %287 = vector.extract_strided_slice %285 {offsets = [0, 0], sizes = [2, 16], strides = [1, 1]} : vector<2x48xf32> to vector<2x16xf32>
    %288 = arith.addf %286, %287 : vector<2x16xf32>
    %289 = vector.broadcast %25 : vector<1x16xf32> to vector<2x16xf32>
    %290 = arith.addf %288, %289 : vector<2x16xf32>
    %291 = arith.negf %290 : vector<2x16xf32>
    %292 = math.exp %291 : vector<2x16xf32>
    %cst_42 = arith.constant 1.000000e+00 : f32
    %293 = vector.broadcast %cst_42 : f32 to vector<2x16xf32>
    %294 = arith.addf %293, %292 : vector<2x16xf32>
    %295 = arith.divf %293, %294 : vector<2x16xf32>
    %296 = vector.extract_strided_slice %284 {offsets = [0, 16], sizes = [2, 16], strides = [1, 1]} : vector<2x48xf32> to vector<2x16xf32>
    %297 = vector.extract_strided_slice %285 {offsets = [0, 16], sizes = [2, 16], strides = [1, 1]} : vector<2x48xf32> to vector<2x16xf32>
    %298 = arith.addf %296, %297 : vector<2x16xf32>
    %299 = vector.broadcast %28 : vector<1x16xf32> to vector<2x16xf32>
    %300 = arith.addf %298, %299 : vector<2x16xf32>
    %301 = arith.negf %300 : vector<2x16xf32>
    %302 = math.exp %301 : vector<2x16xf32>
    %cst_43 = arith.constant 1.000000e+00 : f32
    %303 = vector.broadcast %cst_43 : f32 to vector<2x16xf32>
    %304 = arith.addf %303, %302 : vector<2x16xf32>
    %305 = arith.divf %303, %304 : vector<2x16xf32>
    %306 = vector.extract_strided_slice %284 {offsets = [0, 32], sizes = [2, 16], strides = [1, 1]} : vector<2x48xf32> to vector<2x16xf32>
    %307 = vector.broadcast %29 : vector<1x16xf32> to vector<2x16xf32>
    %308 = arith.addf %306, %307 : vector<2x16xf32>
    %309 = vector.extract_strided_slice %285 {offsets = [0, 32], sizes = [2, 16], strides = [1, 1]} : vector<2x48xf32> to vector<2x16xf32>
    %310 = vector.broadcast %30 : vector<1x16xf32> to vector<2x16xf32>
    %311 = arith.addf %309, %310 : vector<2x16xf32>
    %312 = arith.mulf %295, %311 : vector<2x16xf32>
    %313 = arith.addf %308, %312 : vector<2x16xf32>
    %314 = math.tanh %313 : vector<2x16xf32>
    %cst_44 = arith.constant 1.000000e+00 : f32
    %315 = vector.broadcast %cst_44 : f32 to vector<2x16xf32>
    %316 = arith.subf %315, %305 : vector<2x16xf32>
    %317 = arith.mulf %316, %314 : vector<2x16xf32>
    %318 = arith.mulf %305, %283 : vector<2x16xf32>
    %319 = arith.addf %317, %318 : vector<2x16xf32>
    %c0_45 = arith.constant 0 : index
    %c0_46 = arith.constant 0 : index
    %320 = vector.load %arg2[%c0_45, %c0_46] : memref<2x48xf32, #tpu.memory_space<vmem>>, vector<2x16xf32>
    tpu.vector_store %arg2[%c0_45, %c0_46], %319 {strides = array<i32>} : memref<2x48xf32, #tpu.memory_space<vmem>>, vector<2x16xf32>,
    %c1 = arith.constant 1 : index
    %c0_47 = arith.constant 0 : index
    %c0_48 = arith.constant 0 : index
    %321 = vector.load %arg1[%c1, %c0_47, %c0_48] : memref<3x34x48xf32, #tpu.memory_space<vmem>>, vector<1x34x48xf32>
    %322 = vector.shape_cast %321 : vector<1x34x48xf32> to vector<34x48xf32>
    %323 = vector.extract_strided_slice %322 {offsets = [0, 0], sizes = [16, 48], strides = [1, 1]} : vector<34x48xf32> to vector<16x48xf32>
    %324 = vector.extract_strided_slice %322 {offsets = [16, 0], sizes = [16, 48], strides = [1, 1]} : vector<34x48xf32> to vector<16x48xf32>
    %325 = vector.extract_strided_slice %322 {offsets = [32, 0], sizes = [1, 48], strides = [1, 1]} : vector<34x48xf32> to vector<1x48xf32>
    %326 = vector.extract_strided_slice %322 {offsets = [33, 0], sizes = [1, 48], strides = [1, 1]} : vector<34x48xf32> to vector<1x48xf32>
    %327 = vector.extract_strided_slice %325 {offsets = [0, 0], sizes = [1, 16], strides = [1, 1]} : vector<1x48xf32> to vector<1x16xf32>
    %328 = vector.extract_strided_slice %326 {offsets = [0, 0], sizes = [1, 16], strides = [1, 1]} : vector<1x48xf32> to vector<1x16xf32>
    %329 = arith.addf %327, %328 : vector<1x16xf32>
    %330 = vector.extract_strided_slice %325 {offsets = [0, 16], sizes = [1, 16], strides = [1, 1]} : vector<1x48xf32> to vector<1x16xf32>
    %331 = vector.extract_strided_slice %326 {offsets = [0, 16], sizes = [1, 16], strides = [1, 1]} : vector<1x48xf32> to vector<1x16xf32>
    %332 = arith.addf %330, %331 : vector<1x16xf32>
    %333 = vector.extract_strided_slice %325 {offsets = [0, 32], sizes = [1, 16], strides = [1, 1]} : vector<1x48xf32> to vector<1x16xf32>
    %334 = vector.extract_strided_slice %326 {offsets = [0, 32], sizes = [1, 16], strides = [1, 1]} : vector<1x48xf32> to vector<1x16xf32>
    %cst_49 = arith.constant 0.000000e+00 : f32
    %335 = vector.broadcast %cst_49 : f32 to vector<2x16xf32>
    %cst_50 = arith.constant dense<0.000000e+00> : vector<2x48xf32>
    %336 = tpu.matmul %67, %323, %cst_50 {dimension_numbers = #tpu.dot_dimension_numbers<[1], [0], [0], [1], [0, 0, 1, 1], [], []>} : vector<2x16xf32>, vector<16x48xf32>, vector<2x48xf32> -> vector<2x48xf32>
    %cst_51 = arith.constant dense<0.000000e+00> : vector<2x48xf32>
    %337 = tpu.matmul %335, %324, %cst_51 {dimension_numbers = #tpu.dot_dimension_numbers<[1], [0], [0], [1], [0, 0, 1, 1], [], []>} : vector<2x16xf32>, vector<16x48xf32>, vector<2x48xf32> -> vector<2x48xf32>
    %338 = vector.extract_strided_slice %336 {offsets = [0, 0], sizes = [2, 16], strides = [1, 1]} : vector<2x48xf32> to vector<2x16xf32>
    %339 = vector.extract_strided_slice %337 {offsets = [0, 0], sizes = [2, 16], strides = [1, 1]} : vector<2x48xf32> to vector<2x16xf32>
    %340 = arith.addf %338, %339 : vector<2x16xf32>
    %341 = vector.broadcast %329 : vector<1x16xf32> to vector<2x16xf32>
    %342 = arith.addf %340, %341 : vector<2x16xf32>
    %343 = arith.negf %342 : vector<2x16xf32>
    %344 = math.exp %343 : vector<2x16xf32>
    %cst_52 = arith.constant 1.000000e+00 : f32
    %345 = vector.broadcast %cst_52 : f32 to vector<2x16xf32>
    %346 = arith.addf %345, %344 : vector<2x16xf32>
    %347 = arith.divf %345, %346 : vector<2x16xf32>
    %348 = vector.extract_strided_slice %336 {offsets = [0, 16], sizes = [2, 16], strides = [1, 1]} : vector<2x48xf32> to vector<2x16xf32>
    %349 = vector.extract_strided_slice %337 {offsets = [0, 16], sizes = [2, 16], strides = [1, 1]} : vector<2x48xf32> to vector<2x16xf32>
    %350 = arith.addf %348, %349 : vector<2x16xf32>
    %351 = vector.broadcast %332 : vector<1x16xf32> to vector<2x16xf32>
    %352 = arith.addf %350, %351 : vector<2x16xf32>
    %353 = arith.negf %352 : vector<2x16xf32>
    %354 = math.exp %353 : vector<2x16xf32>
    %cst_53 = arith.constant 1.000000e+00 : f32
    %355 = vector.broadcast %cst_53 : f32 to vector<2x16xf32>
    %356 = arith.addf %355, %354 : vector<2x16xf32>
    %357 = arith.divf %355, %356 : vector<2x16xf32>
    %358 = vector.extract_strided_slice %336 {offsets = [0, 32], sizes = [2, 16], strides = [1, 1]} : vector<2x48xf32> to vector<2x16xf32>
    %359 = vector.broadcast %333 : vector<1x16xf32> to vector<2x16xf32>
    %360 = arith.addf %358, %359 : vector<2x16xf32>
    %361 = vector.extract_strided_slice %337 {offsets = [0, 32], sizes = [2, 16], strides = [1, 1]} : vector<2x48xf32> to vector<2x16xf32>
    %362 = vector.broadcast %334 : vector<1x16xf32> to vector<2x16xf32>
    %363 = arith.addf %361, %362 : vector<2x16xf32>
    %364 = arith.mulf %347, %363 : vector<2x16xf32>
    %365 = arith.addf %360, %364 : vector<2x16xf32>
    %366 = math.tanh %365 : vector<2x16xf32>
    %cst_54 = arith.constant 1.000000e+00 : f32
    %367 = vector.broadcast %cst_54 : f32 to vector<2x16xf32>
    %368 = arith.subf %367, %357 : vector<2x16xf32>
    %369 = arith.mulf %368, %366 : vector<2x16xf32>
    %370 = arith.mulf %357, %335 : vector<2x16xf32>
    %371 = arith.addf %369, %370 : vector<2x16xf32>
    %cst_55 = arith.constant dense<0.000000e+00> : vector<2x48xf32>
    %372 = tpu.matmul %103, %323, %cst_55 {dimension_numbers = #tpu.dot_dimension_numbers<[1], [0], [0], [1], [0, 0, 1, 1], [], []>} : vector<2x16xf32>, vector<16x48xf32>, vector<2x48xf32> -> vector<2x48xf32>
    %cst_56 = arith.constant dense<0.000000e+00> : vector<2x48xf32>
    %373 = tpu.matmul %371, %324, %cst_56 {dimension_numbers = #tpu.dot_dimension_numbers<[1], [0], [0], [1], [0, 0, 1, 1], [], []>} : vector<2x16xf32>, vector<16x48xf32>, vector<2x48xf32> -> vector<2x48xf32>
    %374 = vector.extract_strided_slice %372 {offsets = [0, 0], sizes = [2, 16], strides = [1, 1]} : vector<2x48xf32> to vector<2x16xf32>
    %375 = vector.extract_strided_slice %373 {offsets = [0, 0], sizes = [2, 16], strides = [1, 1]} : vector<2x48xf32> to vector<2x16xf32>
    %376 = arith.addf %374, %375 : vector<2x16xf32>
    %377 = vector.broadcast %329 : vector<1x16xf32> to vector<2x16xf32>
    %378 = arith.addf %376, %377 : vector<2x16xf32>
    %379 = arith.negf %378 : vector<2x16xf32>
    %380 = math.exp %379 : vector<2x16xf32>
    %cst_57 = arith.constant 1.000000e+00 : f32
    %381 = vector.broadcast %cst_57 : f32 to vector<2x16xf32>
    %382 = arith.addf %381, %380 : vector<2x16xf32>
    %383 = arith.divf %381, %382 : vector<2x16xf32>
    %384 = vector.extract_strided_slice %372 {offsets = [0, 16], sizes = [2, 16], strides = [1, 1]} : vector<2x48xf32> to vector<2x16xf32>
    %385 = vector.extract_strided_slice %373 {offsets = [0, 16], sizes = [2, 16], strides = [1, 1]} : vector<2x48xf32> to vector<2x16xf32>
    %386 = arith.addf %384, %385 : vector<2x16xf32>
    %387 = vector.broadcast %332 : vector<1x16xf32> to vector<2x16xf32>
    %388 = arith.addf %386, %387 : vector<2x16xf32>
    %389 = arith.negf %388 : vector<2x16xf32>
    %390 = math.exp %389 : vector<2x16xf32>
    %cst_58 = arith.constant 1.000000e+00 : f32
    %391 = vector.broadcast %cst_58 : f32 to vector<2x16xf32>
    %392 = arith.addf %391, %390 : vector<2x16xf32>
    %393 = arith.divf %391, %392 : vector<2x16xf32>
    %394 = vector.extract_strided_slice %372 {offsets = [0, 32], sizes = [2, 16], strides = [1, 1]} : vector<2x48xf32> to vector<2x16xf32>
    %395 = vector.broadcast %333 : vector<1x16xf32> to vector<2x16xf32>
    %396 = arith.addf %394, %395 : vector<2x16xf32>
    %397 = vector.extract_strided_slice %373 {offsets = [0, 32], sizes = [2, 16], strides = [1, 1]} : vector<2x48xf32> to vector<2x16xf32>
    %398 = vector.broadcast %334 : vector<1x16xf32> to vector<2x16xf32>
    %399 = arith.addf %397, %398 : vector<2x16xf32>
    %400 = arith.mulf %383, %399 : vector<2x16xf32>
    %401 = arith.addf %396, %400 : vector<2x16xf32>
    %402 = math.tanh %401 : vector<2x16xf32>
    %cst_59 = arith.constant 1.000000e+00 : f32
    %403 = vector.broadcast %cst_59 : f32 to vector<2x16xf32>
    %404 = arith.subf %403, %393 : vector<2x16xf32>
    %405 = arith.mulf %404, %402 : vector<2x16xf32>
    %406 = arith.mulf %393, %371 : vector<2x16xf32>
    %407 = arith.addf %405, %406 : vector<2x16xf32>
    %cst_60 = arith.constant dense<0.000000e+00> : vector<2x48xf32>
    %408 = tpu.matmul %139, %323, %cst_60 {dimension_numbers = #tpu.dot_dimension_numbers<[1], [0], [0], [1], [0, 0, 1, 1], [], []>} : vector<2x16xf32>, vector<16x48xf32>, vector<2x48xf32> -> vector<2x48xf32>
    %cst_61 = arith.constant dense<0.000000e+00> : vector<2x48xf32>
    %409 = tpu.matmul %407, %324, %cst_61 {dimension_numbers = #tpu.dot_dimension_numbers<[1], [0], [0], [1], [0, 0, 1, 1], [], []>} : vector<2x16xf32>, vector<16x48xf32>, vector<2x48xf32> -> vector<2x48xf32>
    %410 = vector.extract_strided_slice %408 {offsets = [0, 0], sizes = [2, 16], strides = [1, 1]} : vector<2x48xf32> to vector<2x16xf32>
    %411 = vector.extract_strided_slice %409 {offsets = [0, 0], sizes = [2, 16], strides = [1, 1]} : vector<2x48xf32> to vector<2x16xf32>
    %412 = arith.addf %410, %411 : vector<2x16xf32>
    %413 = vector.broadcast %329 : vector<1x16xf32> to vector<2x16xf32>
    %414 = arith.addf %412, %413 : vector<2x16xf32>
    %415 = arith.negf %414 : vector<2x16xf32>
    %416 = math.exp %415 : vector<2x16xf32>
    %cst_62 = arith.constant 1.000000e+00 : f32
    %417 = vector.broadcast %cst_62 : f32 to vector<2x16xf32>
    %418 = arith.addf %417, %416 : vector<2x16xf32>
    %419 = arith.divf %417, %418 : vector<2x16xf32>
    %420 = vector.extract_strided_slice %408 {offsets = [0, 16], sizes = [2, 16], strides = [1, 1]} : vector<2x48xf32> to vector<2x16xf32>
    %421 = vector.extract_strided_slice %409 {offsets = [0, 16], sizes = [2, 16], strides = [1, 1]} : vector<2x48xf32> to vector<2x16xf32>
    %422 = arith.addf %420, %421 : vector<2x16xf32>
    %423 = vector.broadcast %332 : vector<1x16xf32> to vector<2x16xf32>
    %424 = arith.addf %422, %423 : vector<2x16xf32>
    %425 = arith.negf %424 : vector<2x16xf32>
    %426 = math.exp %425 : vector<2x16xf32>
    %cst_63 = arith.constant 1.000000e+00 : f32
    %427 = vector.broadcast %cst_63 : f32 to vector<2x16xf32>
    %428 = arith.addf %427, %426 : vector<2x16xf32>
    %429 = arith.divf %427, %428 : vector<2x16xf32>
    %430 = vector.extract_strided_slice %408 {offsets = [0, 32], sizes = [2, 16], strides = [1, 1]} : vector<2x48xf32> to vector<2x16xf32>
    %431 = vector.broadcast %333 : vector<1x16xf32> to vector<2x16xf32>
    %432 = arith.addf %430, %431 : vector<2x16xf32>
    %433 = vector.extract_strided_slice %409 {offsets = [0, 32], sizes = [2, 16], strides = [1, 1]} : vector<2x48xf32> to vector<2x16xf32>
    %434 = vector.broadcast %334 : vector<1x16xf32> to vector<2x16xf32>
    %435 = arith.addf %433, %434 : vector<2x16xf32>
    %436 = arith.mulf %419, %435 : vector<2x16xf32>
    %437 = arith.addf %432, %436 : vector<2x16xf32>
    %438 = math.tanh %437 : vector<2x16xf32>
    %cst_64 = arith.constant 1.000000e+00 : f32
    %439 = vector.broadcast %cst_64 : f32 to vector<2x16xf32>
    %440 = arith.subf %439, %429 : vector<2x16xf32>
    %441 = arith.mulf %440, %438 : vector<2x16xf32>
    %442 = arith.mulf %429, %407 : vector<2x16xf32>
    %443 = arith.addf %441, %442 : vector<2x16xf32>
    %cst_65 = arith.constant dense<0.000000e+00> : vector<2x48xf32>
    %444 = tpu.matmul %175, %323, %cst_65 {dimension_numbers = #tpu.dot_dimension_numbers<[1], [0], [0], [1], [0, 0, 1, 1], [], []>} : vector<2x16xf32>, vector<16x48xf32>, vector<2x48xf32> -> vector<2x48xf32>
    %cst_66 = arith.constant dense<0.000000e+00> : vector<2x48xf32>
    %445 = tpu.matmul %443, %324, %cst_66 {dimension_numbers = #tpu.dot_dimension_numbers<[1], [0], [0], [1], [0, 0, 1, 1], [], []>} : vector<2x16xf32>, vector<16x48xf32>, vector<2x48xf32> -> vector<2x48xf32>
    %446 = vector.extract_strided_slice %444 {offsets = [0, 0], sizes = [2, 16], strides = [1, 1]} : vector<2x48xf32> to vector<2x16xf32>
    %447 = vector.extract_strided_slice %445 {offsets = [0, 0], sizes = [2, 16], strides = [1, 1]} : vector<2x48xf32> to vector<2x16xf32>
    %448 = arith.addf %446, %447 : vector<2x16xf32>
    %449 = vector.broadcast %329 : vector<1x16xf32> to vector<2x16xf32>
    %450 = arith.addf %448, %449 : vector<2x16xf32>
    %451 = arith.negf %450 : vector<2x16xf32>
    %452 = math.exp %451 : vector<2x16xf32>
    %cst_67 = arith.constant 1.000000e+00 : f32
    %453 = vector.broadcast %cst_67 : f32 to vector<2x16xf32>
    %454 = arith.addf %453, %452 : vector<2x16xf32>
    %455 = arith.divf %453, %454 : vector<2x16xf32>
    %456 = vector.extract_strided_slice %444 {offsets = [0, 16], sizes = [2, 16], strides = [1, 1]} : vector<2x48xf32> to vector<2x16xf32>
    %457 = vector.extract_strided_slice %445 {offsets = [0, 16], sizes = [2, 16], strides = [1, 1]} : vector<2x48xf32> to vector<2x16xf32>
    %458 = arith.addf %456, %457 : vector<2x16xf32>
    %459 = vector.broadcast %332 : vector<1x16xf32> to vector<2x16xf32>
    %460 = arith.addf %458, %459 : vector<2x16xf32>
    %461 = arith.negf %460 : vector<2x16xf32>
    %462 = math.exp %461 : vector<2x16xf32>
    %cst_68 = arith.constant 1.000000e+00 : f32
    %463 = vector.broadcast %cst_68 : f32 to vector<2x16xf32>
    %464 = arith.addf %463, %462 : vector<2x16xf32>
    %465 = arith.divf %463, %464 : vector<2x16xf32>
    %466 = vector.extract_strided_slice %444 {offsets = [0, 32], sizes = [2, 16], strides = [1, 1]} : vector<2x48xf32> to vector<2x16xf32>
    %467 = vector.broadcast %333 : vector<1x16xf32> to vector<2x16xf32>
    %468 = arith.addf %466, %467 : vector<2x16xf32>
    %469 = vector.extract_strided_slice %445 {offsets = [0, 32], sizes = [2, 16], strides = [1, 1]} : vector<2x48xf32> to vector<2x16xf32>
    %470 = vector.broadcast %334 : vector<1x16xf32> to vector<2x16xf32>
    %471 = arith.addf %469, %470 : vector<2x16xf32>
    %472 = arith.mulf %455, %471 : vector<2x16xf32>
    %473 = arith.addf %468, %472 : vector<2x16xf32>
    %474 = math.tanh %473 : vector<2x16xf32>
    %cst_69 = arith.constant 1.000000e+00 : f32
    %475 = vector.broadcast %cst_69 : f32 to vector<2x16xf32>
    %476 = arith.subf %475, %465 : vector<2x16xf32>
    %477 = arith.mulf %476, %474 : vector<2x16xf32>
    %478 = arith.mulf %465, %443 : vector<2x16xf32>
    %479 = arith.addf %477, %478 : vector<2x16xf32>
    %cst_70 = arith.constant dense<0.000000e+00> : vector<2x48xf32>
    %480 = tpu.matmul %211, %323, %cst_70 {dimension_numbers = #tpu.dot_dimension_numbers<[1], [0], [0], [1], [0, 0, 1, 1], [], []>} : vector<2x16xf32>, vector<16x48xf32>, vector<2x48xf32> -> vector<2x48xf32>
    %cst_71 = arith.constant dense<0.000000e+00> : vector<2x48xf32>
    %481 = tpu.matmul %479, %324, %cst_71 {dimension_numbers = #tpu.dot_dimension_numbers<[1], [0], [0], [1], [0, 0, 1, 1], [], []>} : vector<2x16xf32>, vector<16x48xf32>, vector<2x48xf32> -> vector<2x48xf32>
    %482 = vector.extract_strided_slice %480 {offsets = [0, 0], sizes = [2, 16], strides = [1, 1]} : vector<2x48xf32> to vector<2x16xf32>
    %483 = vector.extract_strided_slice %481 {offsets = [0, 0], sizes = [2, 16], strides = [1, 1]} : vector<2x48xf32> to vector<2x16xf32>
    %484 = arith.addf %482, %483 : vector<2x16xf32>
    %485 = vector.broadcast %329 : vector<1x16xf32> to vector<2x16xf32>
    %486 = arith.addf %484, %485 : vector<2x16xf32>
    %487 = arith.negf %486 : vector<2x16xf32>
    %488 = math.exp %487 : vector<2x16xf32>
    %cst_72 = arith.constant 1.000000e+00 : f32
    %489 = vector.broadcast %cst_72 : f32 to vector<2x16xf32>
    %490 = arith.addf %489, %488 : vector<2x16xf32>
    %491 = arith.divf %489, %490 : vector<2x16xf32>
    %492 = vector.extract_strided_slice %480 {offsets = [0, 16], sizes = [2, 16], strides = [1, 1]} : vector<2x48xf32> to vector<2x16xf32>
    %493 = vector.extract_strided_slice %481 {offsets = [0, 16], sizes = [2, 16], strides = [1, 1]} : vector<2x48xf32> to vector<2x16xf32>
    %494 = arith.addf %492, %493 : vector<2x16xf32>
    %495 = vector.broadcast %332 : vector<1x16xf32> to vector<2x16xf32>
    %496 = arith.addf %494, %495 : vector<2x16xf32>
    %497 = arith.negf %496 : vector<2x16xf32>
    %498 = math.exp %497 : vector<2x16xf32>
    %cst_73 = arith.constant 1.000000e+00 : f32
    %499 = vector.broadcast %cst_73 : f32 to vector<2x16xf32>
    %500 = arith.addf %499, %498 : vector<2x16xf32>
    %501 = arith.divf %499, %500 : vector<2x16xf32>
    %502 = vector.extract_strided_slice %480 {offsets = [0, 32], sizes = [2, 16], strides = [1, 1]} : vector<2x48xf32> to vector<2x16xf32>
    %503 = vector.broadcast %333 : vector<1x16xf32> to vector<2x16xf32>
    %504 = arith.addf %502, %503 : vector<2x16xf32>
    %505 = vector.extract_strided_slice %481 {offsets = [0, 32], sizes = [2, 16], strides = [1, 1]} : vector<2x48xf32> to vector<2x16xf32>
    %506 = vector.broadcast %334 : vector<1x16xf32> to vector<2x16xf32>
    %507 = arith.addf %505, %506 : vector<2x16xf32>
    %508 = arith.mulf %491, %507 : vector<2x16xf32>
    %509 = arith.addf %504, %508 : vector<2x16xf32>
    %510 = math.tanh %509 : vector<2x16xf32>
    %cst_74 = arith.constant 1.000000e+00 : f32
    %511 = vector.broadcast %cst_74 : f32 to vector<2x16xf32>
    %512 = arith.subf %511, %501 : vector<2x16xf32>
    %513 = arith.mulf %512, %510 : vector<2x16xf32>
    %514 = arith.mulf %501, %479 : vector<2x16xf32>
    %515 = arith.addf %513, %514 : vector<2x16xf32>
    %cst_75 = arith.constant dense<0.000000e+00> : vector<2x48xf32>
    %516 = tpu.matmul %247, %323, %cst_75 {dimension_numbers = #tpu.dot_dimension_numbers<[1], [0], [0], [1], [0, 0, 1, 1], [], []>} : vector<2x16xf32>, vector<16x48xf32>, vector<2x48xf32> -> vector<2x48xf32>
    %cst_76 = arith.constant dense<0.000000e+00> : vector<2x48xf32>
    %517 = tpu.matmul %515, %324, %cst_76 {dimension_numbers = #tpu.dot_dimension_numbers<[1], [0], [0], [1], [0, 0, 1, 1], [], []>} : vector<2x16xf32>, vector<16x48xf32>, vector<2x48xf32> -> vector<2x48xf32>
    %518 = vector.extract_strided_slice %516 {offsets = [0, 0], sizes = [2, 16], strides = [1, 1]} : vector<2x48xf32> to vector<2x16xf32>
    %519 = vector.extract_strided_slice %517 {offsets = [0, 0], sizes = [2, 16], strides = [1, 1]} : vector<2x48xf32> to vector<2x16xf32>
    %520 = arith.addf %518, %519 : vector<2x16xf32>
    %521 = vector.broadcast %329 : vector<1x16xf32> to vector<2x16xf32>
    %522 = arith.addf %520, %521 : vector<2x16xf32>
    %523 = arith.negf %522 : vector<2x16xf32>
    %524 = math.exp %523 : vector<2x16xf32>
    %cst_77 = arith.constant 1.000000e+00 : f32
    %525 = vector.broadcast %cst_77 : f32 to vector<2x16xf32>
    %526 = arith.addf %525, %524 : vector<2x16xf32>
    %527 = arith.divf %525, %526 : vector<2x16xf32>
    %528 = vector.extract_strided_slice %516 {offsets = [0, 16], sizes = [2, 16], strides = [1, 1]} : vector<2x48xf32> to vector<2x16xf32>
    %529 = vector.extract_strided_slice %517 {offsets = [0, 16], sizes = [2, 16], strides = [1, 1]} : vector<2x48xf32> to vector<2x16xf32>
    %530 = arith.addf %528, %529 : vector<2x16xf32>
    %531 = vector.broadcast %332 : vector<1x16xf32> to vector<2x16xf32>
    %532 = arith.addf %530, %531 : vector<2x16xf32>
    %533 = arith.negf %532 : vector<2x16xf32>
    %534 = math.exp %533 : vector<2x16xf32>
    %cst_78 = arith.constant 1.000000e+00 : f32
    %535 = vector.broadcast %cst_78 : f32 to vector<2x16xf32>
    %536 = arith.addf %535, %534 : vector<2x16xf32>
    %537 = arith.divf %535, %536 : vector<2x16xf32>
    %538 = vector.extract_strided_slice %516 {offsets = [0, 32], sizes = [2, 16], strides = [1, 1]} : vector<2x48xf32> to vector<2x16xf32>
    %539 = vector.broadcast %333 : vector<1x16xf32> to vector<2x16xf32>
    %540 = arith.addf %538, %539 : vector<2x16xf32>
    %541 = vector.extract_strided_slice %517 {offsets = [0, 32], sizes = [2, 16], strides = [1, 1]} : vector<2x48xf32> to vector<2x16xf32>
    %542 = vector.broadcast %334 : vector<1x16xf32> to vector<2x16xf32>
    %543 = arith.addf %541, %542 : vector<2x16xf32>
    %544 = arith.mulf %527, %543 : vector<2x16xf32>
    %545 = arith.addf %540, %544 : vector<2x16xf32>
    %546 = math.tanh %545 : vector<2x16xf32>
    %cst_79 = arith.constant 1.000000e+00 : f32
    %547 = vector.broadcast %cst_79 : f32 to vector<2x16xf32>
    %548 = arith.subf %547, %537 : vector<2x16xf32>
    %549 = arith.mulf %548, %546 : vector<2x16xf32>
    %550 = arith.mulf %537, %515 : vector<2x16xf32>
    %551 = arith.addf %549, %550 : vector<2x16xf32>
    %cst_80 = arith.constant dense<0.000000e+00> : vector<2x48xf32>
    %552 = tpu.matmul %283, %323, %cst_80 {dimension_numbers = #tpu.dot_dimension_numbers<[1], [0], [0], [1], [0, 0, 1, 1], [], []>} : vector<2x16xf32>, vector<16x48xf32>, vector<2x48xf32> -> vector<2x48xf32>
    %cst_81 = arith.constant dense<0.000000e+00> : vector<2x48xf32>
    %553 = tpu.matmul %551, %324, %cst_81 {dimension_numbers = #tpu.dot_dimension_numbers<[1], [0], [0], [1], [0, 0, 1, 1], [], []>} : vector<2x16xf32>, vector<16x48xf32>, vector<2x48xf32> -> vector<2x48xf32>
    %554 = vector.extract_strided_slice %552 {offsets = [0, 0], sizes = [2, 16], strides = [1, 1]} : vector<2x48xf32> to vector<2x16xf32>
    %555 = vector.extract_strided_slice %553 {offsets = [0, 0], sizes = [2, 16], strides = [1, 1]} : vector<2x48xf32> to vector<2x16xf32>
    %556 = arith.addf %554, %555 : vector<2x16xf32>
    %557 = vector.broadcast %329 : vector<1x16xf32> to vector<2x16xf32>
    %558 = arith.addf %556, %557 : vector<2x16xf32>
    %559 = arith.negf %558 : vector<2x16xf32>
    %560 = math.exp %559 : vector<2x16xf32>
    %cst_82 = arith.constant 1.000000e+00 : f32
    %561 = vector.broadcast %cst_82 : f32 to vector<2x16xf32>
    %562 = arith.addf %561, %560 : vector<2x16xf32>
    %563 = arith.divf %561, %562 : vector<2x16xf32>
    %564 = vector.extract_strided_slice %552 {offsets = [0, 16], sizes = [2, 16], strides = [1, 1]} : vector<2x48xf32> to vector<2x16xf32>
    %565 = vector.extract_strided_slice %553 {offsets = [0, 16], sizes = [2, 16], strides = [1, 1]} : vector<2x48xf32> to vector<2x16xf32>
    %566 = arith.addf %564, %565 : vector<2x16xf32>
    %567 = vector.broadcast %332 : vector<1x16xf32> to vector<2x16xf32>
    %568 = arith.addf %566, %567 : vector<2x16xf32>
    %569 = arith.negf %568 : vector<2x16xf32>
    %570 = math.exp %569 : vector<2x16xf32>
    %cst_83 = arith.constant 1.000000e+00 : f32
    %571 = vector.broadcast %cst_83 : f32 to vector<2x16xf32>
    %572 = arith.addf %571, %570 : vector<2x16xf32>
    %573 = arith.divf %571, %572 : vector<2x16xf32>
    %574 = vector.extract_strided_slice %552 {offsets = [0, 32], sizes = [2, 16], strides = [1, 1]} : vector<2x48xf32> to vector<2x16xf32>
    %575 = vector.broadcast %333 : vector<1x16xf32> to vector<2x16xf32>
    %576 = arith.addf %574, %575 : vector<2x16xf32>
    %577 = vector.extract_strided_slice %553 {offsets = [0, 32], sizes = [2, 16], strides = [1, 1]} : vector<2x48xf32> to vector<2x16xf32>
    %578 = vector.broadcast %334 : vector<1x16xf32> to vector<2x16xf32>
    %579 = arith.addf %577, %578 : vector<2x16xf32>
    %580 = arith.mulf %563, %579 : vector<2x16xf32>
    %581 = arith.addf %576, %580 : vector<2x16xf32>
    %582 = math.tanh %581 : vector<2x16xf32>
    %cst_84 = arith.constant 1.000000e+00 : f32
    %583 = vector.broadcast %cst_84 : f32 to vector<2x16xf32>
    %584 = arith.subf %583, %573 : vector<2x16xf32>
    %585 = arith.mulf %584, %582 : vector<2x16xf32>
    %586 = arith.mulf %573, %551 : vector<2x16xf32>
    %587 = arith.addf %585, %586 : vector<2x16xf32>
    %cst_85 = arith.constant dense<0.000000e+00> : vector<2x48xf32>
    %588 = tpu.matmul %319, %323, %cst_85 {dimension_numbers = #tpu.dot_dimension_numbers<[1], [0], [0], [1], [0, 0, 1, 1], [], []>} : vector<2x16xf32>, vector<16x48xf32>, vector<2x48xf32> -> vector<2x48xf32>
    %cst_86 = arith.constant dense<0.000000e+00> : vector<2x48xf32>
    %589 = tpu.matmul %587, %324, %cst_86 {dimension_numbers = #tpu.dot_dimension_numbers<[1], [0], [0], [1], [0, 0, 1, 1], [], []>} : vector<2x16xf32>, vector<16x48xf32>, vector<2x48xf32> -> vector<2x48xf32>
    %590 = vector.extract_strided_slice %588 {offsets = [0, 0], sizes = [2, 16], strides = [1, 1]} : vector<2x48xf32> to vector<2x16xf32>
    %591 = vector.extract_strided_slice %589 {offsets = [0, 0], sizes = [2, 16], strides = [1, 1]} : vector<2x48xf32> to vector<2x16xf32>
    %592 = arith.addf %590, %591 : vector<2x16xf32>
    %593 = vector.broadcast %329 : vector<1x16xf32> to vector<2x16xf32>
    %594 = arith.addf %592, %593 : vector<2x16xf32>
    %595 = arith.negf %594 : vector<2x16xf32>
    %596 = math.exp %595 : vector<2x16xf32>
    %cst_87 = arith.constant 1.000000e+00 : f32
    %597 = vector.broadcast %cst_87 : f32 to vector<2x16xf32>
    %598 = arith.addf %597, %596 : vector<2x16xf32>
    %599 = arith.divf %597, %598 : vector<2x16xf32>
    %600 = vector.extract_strided_slice %588 {offsets = [0, 16], sizes = [2, 16], strides = [1, 1]} : vector<2x48xf32> to vector<2x16xf32>
    %601 = vector.extract_strided_slice %589 {offsets = [0, 16], sizes = [2, 16], strides = [1, 1]} : vector<2x48xf32> to vector<2x16xf32>
    %602 = arith.addf %600, %601 : vector<2x16xf32>
    %603 = vector.broadcast %332 : vector<1x16xf32> to vector<2x16xf32>
    %604 = arith.addf %602, %603 : vector<2x16xf32>
    %605 = arith.negf %604 : vector<2x16xf32>
    %606 = math.exp %605 : vector<2x16xf32>
    %cst_88 = arith.constant 1.000000e+00 : f32
    %607 = vector.broadcast %cst_88 : f32 to vector<2x16xf32>
    %608 = arith.addf %607, %606 : vector<2x16xf32>
    %609 = arith.divf %607, %608 : vector<2x16xf32>
    %610 = vector.extract_strided_slice %588 {offsets = [0, 32], sizes = [2, 16], strides = [1, 1]} : vector<2x48xf32> to vector<2x16xf32>
    %611 = vector.broadcast %333 : vector<1x16xf32> to vector<2x16xf32>
    %612 = arith.addf %610, %611 : vector<2x16xf32>
    %613 = vector.extract_strided_slice %589 {offsets = [0, 32], sizes = [2, 16], strides = [1, 1]} : vector<2x48xf32> to vector<2x16xf32>
    %614 = vector.broadcast %334 : vector<1x16xf32> to vector<2x16xf32>
    %615 = arith.addf %613, %614 : vector<2x16xf32>
    %616 = arith.mulf %599, %615 : vector<2x16xf32>
    %617 = arith.addf %612, %616 : vector<2x16xf32>
    %618 = math.tanh %617 : vector<2x16xf32>
    %cst_89 = arith.constant 1.000000e+00 : f32
    %619 = vector.broadcast %cst_89 : f32 to vector<2x16xf32>
    %620 = arith.subf %619, %609 : vector<2x16xf32>
    %621 = arith.mulf %620, %618 : vector<2x16xf32>
    %622 = arith.mulf %609, %587 : vector<2x16xf32>
    %623 = arith.addf %621, %622 : vector<2x16xf32>
    %c0_90 = arith.constant 0 : index
    %c16 = arith.constant 16 : index
    %624 = vector.load %arg2[%c0_90, %c16] : memref<2x48xf32, #tpu.memory_space<vmem>>, vector<2x16xf32>
    tpu.vector_store %arg2[%c0_90, %c16], %623 {strides = array<i32>} : memref<2x48xf32, #tpu.memory_space<vmem>>, vector<2x16xf32>,
    %c2 = arith.constant 2 : index
    %c0_91 = arith.constant 0 : index
    %c0_92 = arith.constant 0 : index
    %625 = vector.load %arg1[%c2, %c0_91, %c0_92] : memref<3x34x48xf32, #tpu.memory_space<vmem>>, vector<1x34x48xf32>
    %626 = vector.shape_cast %625 : vector<1x34x48xf32> to vector<34x48xf32>
    %627 = vector.extract_strided_slice %626 {offsets = [0, 0], sizes = [16, 48], strides = [1, 1]} : vector<34x48xf32> to vector<16x48xf32>
    %628 = vector.extract_strided_slice %626 {offsets = [16, 0], sizes = [16, 48], strides = [1, 1]} : vector<34x48xf32> to vector<16x48xf32>
    %629 = vector.extract_strided_slice %626 {offsets = [32, 0], sizes = [1, 48], strides = [1, 1]} : vector<34x48xf32> to vector<1x48xf32>
    %630 = vector.extract_strided_slice %626 {offsets = [33, 0], sizes = [1, 48], strides = [1, 1]} : vector<34x48xf32> to vector<1x48xf32>
    %631 = vector.extract_strided_slice %629 {offsets = [0, 0], sizes = [1, 16], strides = [1, 1]} : vector<1x48xf32> to vector<1x16xf32>
    %632 = vector.extract_strided_slice %630 {offsets = [0, 0], sizes = [1, 16], strides = [1, 1]} : vector<1x48xf32> to vector<1x16xf32>
    %633 = arith.addf %631, %632 : vector<1x16xf32>
    %634 = vector.extract_strided_slice %629 {offsets = [0, 16], sizes = [1, 16], strides = [1, 1]} : vector<1x48xf32> to vector<1x16xf32>
    %635 = vector.extract_strided_slice %630 {offsets = [0, 16], sizes = [1, 16], strides = [1, 1]} : vector<1x48xf32> to vector<1x16xf32>
    %636 = arith.addf %634, %635 : vector<1x16xf32>
    %637 = vector.extract_strided_slice %629 {offsets = [0, 32], sizes = [1, 16], strides = [1, 1]} : vector<1x48xf32> to vector<1x16xf32>
    %638 = vector.extract_strided_slice %630 {offsets = [0, 32], sizes = [1, 16], strides = [1, 1]} : vector<1x48xf32> to vector<1x16xf32>
    %cst_93 = arith.constant 0.000000e+00 : f32
    %639 = vector.broadcast %cst_93 : f32 to vector<2x16xf32>
    %cst_94 = arith.constant dense<0.000000e+00> : vector<2x48xf32>
    %640 = tpu.matmul %371, %627, %cst_94 {dimension_numbers = #tpu.dot_dimension_numbers<[1], [0], [0], [1], [0, 0, 1, 1], [], []>} : vector<2x16xf32>, vector<16x48xf32>, vector<2x48xf32> -> vector<2x48xf32>
    %cst_95 = arith.constant dense<0.000000e+00> : vector<2x48xf32>
    %641 = tpu.matmul %639, %628, %cst_95 {dimension_numbers = #tpu.dot_dimension_numbers<[1], [0], [0], [1], [0, 0, 1, 1], [], []>} : vector<2x16xf32>, vector<16x48xf32>, vector<2x48xf32> -> vector<2x48xf32>
    %642 = vector.extract_strided_slice %640 {offsets = [0, 0], sizes = [2, 16], strides = [1, 1]} : vector<2x48xf32> to vector<2x16xf32>
    %643 = vector.extract_strided_slice %641 {offsets = [0, 0], sizes = [2, 16], strides = [1, 1]} : vector<2x48xf32> to vector<2x16xf32>
    %644 = arith.addf %642, %643 : vector<2x16xf32>
    %645 = vector.broadcast %633 : vector<1x16xf32> to vector<2x16xf32>
    %646 = arith.addf %644, %645 : vector<2x16xf32>
    %647 = arith.negf %646 : vector<2x16xf32>
    %648 = math.exp %647 : vector<2x16xf32>
    %cst_96 = arith.constant 1.000000e+00 : f32
    %649 = vector.broadcast %cst_96 : f32 to vector<2x16xf32>
    %650 = arith.addf %649, %648 : vector<2x16xf32>
    %651 = arith.divf %649, %650 : vector<2x16xf32>
    %652 = vector.extract_strided_slice %640 {offsets = [0, 16], sizes = [2, 16], strides = [1, 1]} : vector<2x48xf32> to vector<2x16xf32>
    %653 = vector.extract_strided_slice %641 {offsets = [0, 16], sizes = [2, 16], strides = [1, 1]} : vector<2x48xf32> to vector<2x16xf32>
    %654 = arith.addf %652, %653 : vector<2x16xf32>
    %655 = vector.broadcast %636 : vector<1x16xf32> to vector<2x16xf32>
    %656 = arith.addf %654, %655 : vector<2x16xf32>
    %657 = arith.negf %656 : vector<2x16xf32>
    %658 = math.exp %657 : vector<2x16xf32>
    %cst_97 = arith.constant 1.000000e+00 : f32
    %659 = vector.broadcast %cst_97 : f32 to vector<2x16xf32>
    %660 = arith.addf %659, %658 : vector<2x16xf32>
    %661 = arith.divf %659, %660 : vector<2x16xf32>
    %662 = vector.extract_strided_slice %640 {offsets = [0, 32], sizes = [2, 16], strides = [1, 1]} : vector<2x48xf32> to vector<2x16xf32>
    %663 = vector.broadcast %637 : vector<1x16xf32> to vector<2x16xf32>
    %664 = arith.addf %662, %663 : vector<2x16xf32>
    %665 = vector.extract_strided_slice %641 {offsets = [0, 32], sizes = [2, 16], strides = [1, 1]} : vector<2x48xf32> to vector<2x16xf32>
    %666 = vector.broadcast %638 : vector<1x16xf32> to vector<2x16xf32>
    %667 = arith.addf %665, %666 : vector<2x16xf32>
    %668 = arith.mulf %651, %667 : vector<2x16xf32>
    %669 = arith.addf %664, %668 : vector<2x16xf32>
    %670 = math.tanh %669 : vector<2x16xf32>
    %cst_98 = arith.constant 1.000000e+00 : f32
    %671 = vector.broadcast %cst_98 : f32 to vector<2x16xf32>
    %672 = arith.subf %671, %661 : vector<2x16xf32>
    %673 = arith.mulf %672, %670 : vector<2x16xf32>
    %674 = arith.mulf %661, %639 : vector<2x16xf32>
    %675 = arith.addf %673, %674 : vector<2x16xf32>
    %cst_99 = arith.constant dense<0.000000e+00> : vector<2x48xf32>
    %676 = tpu.matmul %407, %627, %cst_99 {dimension_numbers = #tpu.dot_dimension_numbers<[1], [0], [0], [1], [0, 0, 1, 1], [], []>} : vector<2x16xf32>, vector<16x48xf32>, vector<2x48xf32> -> vector<2x48xf32>
    %cst_100 = arith.constant dense<0.000000e+00> : vector<2x48xf32>
    %677 = tpu.matmul %675, %628, %cst_100 {dimension_numbers = #tpu.dot_dimension_numbers<[1], [0], [0], [1], [0, 0, 1, 1], [], []>} : vector<2x16xf32>, vector<16x48xf32>, vector<2x48xf32> -> vector<2x48xf32>
    %678 = vector.extract_strided_slice %676 {offsets = [0, 0], sizes = [2, 16], strides = [1, 1]} : vector<2x48xf32> to vector<2x16xf32>
    %679 = vector.extract_strided_slice %677 {offsets = [0, 0], sizes = [2, 16], strides = [1, 1]} : vector<2x48xf32> to vector<2x16xf32>
    %680 = arith.addf %678, %679 : vector<2x16xf32>
    %681 = vector.broadcast %633 : vector<1x16xf32> to vector<2x16xf32>
    %682 = arith.addf %680, %681 : vector<2x16xf32>
    %683 = arith.negf %682 : vector<2x16xf32>
    %684 = math.exp %683 : vector<2x16xf32>
    %cst_101 = arith.constant 1.000000e+00 : f32
    %685 = vector.broadcast %cst_101 : f32 to vector<2x16xf32>
    %686 = arith.addf %685, %684 : vector<2x16xf32>
    %687 = arith.divf %685, %686 : vector<2x16xf32>
    %688 = vector.extract_strided_slice %676 {offsets = [0, 16], sizes = [2, 16], strides = [1, 1]} : vector<2x48xf32> to vector<2x16xf32>
    %689 = vector.extract_strided_slice %677 {offsets = [0, 16], sizes = [2, 16], strides = [1, 1]} : vector<2x48xf32> to vector<2x16xf32>
    %690 = arith.addf %688, %689 : vector<2x16xf32>
    %691 = vector.broadcast %636 : vector<1x16xf32> to vector<2x16xf32>
    %692 = arith.addf %690, %691 : vector<2x16xf32>
    %693 = arith.negf %692 : vector<2x16xf32>
    %694 = math.exp %693 : vector<2x16xf32>
    %cst_102 = arith.constant 1.000000e+00 : f32
    %695 = vector.broadcast %cst_102 : f32 to vector<2x16xf32>
    %696 = arith.addf %695, %694 : vector<2x16xf32>
    %697 = arith.divf %695, %696 : vector<2x16xf32>
    %698 = vector.extract_strided_slice %676 {offsets = [0, 32], sizes = [2, 16], strides = [1, 1]} : vector<2x48xf32> to vector<2x16xf32>
    %699 = vector.broadcast %637 : vector<1x16xf32> to vector<2x16xf32>
    %700 = arith.addf %698, %699 : vector<2x16xf32>
    %701 = vector.extract_strided_slice %677 {offsets = [0, 32], sizes = [2, 16], strides = [1, 1]} : vector<2x48xf32> to vector<2x16xf32>
    %702 = vector.broadcast %638 : vector<1x16xf32> to vector<2x16xf32>
    %703 = arith.addf %701, %702 : vector<2x16xf32>
    %704 = arith.mulf %687, %703 : vector<2x16xf32>
    %705 = arith.addf %700, %704 : vector<2x16xf32>
    %706 = math.tanh %705 : vector<2x16xf32>
    %cst_103 = arith.constant 1.000000e+00 : f32
    %707 = vector.broadcast %cst_103 : f32 to vector<2x16xf32>
    %708 = arith.subf %707, %697 : vector<2x16xf32>
    %709 = arith.mulf %708, %706 : vector<2x16xf32>
    %710 = arith.mulf %697, %675 : vector<2x16xf32>
    %711 = arith.addf %709, %710 : vector<2x16xf32>
    %cst_104 = arith.constant dense<0.000000e+00> : vector<2x48xf32>
    %712 = tpu.matmul %443, %627, %cst_104 {dimension_numbers = #tpu.dot_dimension_numbers<[1], [0], [0], [1], [0, 0, 1, 1], [], []>} : vector<2x16xf32>, vector<16x48xf32>, vector<2x48xf32> -> vector<2x48xf32>
    %cst_105 = arith.constant dense<0.000000e+00> : vector<2x48xf32>
    %713 = tpu.matmul %711, %628, %cst_105 {dimension_numbers = #tpu.dot_dimension_numbers<[1], [0], [0], [1], [0, 0, 1, 1], [], []>} : vector<2x16xf32>, vector<16x48xf32>, vector<2x48xf32> -> vector<2x48xf32>
    %714 = vector.extract_strided_slice %712 {offsets = [0, 0], sizes = [2, 16], strides = [1, 1]} : vector<2x48xf32> to vector<2x16xf32>
    %715 = vector.extract_strided_slice %713 {offsets = [0, 0], sizes = [2, 16], strides = [1, 1]} : vector<2x48xf32> to vector<2x16xf32>
    %716 = arith.addf %714, %715 : vector<2x16xf32>
    %717 = vector.broadcast %633 : vector<1x16xf32> to vector<2x16xf32>
    %718 = arith.addf %716, %717 : vector<2x16xf32>
    %719 = arith.negf %718 : vector<2x16xf32>
    %720 = math.exp %719 : vector<2x16xf32>
    %cst_106 = arith.constant 1.000000e+00 : f32
    %721 = vector.broadcast %cst_106 : f32 to vector<2x16xf32>
    %722 = arith.addf %721, %720 : vector<2x16xf32>
    %723 = arith.divf %721, %722 : vector<2x16xf32>
    %724 = vector.extract_strided_slice %712 {offsets = [0, 16], sizes = [2, 16], strides = [1, 1]} : vector<2x48xf32> to vector<2x16xf32>
    %725 = vector.extract_strided_slice %713 {offsets = [0, 16], sizes = [2, 16], strides = [1, 1]} : vector<2x48xf32> to vector<2x16xf32>
    %726 = arith.addf %724, %725 : vector<2x16xf32>
    %727 = vector.broadcast %636 : vector<1x16xf32> to vector<2x16xf32>
    %728 = arith.addf %726, %727 : vector<2x16xf32>
    %729 = arith.negf %728 : vector<2x16xf32>
    %730 = math.exp %729 : vector<2x16xf32>
    %cst_107 = arith.constant 1.000000e+00 : f32
    %731 = vector.broadcast %cst_107 : f32 to vector<2x16xf32>
    %732 = arith.addf %731, %730 : vector<2x16xf32>
    %733 = arith.divf %731, %732 : vector<2x16xf32>
    %734 = vector.extract_strided_slice %712 {offsets = [0, 32], sizes = [2, 16], strides = [1, 1]} : vector<2x48xf32> to vector<2x16xf32>
    %735 = vector.broadcast %637 : vector<1x16xf32> to vector<2x16xf32>
    %736 = arith.addf %734, %735 : vector<2x16xf32>
    %737 = vector.extract_strided_slice %713 {offsets = [0, 32], sizes = [2, 16], strides = [1, 1]} : vector<2x48xf32> to vector<2x16xf32>
    %738 = vector.broadcast %638 : vector<1x16xf32> to vector<2x16xf32>
    %739 = arith.addf %737, %738 : vector<2x16xf32>
    %740 = arith.mulf %723, %739 : vector<2x16xf32>
    %741 = arith.addf %736, %740 : vector<2x16xf32>
    %742 = math.tanh %741 : vector<2x16xf32>
    %cst_108 = arith.constant 1.000000e+00 : f32
    %743 = vector.broadcast %cst_108 : f32 to vector<2x16xf32>
    %744 = arith.subf %743, %733 : vector<2x16xf32>
    %745 = arith.mulf %744, %742 : vector<2x16xf32>
    %746 = arith.mulf %733, %711 : vector<2x16xf32>
    %747 = arith.addf %745, %746 : vector<2x16xf32>
    %cst_109 = arith.constant dense<0.000000e+00> : vector<2x48xf32>
    %748 = tpu.matmul %479, %627, %cst_109 {dimension_numbers = #tpu.dot_dimension_numbers<[1], [0], [0], [1], [0, 0, 1, 1], [], []>} : vector<2x16xf32>, vector<16x48xf32>, vector<2x48xf32> -> vector<2x48xf32>
    %cst_110 = arith.constant dense<0.000000e+00> : vector<2x48xf32>
    %749 = tpu.matmul %747, %628, %cst_110 {dimension_numbers = #tpu.dot_dimension_numbers<[1], [0], [0], [1], [0, 0, 1, 1], [], []>} : vector<2x16xf32>, vector<16x48xf32>, vector<2x48xf32> -> vector<2x48xf32>
    %750 = vector.extract_strided_slice %748 {offsets = [0, 0], sizes = [2, 16], strides = [1, 1]} : vector<2x48xf32> to vector<2x16xf32>
    %751 = vector.extract_strided_slice %749 {offsets = [0, 0], sizes = [2, 16], strides = [1, 1]} : vector<2x48xf32> to vector<2x16xf32>
    %752 = arith.addf %750, %751 : vector<2x16xf32>
    %753 = vector.broadcast %633 : vector<1x16xf32> to vector<2x16xf32>
    %754 = arith.addf %752, %753 : vector<2x16xf32>
    %755 = arith.negf %754 : vector<2x16xf32>
    %756 = math.exp %755 : vector<2x16xf32>
    %cst_111 = arith.constant 1.000000e+00 : f32
    %757 = vector.broadcast %cst_111 : f32 to vector<2x16xf32>
    %758 = arith.addf %757, %756 : vector<2x16xf32>
    %759 = arith.divf %757, %758 : vector<2x16xf32>
    %760 = vector.extract_strided_slice %748 {offsets = [0, 16], sizes = [2, 16], strides = [1, 1]} : vector<2x48xf32> to vector<2x16xf32>
    %761 = vector.extract_strided_slice %749 {offsets = [0, 16], sizes = [2, 16], strides = [1, 1]} : vector<2x48xf32> to vector<2x16xf32>
    %762 = arith.addf %760, %761 : vector<2x16xf32>
    %763 = vector.broadcast %636 : vector<1x16xf32> to vector<2x16xf32>
    %764 = arith.addf %762, %763 : vector<2x16xf32>
    %765 = arith.negf %764 : vector<2x16xf32>
    %766 = math.exp %765 : vector<2x16xf32>
    %cst_112 = arith.constant 1.000000e+00 : f32
    %767 = vector.broadcast %cst_112 : f32 to vector<2x16xf32>
    %768 = arith.addf %767, %766 : vector<2x16xf32>
    %769 = arith.divf %767, %768 : vector<2x16xf32>
    %770 = vector.extract_strided_slice %748 {offsets = [0, 32], sizes = [2, 16], strides = [1, 1]} : vector<2x48xf32> to vector<2x16xf32>
    %771 = vector.broadcast %637 : vector<1x16xf32> to vector<2x16xf32>
    %772 = arith.addf %770, %771 : vector<2x16xf32>
    %773 = vector.extract_strided_slice %749 {offsets = [0, 32], sizes = [2, 16], strides = [1, 1]} : vector<2x48xf32> to vector<2x16xf32>
    %774 = vector.broadcast %638 : vector<1x16xf32> to vector<2x16xf32>
    %775 = arith.addf %773, %774 : vector<2x16xf32>
    %776 = arith.mulf %759, %775 : vector<2x16xf32>
    %777 = arith.addf %772, %776 : vector<2x16xf32>
    %778 = math.tanh %777 : vector<2x16xf32>
    %cst_113 = arith.constant 1.000000e+00 : f32
    %779 = vector.broadcast %cst_113 : f32 to vector<2x16xf32>
    %780 = arith.subf %779, %769 : vector<2x16xf32>
    %781 = arith.mulf %780, %778 : vector<2x16xf32>
    %782 = arith.mulf %769, %747 : vector<2x16xf32>
    %783 = arith.addf %781, %782 : vector<2x16xf32>
    %cst_114 = arith.constant dense<0.000000e+00> : vector<2x48xf32>
    %784 = tpu.matmul %515, %627, %cst_114 {dimension_numbers = #tpu.dot_dimension_numbers<[1], [0], [0], [1], [0, 0, 1, 1], [], []>} : vector<2x16xf32>, vector<16x48xf32>, vector<2x48xf32> -> vector<2x48xf32>
    %cst_115 = arith.constant dense<0.000000e+00> : vector<2x48xf32>
    %785 = tpu.matmul %783, %628, %cst_115 {dimension_numbers = #tpu.dot_dimension_numbers<[1], [0], [0], [1], [0, 0, 1, 1], [], []>} : vector<2x16xf32>, vector<16x48xf32>, vector<2x48xf32> -> vector<2x48xf32>
    %786 = vector.extract_strided_slice %784 {offsets = [0, 0], sizes = [2, 16], strides = [1, 1]} : vector<2x48xf32> to vector<2x16xf32>
    %787 = vector.extract_strided_slice %785 {offsets = [0, 0], sizes = [2, 16], strides = [1, 1]} : vector<2x48xf32> to vector<2x16xf32>
    %788 = arith.addf %786, %787 : vector<2x16xf32>
    %789 = vector.broadcast %633 : vector<1x16xf32> to vector<2x16xf32>
    %790 = arith.addf %788, %789 : vector<2x16xf32>
    %791 = arith.negf %790 : vector<2x16xf32>
    %792 = math.exp %791 : vector<2x16xf32>
    %cst_116 = arith.constant 1.000000e+00 : f32
    %793 = vector.broadcast %cst_116 : f32 to vector<2x16xf32>
    %794 = arith.addf %793, %792 : vector<2x16xf32>
    %795 = arith.divf %793, %794 : vector<2x16xf32>
    %796 = vector.extract_strided_slice %784 {offsets = [0, 16], sizes = [2, 16], strides = [1, 1]} : vector<2x48xf32> to vector<2x16xf32>
    %797 = vector.extract_strided_slice %785 {offsets = [0, 16], sizes = [2, 16], strides = [1, 1]} : vector<2x48xf32> to vector<2x16xf32>
    %798 = arith.addf %796, %797 : vector<2x16xf32>
    %799 = vector.broadcast %636 : vector<1x16xf32> to vector<2x16xf32>
    %800 = arith.addf %798, %799 : vector<2x16xf32>
    %801 = arith.negf %800 : vector<2x16xf32>
    %802 = math.exp %801 : vector<2x16xf32>
    %cst_117 = arith.constant 1.000000e+00 : f32
    %803 = vector.broadcast %cst_117 : f32 to vector<2x16xf32>
    %804 = arith.addf %803, %802 : vector<2x16xf32>
    %805 = arith.divf %803, %804 : vector<2x16xf32>
    %806 = vector.extract_strided_slice %784 {offsets = [0, 32], sizes = [2, 16], strides = [1, 1]} : vector<2x48xf32> to vector<2x16xf32>
    %807 = vector.broadcast %637 : vector<1x16xf32> to vector<2x16xf32>
    %808 = arith.addf %806, %807 : vector<2x16xf32>
    %809 = vector.extract_strided_slice %785 {offsets = [0, 32], sizes = [2, 16], strides = [1, 1]} : vector<2x48xf32> to vector<2x16xf32>
    %810 = vector.broadcast %638 : vector<1x16xf32> to vector<2x16xf32>
    %811 = arith.addf %809, %810 : vector<2x16xf32>
    %812 = arith.mulf %795, %811 : vector<2x16xf32>
    %813 = arith.addf %808, %812 : vector<2x16xf32>
    %814 = math.tanh %813 : vector<2x16xf32>
    %cst_118 = arith.constant 1.000000e+00 : f32
    %815 = vector.broadcast %cst_118 : f32 to vector<2x16xf32>
    %816 = arith.subf %815, %805 : vector<2x16xf32>
    %817 = arith.mulf %816, %814 : vector<2x16xf32>
    %818 = arith.mulf %805, %783 : vector<2x16xf32>
    %819 = arith.addf %817, %818 : vector<2x16xf32>
    %cst_119 = arith.constant dense<0.000000e+00> : vector<2x48xf32>
    %820 = tpu.matmul %551, %627, %cst_119 {dimension_numbers = #tpu.dot_dimension_numbers<[1], [0], [0], [1], [0, 0, 1, 1], [], []>} : vector<2x16xf32>, vector<16x48xf32>, vector<2x48xf32> -> vector<2x48xf32>
    %cst_120 = arith.constant dense<0.000000e+00> : vector<2x48xf32>
    %821 = tpu.matmul %819, %628, %cst_120 {dimension_numbers = #tpu.dot_dimension_numbers<[1], [0], [0], [1], [0, 0, 1, 1], [], []>} : vector<2x16xf32>, vector<16x48xf32>, vector<2x48xf32> -> vector<2x48xf32>
    %822 = vector.extract_strided_slice %820 {offsets = [0, 0], sizes = [2, 16], strides = [1, 1]} : vector<2x48xf32> to vector<2x16xf32>
    %823 = vector.extract_strided_slice %821 {offsets = [0, 0], sizes = [2, 16], strides = [1, 1]} : vector<2x48xf32> to vector<2x16xf32>
    %824 = arith.addf %822, %823 : vector<2x16xf32>
    %825 = vector.broadcast %633 : vector<1x16xf32> to vector<2x16xf32>
    %826 = arith.addf %824, %825 : vector<2x16xf32>
    %827 = arith.negf %826 : vector<2x16xf32>
    %828 = math.exp %827 : vector<2x16xf32>
    %cst_121 = arith.constant 1.000000e+00 : f32
    %829 = vector.broadcast %cst_121 : f32 to vector<2x16xf32>
    %830 = arith.addf %829, %828 : vector<2x16xf32>
    %831 = arith.divf %829, %830 : vector<2x16xf32>
    %832 = vector.extract_strided_slice %820 {offsets = [0, 16], sizes = [2, 16], strides = [1, 1]} : vector<2x48xf32> to vector<2x16xf32>
    %833 = vector.extract_strided_slice %821 {offsets = [0, 16], sizes = [2, 16], strides = [1, 1]} : vector<2x48xf32> to vector<2x16xf32>
    %834 = arith.addf %832, %833 : vector<2x16xf32>
    %835 = vector.broadcast %636 : vector<1x16xf32> to vector<2x16xf32>
    %836 = arith.addf %834, %835 : vector<2x16xf32>
    %837 = arith.negf %836 : vector<2x16xf32>
    %838 = math.exp %837 : vector<2x16xf32>
    %cst_122 = arith.constant 1.000000e+00 : f32
    %839 = vector.broadcast %cst_122 : f32 to vector<2x16xf32>
    %840 = arith.addf %839, %838 : vector<2x16xf32>
    %841 = arith.divf %839, %840 : vector<2x16xf32>
    %842 = vector.extract_strided_slice %820 {offsets = [0, 32], sizes = [2, 16], strides = [1, 1]} : vector<2x48xf32> to vector<2x16xf32>
    %843 = vector.broadcast %637 : vector<1x16xf32> to vector<2x16xf32>
    %844 = arith.addf %842, %843 : vector<2x16xf32>
    %845 = vector.extract_strided_slice %821 {offsets = [0, 32], sizes = [2, 16], strides = [1, 1]} : vector<2x48xf32> to vector<2x16xf32>
    %846 = vector.broadcast %638 : vector<1x16xf32> to vector<2x16xf32>
    %847 = arith.addf %845, %846 : vector<2x16xf32>
    %848 = arith.mulf %831, %847 : vector<2x16xf32>
    %849 = arith.addf %844, %848 : vector<2x16xf32>
    %850 = math.tanh %849 : vector<2x16xf32>
    %cst_123 = arith.constant 1.000000e+00 : f32
    %851 = vector.broadcast %cst_123 : f32 to vector<2x16xf32>
    %852 = arith.subf %851, %841 : vector<2x16xf32>
    %853 = arith.mulf %852, %850 : vector<2x16xf32>
    %854 = arith.mulf %841, %819 : vector<2x16xf32>
    %855 = arith.addf %853, %854 : vector<2x16xf32>
    %cst_124 = arith.constant dense<0.000000e+00> : vector<2x48xf32>
    %856 = tpu.matmul %587, %627, %cst_124 {dimension_numbers = #tpu.dot_dimension_numbers<[1], [0], [0], [1], [0, 0, 1, 1], [], []>} : vector<2x16xf32>, vector<16x48xf32>, vector<2x48xf32> -> vector<2x48xf32>
    %cst_125 = arith.constant dense<0.000000e+00> : vector<2x48xf32>
    %857 = tpu.matmul %855, %628, %cst_125 {dimension_numbers = #tpu.dot_dimension_numbers<[1], [0], [0], [1], [0, 0, 1, 1], [], []>} : vector<2x16xf32>, vector<16x48xf32>, vector<2x48xf32> -> vector<2x48xf32>
    %858 = vector.extract_strided_slice %856 {offsets = [0, 0], sizes = [2, 16], strides = [1, 1]} : vector<2x48xf32> to vector<2x16xf32>
    %859 = vector.extract_strided_slice %857 {offsets = [0, 0], sizes = [2, 16], strides = [1, 1]} : vector<2x48xf32> to vector<2x16xf32>
    %860 = arith.addf %858, %859 : vector<2x16xf32>
    %861 = vector.broadcast %633 : vector<1x16xf32> to vector<2x16xf32>
    %862 = arith.addf %860, %861 : vector<2x16xf32>
    %863 = arith.negf %862 : vector<2x16xf32>
    %864 = math.exp %863 : vector<2x16xf32>
    %cst_126 = arith.constant 1.000000e+00 : f32
    %865 = vector.broadcast %cst_126 : f32 to vector<2x16xf32>
    %866 = arith.addf %865, %864 : vector<2x16xf32>
    %867 = arith.divf %865, %866 : vector<2x16xf32>
    %868 = vector.extract_strided_slice %856 {offsets = [0, 16], sizes = [2, 16], strides = [1, 1]} : vector<2x48xf32> to vector<2x16xf32>
    %869 = vector.extract_strided_slice %857 {offsets = [0, 16], sizes = [2, 16], strides = [1, 1]} : vector<2x48xf32> to vector<2x16xf32>
    %870 = arith.addf %868, %869 : vector<2x16xf32>
    %871 = vector.broadcast %636 : vector<1x16xf32> to vector<2x16xf32>
    %872 = arith.addf %870, %871 : vector<2x16xf32>
    %873 = arith.negf %872 : vector<2x16xf32>
    %874 = math.exp %873 : vector<2x16xf32>
    %cst_127 = arith.constant 1.000000e+00 : f32
    %875 = vector.broadcast %cst_127 : f32 to vector<2x16xf32>
    %876 = arith.addf %875, %874 : vector<2x16xf32>
    %877 = arith.divf %875, %876 : vector<2x16xf32>
    %878 = vector.extract_strided_slice %856 {offsets = [0, 32], sizes = [2, 16], strides = [1, 1]} : vector<2x48xf32> to vector<2x16xf32>
    %879 = vector.broadcast %637 : vector<1x16xf32> to vector<2x16xf32>
    %880 = arith.addf %878, %879 : vector<2x16xf32>
    %881 = vector.extract_strided_slice %857 {offsets = [0, 32], sizes = [2, 16], strides = [1, 1]} : vector<2x48xf32> to vector<2x16xf32>
    %882 = vector.broadcast %638 : vector<1x16xf32> to vector<2x16xf32>
    %883 = arith.addf %881, %882 : vector<2x16xf32>
    %884 = arith.mulf %867, %883 : vector<2x16xf32>
    %885 = arith.addf %880, %884 : vector<2x16xf32>
    %886 = math.tanh %885 : vector<2x16xf32>
    %cst_128 = arith.constant 1.000000e+00 : f32
    %887 = vector.broadcast %cst_128 : f32 to vector<2x16xf32>
    %888 = arith.subf %887, %877 : vector<2x16xf32>
    %889 = arith.mulf %888, %886 : vector<2x16xf32>
    %890 = arith.mulf %877, %855 : vector<2x16xf32>
    %891 = arith.addf %889, %890 : vector<2x16xf32>
    %cst_129 = arith.constant dense<0.000000e+00> : vector<2x48xf32>
    %892 = tpu.matmul %623, %627, %cst_129 {dimension_numbers = #tpu.dot_dimension_numbers<[1], [0], [0], [1], [0, 0, 1, 1], [], []>} : vector<2x16xf32>, vector<16x48xf32>, vector<2x48xf32> -> vector<2x48xf32>
    %cst_130 = arith.constant dense<0.000000e+00> : vector<2x48xf32>
    %893 = tpu.matmul %891, %628, %cst_130 {dimension_numbers = #tpu.dot_dimension_numbers<[1], [0], [0], [1], [0, 0, 1, 1], [], []>} : vector<2x16xf32>, vector<16x48xf32>, vector<2x48xf32> -> vector<2x48xf32>
    %894 = vector.extract_strided_slice %892 {offsets = [0, 0], sizes = [2, 16], strides = [1, 1]} : vector<2x48xf32> to vector<2x16xf32>
    %895 = vector.extract_strided_slice %893 {offsets = [0, 0], sizes = [2, 16], strides = [1, 1]} : vector<2x48xf32> to vector<2x16xf32>
    %896 = arith.addf %894, %895 : vector<2x16xf32>
    %897 = vector.broadcast %633 : vector<1x16xf32> to vector<2x16xf32>
    %898 = arith.addf %896, %897 : vector<2x16xf32>
    %899 = arith.negf %898 : vector<2x16xf32>
    %900 = math.exp %899 : vector<2x16xf32>
    %cst_131 = arith.constant 1.000000e+00 : f32
    %901 = vector.broadcast %cst_131 : f32 to vector<2x16xf32>
    %902 = arith.addf %901, %900 : vector<2x16xf32>
    %903 = arith.divf %901, %902 : vector<2x16xf32>
    %904 = vector.extract_strided_slice %892 {offsets = [0, 16], sizes = [2, 16], strides = [1, 1]} : vector<2x48xf32> to vector<2x16xf32>
    %905 = vector.extract_strided_slice %893 {offsets = [0, 16], sizes = [2, 16], strides = [1, 1]} : vector<2x48xf32> to vector<2x16xf32>
    %906 = arith.addf %904, %905 : vector<2x16xf32>
    %907 = vector.broadcast %636 : vector<1x16xf32> to vector<2x16xf32>
    %908 = arith.addf %906, %907 : vector<2x16xf32>
    %909 = arith.negf %908 : vector<2x16xf32>
    %910 = math.exp %909 : vector<2x16xf32>
    %cst_132 = arith.constant 1.000000e+00 : f32
    %911 = vector.broadcast %cst_132 : f32 to vector<2x16xf32>
    %912 = arith.addf %911, %910 : vector<2x16xf32>
    %913 = arith.divf %911, %912 : vector<2x16xf32>
    %914 = vector.extract_strided_slice %892 {offsets = [0, 32], sizes = [2, 16], strides = [1, 1]} : vector<2x48xf32> to vector<2x16xf32>
    %915 = vector.broadcast %637 : vector<1x16xf32> to vector<2x16xf32>
    %916 = arith.addf %914, %915 : vector<2x16xf32>
    %917 = vector.extract_strided_slice %893 {offsets = [0, 32], sizes = [2, 16], strides = [1, 1]} : vector<2x48xf32> to vector<2x16xf32>
    %918 = vector.broadcast %638 : vector<1x16xf32> to vector<2x16xf32>
    %919 = arith.addf %917, %918 : vector<2x16xf32>
    %920 = arith.mulf %903, %919 : vector<2x16xf32>
    %921 = arith.addf %916, %920 : vector<2x16xf32>
    %922 = math.tanh %921 : vector<2x16xf32>
    %cst_133 = arith.constant 1.000000e+00 : f32
    %923 = vector.broadcast %cst_133 : f32 to vector<2x16xf32>
    %924 = arith.subf %923, %913 : vector<2x16xf32>
    %925 = arith.mulf %924, %922 : vector<2x16xf32>
    %926 = arith.mulf %913, %891 : vector<2x16xf32>
    %927 = arith.addf %925, %926 : vector<2x16xf32>
    %c0_134 = arith.constant 0 : index
    %c32 = arith.constant 32 : index
    %928 = vector.load %arg2[%c0_134, %c32] : memref<2x48xf32, #tpu.memory_space<vmem>>, vector<2x16xf32>
    tpu.vector_store %arg2[%c0_134, %c32], %927 {strides = array<i32>} : memref<2x48xf32, #tpu.memory_space<vmem>>, vector<2x16xf32>,
    return
  }
}

</mosaic_0001>

<llo_original>
// kernel: node_attribute_forward.1
$region0: #{node_attribute_forward.1}
  #allocation0 [shape = 'u32[]', space=smem, size = 0x4, offset = 0x4, fixed_abs, tag = 'smem constant byte address 0x4 - core index']
  #allocation1 [shape = 'u32[144,128]{1,0:T(1,128)}', space=vmem, size = 0x12000, scoped, tag = 'internal scratch']
  %s0 = inlined_call_operand.vmem [shape: f32[2,8,4], index: 0, kind: input, shape index: {}]
  %s1 = inlined_call_operand.hbm [shape: f32[3,34,48], index: 1, kind: input, shape index: {}]
  %s2 = inlined_call_operand.hbm [shape: f32[2,48], index: 2, kind: output, shape index: {}]
  %s3 = sld [smem:[#allocation0]]
  $region22: #{node_attribute_forward.1} parent=0
    _
  %s5 = ssub.s32 1, %s3
  %s6 = scalar_select 0, %s5, %s3
  $region1: #{node_attribute_forward.1} parent=0
    #allocation2 [shape = 'u8[61440]{0}', space=vmem, size = 0xf000, scoped, tag = 'input window, operand 1, single buffered']
    #allocation3 [shape = 's32[1]{0}', space=sflag, size = 0x4, scoped, tag = 'scoped memory for node_attribute_forward.1']
    #allocation4 [shape = 's32[1]{0}', space=sflag, size = 0x4, scoped, tag = 'scoped memory for node_attribute_forward.1']
    #allocation5 [shape = 'u8[1024]{0}', space=vmem, size = 0x400, scoped, tag = 'output window, operand 0, single buffered']
    %7 = vsyncpa [#allocation3], 0
    %8 = vsyncpa [#allocation4], 0
    // Predicated region
    $region2: #{node_attribute_forward.1} parent=1 // pred_check
      _
    $region3: #{node_attribute_forward.1} parent=1 // pred_check_branch
      %10 = sbr.rel (0) target = $region5
    $region4: #{node_attribute_forward.1} parent=1 // pred_region
      _
    $region5: #{node_attribute_forward.1} parent=1 // pred_fallthru
      _
    // Predicated region
    $region6: #{node_attribute_forward.1} parent=1 // pred_check
      _
    $region7: #{node_attribute_forward.1} parent=1 // pred_check_branch
      %12 = sbr.rel (0) target = $region9
    $region8: #{node_attribute_forward.1} parent=1 // pred_region
      %s14 = ssub.s32 1920, 1920
      %15 = vsyncadd [#allocation3], %s14
      %s16 = sshll.u32 [#allocation2], 4
      %s17 = int_to_ptr.vmem [resolvable:$true] %s16
      %22 = dma.hbm_to_vmem [thread:$0]  %s1, 1920, %s17, [#allocation3], 128, 128, 8
    $region9: #{node_attribute_forward.1} parent=1 // pred_fallthru
      _
    // Predicated region
    $region10: #{node_attribute_forward.1} parent=1 // pred_check
      _
    $region11: #{node_attribute_forward.1} parent=1 // pred_check_branch
      %24 = sbr.rel (0) target = $region13
    $region12: #{node_attribute_forward.1} parent=1 // pred_region
      %25 = dma.done [#allocation3], 1920
    $region13: #{node_attribute_forward.1} parent=1 // pred_fallthru
      _
    %v26 = vld [vmem:[%s0] sm:$0xff]
    %v27 = vld [vmem:[%s0 + $0x8] sm:$0xff]
    %v28 = vld [vmem:[#allocation2] sm:$0xff]
    %v29 = vld [vmem:[#allocation2 + $0x10] sm:$0xff]
    %v30 = vld [vmem:[#allocation2 + $0x18] sm:$0xff]
    %v31 = vld [vmem:[#allocation2 + $0x20] sm:$0x3]
    %v33 = vrot.slane %v31, 1
    %v35 = vadd.f32 %v31, %v33
    %v38 = vrot.slane %v27, 7
    %vm39 = vcmask 1041409
    %v40 = vsel %vm39, %v38, %v26
    %vm41 = vcmask 31744
    %v42 = vsel %vm41, %v40, 0
    %vm44 = vcmask 1043456
    %v46 = vsel %vm44, %v28, 0
    %48 = vmatprep.subr.mxu0 0.0
    %49 = vmatpush1.msra.mxu0 %v46
    %50 = vmatprep.subr.mxu0 0.0
    %51 = vmatpush1.msra.mxu0 0.0
    %52 = vmatprep.subr.mxu0 0.0
    %53 = vmatpush1.msra.mxu0 0.0
    %54 = vmatprep.subr.mxu0 0.0
    %55 = vmatpush1.msra.mxu0 0.0
    %56 = vmatprep.subr.mxu0 0.0
    %57 = vmatpush1.msra.mxu0 0.0
    %58 = vmatprep.subr.mxu0 0.0
    %59 = vmatpush1.msra.mxu0 0.0
    %60 = vmatprep.subr.mxu0 0.0
    %61 = vmatpush1.msra.mxu0 0.0
    %62 = vmatprep.subr.mxu0 0.0
    %63 = vmatpush1.msra.mxu0 0.0
    %64 = vmatprep.subr.mxu0 0.0
    %65 = vmatpush1.msra.mxu0 0.0
    %66 = vmatprep.subr.mxu0 0.0
    %67 = vmatpush1.msra.mxu0 0.0
    %68 = vmatprep.subr.mxu0 0.0
    %69 = vmatpush1.msra.mxu0 0.0
    %70 = vmatprep.subr.mxu0 0.0
    %71 = vmatpush1.msra.mxu0 0.0
    %72 = vmatprep.subr.mxu0 0.0
    %73 = vmatpush1.msra.mxu0 0.0
    %74 = vmatprep.subr.mxu0 0.0
    %75 = vmatpush1.msra.mxu0 0.0
    %76 = vmatprep.subr.mxu0 0.0
    %77 = vmatpush1.msra.mxu0 0.0
    %78 = vmatprep.subr.mxu0 0.0
    %79 = vmatpush1.msra.mxu0 0.0
    %80 = vmatprep.subr.mxu0 0.0
    %81 = vmatpush1.msra.mxu0 0.0
    %82 = vmatprep.subr.mxu0 0.0
    %83 = vmatpush1.msra.mxu0 0.0
    %84 = vmatprep.subr.mxu0 0.0
    %85 = vmatpush1.msra.mxu0 0.0
    %86 = vmatprep.subr.mxu0 0.0
    %87 = vmatpush1.msra.mxu0 0.0
    %88 = vmatprep.subr.mxu0 0.0
    %89 = vmatpush1.msra.mxu0 0.0
    %90 = vmatprep.subr.mxu0 0.0
    %91 = vmatpush1.msra.mxu0 0.0
    %92 = vmatprep.subr.mxu0 0.0
    %93 = vmatpush1.msra.mxu0 0.0
    %94 = vmatprep.subr.mxu0 0.0
    %95 = vmatpush1.msra.mxu0 0.0
    %96 = vmatprep.subr.mxu0 0.0
    %97 = vmatpush1.msra.mxu0 0.0
    %98 = vmatprep.subr.mxu0 0.0
    %99 = vmatpush1.msra.mxu0 0.0
    %100 = vmatprep.subr.mxu0 0.0
    %101 = vmatpush1.msra.mxu0 0.0
    %102 = vmatprep.subr.mxu0 0.0
    %103 = vmatpush1.msra.mxu0 0.0
    %104 = vmatprep.subr.mxu0 0.0
    %105 = vmatpush1.msra.mxu0 0.0
    %106 = vmatprep.subr.mxu0 0.0
    %107 = vmatpush1.msra.mxu0 0.0
    %108 = vmatprep.subr.mxu0 0.0
    %109 = vmatpush1.msra.mxu0 0.0
    %110 = vmatprep.subr.mxu0 0.0
    %111 = vmatpush1.msra.mxu0 0.0
    %112 = vmatprep.mubr.f32.mxu0 0.0
    %113 = vmatmul.mubr.f32.gmra.mrb[0].mxu0 %v42
    %v114 = vpop.f32.mrb[0].mxu0
    %v115 = vadd.f32 0.0, %v114
    %v116 = vpop.f32.mrb[0].mxu0
    %117 = vdwg.mxu0
    %vm118 = vcmask 130048
    %v120 = vsel %vm118, 0.0, 0
    %122 = vmatprep.subr.mxu0 0.0
    %123 = vmatpush1.msra.mxu0 %v29
    %124 = vmatprep.subr.mxu0 0.0
    %125 = vmatpush1.msra.mxu0 %v30
    %126 = vmatprep.subr.mxu0 0.0
    %127 = vmatpush1.msra.mxu0 0.0
    %128 = vmatprep.subr.mxu0 0.0
    %129 = vmatpush1.msra.mxu0 0.0
    %130 = vmatprep.subr.mxu0 0.0
    %131 = vmatpush1.msra.mxu0 0.0
    %132 = vmatprep.subr.mxu0 0.0
    %133 = vmatpush1.msra.mxu0 0.0
    %134 = vmatprep.subr.mxu0 0.0
    %135 = vmatpush1.msra.mxu0 0.0
    %136 = vmatprep.subr.mxu0 0.0
    %137 = vmatpush1.msra.mxu0 0.0
    %138 = vmatprep.subr.mxu0 0.0
    %139 = vmatpush1.msra.mxu0 0.0
    %140 = vmatprep.subr.mxu0 0.0
    %141 = vmatpush1.msra.mxu0 0.0
    %142 = vmatprep.subr.mxu0 0.0
    %143 = vmatpush1.msra.mxu0 0.0
    %144 = vmatprep.subr.mxu0 0.0
    %145 = vmatpush1.msra.mxu0 0.0
    %146 = vmatprep.subr.mxu0 0.0
    %147 = vmatpush1.msra.mxu0 0.0
    %148 = vmatprep.subr.mxu0 0.0
    %149 = vmatpush1.msra.mxu0 0.0
    %150 = vmatprep.subr.mxu0 0.0
    %151 = vmatpush1.msra.mxu0 0.0
    %152 = vmatprep.subr.mxu0 0.0
    %153 = vmatpush1.msra.mxu0 0.0
    %154 = vmatprep.subr.mxu0 0.0
    %155 = vmatpush1.msra.mxu0 0.0
    %156 = vmatprep.subr.mxu0 0.0
    %157 = vmatpush1.msra.mxu0 0.0
    %158 = vmatprep.subr.mxu0 0.0
    %159 = vmatpush1.msra.mxu0 0.0
    %160 = vmatprep.subr.mxu0 0.0
    %161 = vmatpush1.msra.mxu0 0.0
    %162 = vmatprep.subr.mxu0 0.0
    %163 = vmatpush1.msra.mxu0 0.0
    %164 = vmatprep.subr.mxu0 0.0
    %165 = vmatpush1.msra.mxu0 0.0
    %166 = vmatprep.subr.mxu0 0.0
    %167 = vmatpush1.msra.mxu0 0.0
    %168 = vmatprep.subr.mxu0 0.0
    %169 = vmatpush1.msra.mxu0 0.0
    %170 = vmatprep.subr.mxu0 0.0
    %171 = vmatpush1.msra.mxu0 0.0
    %172 = vmatprep.subr.mxu0 0.0
    %173 = vmatpush1.msra.mxu0 0.0
    %174 = vmatprep.subr.mxu0 0.0
    %175 = vmatpush1.msra.mxu0 0.0
    %176 = vmatprep.subr.mxu0 0.0
    %177 = vmatpush1.msra.mxu0 0.0
    %178 = vmatprep.subr.mxu0 0.0
    %179 = vmatpush1.msra.mxu0 0.0
    %180 = vmatprep.subr.mxu0 0.0
    %181 = vmatpush1.msra.mxu0 0.0
    %182 = vmatprep.subr.mxu0 0.0
    %183 = vmatpush1.msra.mxu0 0.0
    %184 = vmatprep.subr.mxu0 0.0
    %185 = vmatpush1.msra.mxu0 0.0
    %186 = vmatprep.mubr.f32.mxu0 0.0
    %187 = vmatmul.mubr.f32.gmra.mrb[0].mxu0 %v120
    %v188 = vpop.f32.mrb[0].mxu0
    %v189 = vadd.f32 0.0, %v188
    %v190 = vpop.f32.mrb[0].mxu0
    %191 = vdwg.mxu0
    %v192 = vadd.f32 %v115, %v189
    %v193 = vlaneseq
    %v194 = vshrl.u32 %v193, 7
    %v195 = vsub.s32 0, %v194
    %v196 = vrot.slane %v35, %v195
    %v197 = vadd.f32 %v192, %v196
    %v198 = vxor.u32 %v197, 2147483648
    %v199 = vmul.f32 %v198, 1.442695
    %v200 = vpow.pop %v199
    %v201 = vadd.f32 %v200, 1.0
    %v202 = vrcp.pop %v201
    %v203 = vmul.f32 1.0, %v202
    %v204 = vlaneseq
    %v205 = vshrl.u32 %v204, 7
    %v206 = vsub.s32 0, %v205
    %v207 = vrot.slane %v31, %v206
    %v208 = vadd.f32 %v115, %v207
    %v209 = vlaneseq
    %v210 = vshrl.u32 %v209, 7
    %v211 = vsub.s32 1, %v210
    %v212 = vrot.slane %v31, %v211
    %v213 = vadd.f32 %v189, %v212
    %215 = vrot.lane.b32.xlu0 %v213, 96
    %v216 = vpop.permute.xlu0 %215
    %v218 = vmul.f32 %v203, %v216
    %220 = vrot.lane.b32.xlu0 %v218, 32
    %v221 = vpop.permute.xlu0 %220
    %v223 = vadd.f32 %v208, %v221
    %v224 = vtanh.pop %v223
    %v225 = vsub.f32 1.0, %v203
    %227 = vrot.lane.b32.xlu0 %v224, 112
    %v228 = vpop.permute.xlu0 %227
    %v230 = vmul.f32 %v225, %v228
    %v231 = vmul.f32 %v203, 0.0
    %v232 = vadd.f32 %v230, %v231
    %v233 = vrot.slane %v26, 1
    %v234 = vsel %vm39, %v27, %v233
    %v235 = vsel %vm41, %v234, 0
    %237 = vmatprep.subr.mxu0 0.0
    %238 = vmatpush1.msra.mxu0 %v46
    %239 = vmatprep.subr.mxu0 0.0
    %240 = vmatpush1.msra.mxu0 0.0
    %241 = vmatprep.subr.mxu0 0.0
    %242 = vmatpush1.msra.mxu0 0.0
    %243 = vmatprep.subr.mxu0 0.0
    %244 = vmatpush1.msra.mxu0 0.0
    %245 = vmatprep.subr.mxu0 0.0
    %246 = vmatpush1.msra.mxu0 0.0
    %247 = vmatprep.subr.mxu0 0.0
    %248 = vmatpush1.msra.mxu0 0.0
    %249 = vmatprep.subr.mxu0 0.0
    %250 = vmatpush1.msra.mxu0 0.0
    %251 = vmatprep.subr.mxu0 0.0
    %252 = vmatpush1.msra.mxu0 0.0
    %253 = vmatprep.subr.mxu0 0.0
    %254 = vmatpush1.msra.mxu0 0.0
    %255 = vmatprep.subr.mxu0 0.0
    %256 = vmatpush1.msra.mxu0 0.0
    %257 = vmatprep.subr.mxu0 0.0
    %258 = vmatpush1.msra.mxu0 0.0
    %259 = vmatprep.subr.mxu0 0.0
    %260 = vmatpush1.msra.mxu0 0.0
    %261 = vmatprep.subr.mxu0 0.0
    %262 = vmatpush1.msra.mxu0 0.0
    %263 = vmatprep.subr.mxu0 0.0
    %264 = vmatpush1.msra.mxu0 0.0
    %265 = vmatprep.subr.mxu0 0.0
    %266 = vmatpush1.msra.mxu0 0.0
    %267 = vmatprep.subr.mxu0 0.0
    %268 = vmatpush1.msra.mxu0 0.0
    %269 = vmatprep.subr.mxu0 0.0
    %270 = vmatpush1.msra.mxu0 0.0
    %271 = vmatprep.subr.mxu0 0.0
    %272 = vmatpush1.msra.mxu0 0.0
    %273 = vmatprep.subr.mxu0 0.0
    %274 = vmatpush1.msra.mxu0 0.0
    %275 = vmatprep.subr.mxu0 0.0
    %276 = vmatpush1.msra.mxu0 0.0
    %277 = vmatprep.subr.mxu0 0.0
    %278 = vmatpush1.msra.mxu0 0.0
    %279 = vmatprep.subr.mxu0 0.0
    %280 = vmatpush1.msra.mxu0 0.0
    %281 = vmatprep.subr.mxu0 0.0
    %282 = vmatpush1.msra.mxu0 0.0
    %283 = vmatprep.subr.mxu0 0.0
    %284 = vmatpush1.msra.mxu0 0.0
    %285 = vmatprep.subr.mxu0 0.0
    %286 = vmatpush1.msra.mxu0 0.0
    %287 = vmatprep.subr.mxu0 0.0
    %288 = vmatpush1.msra.mxu0 0.0
    %289 = vmatprep.subr.mxu0 0.0
    %290 = vmatpush1.msra.mxu0 0.0
    %291 = vmatprep.subr.mxu0 0.0
    %292 = vmatpush1.msra.mxu0 0.0
    %293 = vmatprep.subr.mxu0 0.0
    %294 = vmatpush1.msra.mxu0 0.0
    %295 = vmatprep.subr.mxu0 0.0
    %296 = vmatpush1.msra.mxu0 0.0
    %297 = vmatprep.subr.mxu0 0.0
    %298 = vmatpush1.msra.mxu0 0.0
    %299 = vmatprep.subr.mxu0 0.0
    %300 = vmatpush1.msra.mxu0 0.0
    %301 = vmatprep.mubr.f32.mxu0 0.0
    %302 = vmatmul.mubr.f32.gmra.mrb[0].mxu0 %v235
    %v303 = vpop.f32.mrb[0].mxu0
    %v304 = vadd.f32 0.0, %v303
    %v305 = vpop.f32.mrb[0].mxu0
    %306 = vdwg.mxu0
    %308 = vrot.lane.b32.xlu0 %v232, 112
    %v309 = vpop.permute.xlu0 %308
    %v310 = vsel %vm118, %v309, 0
    %312 = vmatprep.subr.mxu0 0.0
    %313 = vmatpush1.msra.mxu0 %v29
    %314 = vmatprep.subr.mxu0 0.0
    %315 = vmatpush1.msra.mxu0 %v30
    %316 = vmatprep.subr.mxu0 0.0
    %317 = vmatpush1.msra.mxu0 0.0
    %318 = vmatprep.subr.mxu0 0.0
    %319 = vmatpush1.msra.mxu0 0.0
    %320 = vmatprep.subr.mxu0 0.0
    %321 = vmatpush1.msra.mxu0 0.0
    %322 = vmatprep.subr.mxu0 0.0
    %323 = vmatpush1.msra.mxu0 0.0
    %324 = vmatprep.subr.mxu0 0.0
    %325 = vmatpush1.msra.mxu0 0.0
    %326 = vmatprep.subr.mxu0 0.0
    %327 = vmatpush1.msra.mxu0 0.0
    %328 = vmatprep.subr.mxu0 0.0
    %329 = vmatpush1.msra.mxu0 0.0
    %330 = vmatprep.subr.mxu0 0.0
    %331 = vmatpush1.msra.mxu0 0.0
    %332 = vmatprep.subr.mxu0 0.0
    %333 = vmatpush1.msra.mxu0 0.0
    %334 = vmatprep.subr.mxu0 0.0
    %335 = vmatpush1.msra.mxu0 0.0
    %336 = vmatprep.subr.mxu0 0.0
    %337 = vmatpush1.msra.mxu0 0.0
    %338 = vmatprep.subr.mxu0 0.0
    %339 = vmatpush1.msra.mxu0 0.0
    %340 = vmatprep.subr.mxu0 0.0
    %341 = vmatpush1.msra.mxu0 0.0
    %342 = vmatprep.subr.mxu0 0.0
    %343 = vmatpush1.msra.mxu0 0.0
    %344 = vmatprep.subr.mxu0 0.0
    %345 = vmatpush1.msra.mxu0 0.0
    %346 = vmatprep.subr.mxu0 0.0
    %347 = vmatpush1.msra.mxu0 0.0
    %348 = vmatprep.subr.mxu0 0.0
    %349 = vmatpush1.msra.mxu0 0.0
    %350 = vmatprep.subr.mxu0 0.0
    %351 = vmatpush1.msra.mxu0 0.0
    %352 = vmatprep.subr.mxu0 0.0
    %353 = vmatpush1.msra.mxu0 0.0
    %354 = vmatprep.subr.mxu0 0.0
    %355 = vmatpush1.msra.mxu0 0.0
    %356 = vmatprep.subr.mxu0 0.0
    %357 = vmatpush1.msra.mxu0 0.0
    %358 = vmatprep.subr.mxu0 0.0
    %359 = vmatpush1.msra.mxu0 0.0
    %360 = vmatprep.subr.mxu0 0.0
    %361 = vmatpush1.msra.mxu0 0.0
    %362 = vmatprep.subr.mxu0 0.0
    %363 = vmatpush1.msra.mxu0 0.0
    %364 = vmatprep.subr.mxu0 0.0
    %365 = vmatpush1.msra.mxu0 0.0
    %366 = vmatprep.subr.mxu0 0.0
    %367 = vmatpush1.msra.mxu0 0.0
    %368 = vmatprep.subr.mxu0 0.0
    %369 = vmatpush1.msra.mxu0 0.0
    %370 = vmatprep.subr.mxu0 0.0
    %371 = vmatpush1.msra.mxu0 0.0
    %372 = vmatprep.subr.mxu0 0.0
    %373 = vmatpush1.msra.mxu0 0.0
    %374 = vmatprep.subr.mxu0 0.0
    %375 = vmatpush1.msra.mxu0 0.0
    %376 = vmatprep.mubr.f32.mxu0 0.0
    %377 = vmatmul.mubr.f32.gmra.mrb[0].mxu0 %v310
    %v378 = vpop.f32.mrb[0].mxu0
    %v379 = vadd.f32 0.0, %v378
    %v380 = vpop.f32.mrb[0].mxu0
    %381 = vdwg.mxu0
    %v382 = vadd.f32 %v304, %v379
    %v383 = vadd.f32 %v382, %v196
    %v384 = vxor.u32 %v383, 2147483648
    %v385 = vmul.f32 %v384, 1.442695
    %v386 = vpow.pop %v385
    %v387 = vadd.f32 %v386, 1.0
    %v388 = vrcp.pop %v387
    %v389 = vmul.f32 1.0, %v388
    %v390 = vadd.f32 %v304, %v207
    %v391 = vadd.f32 %v379, %v212
    %393 = vrot.lane.b32.xlu0 %v391, 96
    %v394 = vpop.permute.xlu0 %393
    %v396 = vmul.f32 %v389, %v394
    %398 = vrot.lane.b32.xlu0 %v396, 32
    %v399 = vpop.permute.xlu0 %398
    %v401 = vadd.f32 %v390, %v399
    %v402 = vtanh.pop %v401
    %v403 = vsub.f32 1.0, %v389
    %405 = vrot.lane.b32.xlu0 %v402, 112
    %v406 = vpop.permute.xlu0 %405
    %v408 = vmul.f32 %v403, %v406
    %v409 = vmul.f32 %v389, %v232
    %v410 = vadd.f32 %v408, %v409
    %v411 = vrot.slane %v26, 2
    %v412 = vrot.slane %v27, 1
    %v413 = vsel %vm39, %v412, %v411
    %v414 = vsel %vm41, %v413, 0
    %416 = vmatprep.subr.mxu0 0.0
    %417 = vmatpush1.msra.mxu0 %v46
    %418 = vmatprep.subr.mxu0 0.0
    %419 = vmatpush1.msra.mxu0 0.0
    %420 = vmatprep.subr.mxu0 0.0
    %421 = vmatpush1.msra.mxu0 0.0
    %422 = vmatprep.subr.mxu0 0.0
    %423 = vmatpush1.msra.mxu0 0.0
    %424 = vmatprep.subr.mxu0 0.0
    %425 = vmatpush1.msra.mxu0 0.0
    %426 = vmatprep.subr.mxu0 0.0
    %427 = vmatpush1.msra.mxu0 0.0
    %428 = vmatprep.subr.mxu0 0.0
    %429 = vmatpush1.msra.mxu0 0.0
    %430 = vmatprep.subr.mxu0 0.0
    %431 = vmatpush1.msra.mxu0 0.0
    %432 = vmatprep.subr.mxu0 0.0
    %433 = vmatpush1.msra.mxu0 0.0
    %434 = vmatprep.subr.mxu0 0.0
    %435 = vmatpush1.msra.mxu0 0.0
    %436 = vmatprep.subr.mxu0 0.0
    %437 = vmatpush1.msra.mxu0 0.0
    %438 = vmatprep.subr.mxu0 0.0
    %439 = vmatpush1.msra.mxu0 0.0
    %440 = vmatprep.subr.mxu0 0.0
    %441 = vmatpush1.msra.mxu0 0.0
    %442 = vmatprep.subr.mxu0 0.0
    %443 = vmatpush1.msra.mxu0 0.0
    %444 = vmatprep.subr.mxu0 0.0
    %445 = vmatpush1.msra.mxu0 0.0
    %446 = vmatprep.subr.mxu0 0.0
    %447 = vmatpush1.msra.mxu0 0.0
    %448 = vmatprep.subr.mxu0 0.0
    %449 = vmatpush1.msra.mxu0 0.0
    %450 = vmatprep.subr.mxu0 0.0
    %451 = vmatpush1.msra.mxu0 0.0
    %452 = vmatprep.subr.mxu0 0.0
    %453 = vmatpush1.msra.mxu0 0.0
    %454 = vmatprep.subr.mxu0 0.0
    %455 = vmatpush1.msra.mxu0 0.0
    %456 = vmatprep.subr.mxu0 0.0
    %457 = vmatpush1.msra.mxu0 0.0
    %458 = vmatprep.subr.mxu0 0.0
    %459 = vmatpush1.msra.mxu0 0.0
    %460 = vmatprep.subr.mxu0 0.0
    %461 = vmatpush1.msra.mxu0 0.0
    %462 = vmatprep.subr.mxu0 0.0
    %463 = vmatpush1.msra.mxu0 0.0
    %464 = vmatprep.subr.mxu0 0.0
    %465 = vmatpush1.msra.mxu0 0.0
    %466 = vmatprep.subr.mxu0 0.0
    %467 = vmatpush1.msra.mxu0 0.0
    %468 = vmatprep.subr.mxu0 0.0
    %469 = vmatpush1.msra.mxu0 0.0
    %470 = vmatprep.subr.mxu0 0.0
    %471 = vmatpush1.msra.mxu0 0.0
    %472 = vmatprep.subr.mxu0 0.0
    %473 = vmatpush1.msra.mxu0 0.0
    %474 = vmatprep.subr.mxu0 0.0
    %475 = vmatpush1.msra.mxu0 0.0
    %476 = vmatprep.subr.mxu0 0.0
    %477 = vmatpush1.msra.mxu0 0.0
    %478 = vmatprep.subr.mxu0 0.0
    %479 = vmatpush1.msra.mxu0 0.0
    %480 = vmatprep.mubr.f32.mxu0 0.0
    %481 = vmatmul.mubr.f32.gmra.mrb[0].mxu0 %v414
    %v482 = vpop.f32.mrb[0].mxu0
    %v483 = vadd.f32 0.0, %v482
    %v484 = vpop.f32.mrb[0].mxu0
    %485 = vdwg.mxu0
    %487 = vrot.lane.b32.xlu0 %v410, 112
    %v488 = vpop.permute.xlu0 %487
    %v489 = vsel %vm118, %v488, 0
    %491 = vmatprep.subr.mxu0 0.0
    %492 = vmatpush1.msra.mxu0 %v29
    %493 = vmatprep.subr.mxu0 0.0
    %494 = vmatpush1.msra.mxu0 %v30
    %495 = vmatprep.subr.mxu0 0.0
    %496 = vmatpush1.msra.mxu0 0.0
    %497 = vmatprep.subr.mxu0 0.0
    %498 = vmatpush1.msra.mxu0 0.0
    %499 = vmatprep.subr.mxu0 0.0
    %500 = vmatpush1.msra.mxu0 0.0
    %501 = vmatprep.subr.mxu0 0.0
    %502 = vmatpush1.msra.mxu0 0.0
    %503 = vmatprep.subr.mxu0 0.0
    %504 = vmatpush1.msra.mxu0 0.0
    %505 = vmatprep.subr.mxu0 0.0
    %506 = vmatpush1.msra.mxu0 0.0
    %507 = vmatprep.subr.mxu0 0.0
    %508 = vmatpush1.msra.mxu0 0.0
    %509 = vmatprep.subr.mxu0 0.0
    %510 = vmatpush1.msra.mxu0 0.0
    %511 = vmatprep.subr.mxu0 0.0
    %512 = vmatpush1.msra.mxu0 0.0
    %513 = vmatprep.subr.mxu0 0.0
    %514 = vmatpush1.msra.mxu0 0.0
    %515 = vmatprep.subr.mxu0 0.0
    %516 = vmatpush1.msra.mxu0 0.0
    %517 = vmatprep.subr.mxu0 0.0
    %518 = vmatpush1.msra.mxu0 0.0
    %519 = vmatprep.subr.mxu0 0.0
    %520 = vmatpush1.msra.mxu0 0.0
    %521 = vmatprep.subr.mxu0 0.0
    %522 = vmatpush1.msra.mxu0 0.0
    %523 = vmatprep.subr.mxu0 0.0
    %524 = vmatpush1.msra.mxu0 0.0
    %525 = vmatprep.subr.mxu0 0.0
    %526 = vmatpush1.msra.mxu0 0.0
    %527 = vmatprep.subr.mxu0 0.0
    %528 = vmatpush1.msra.mxu0 0.0
    %529 = vmatprep.subr.mxu0 0.0
    %530 = vmatpush1.msra.mxu0 0.0
    %531 = vmatprep.subr.mxu0 0.0
    %532 = vmatpush1.msra.mxu0 0.0
    %533 = vmatprep.subr.mxu0 0.0
    %534 = vmatpush1.msra.mxu0 0.0
    %535 = vmatprep.subr.mxu0 0.0
    %536 = vmatpush1.msra.mxu0 0.0
    %537 = vmatprep.subr.mxu0 0.0
    %538 = vmatpush1.msra.mxu0 0.0
    %539 = vmatprep.subr.mxu0 0.0
    %540 = vmatpush1.msra.mxu0 0.0
    %541 = vmatprep.subr.mxu0 0.0
    %542 = vmatpush1.msra.mxu0 0.0
    %543 = vmatprep.subr.mxu0 0.0
    %544 = vmatpush1.msra.mxu0 0.0
    %545 = vmatprep.subr.mxu0 0.0
    %546 = vmatpush1.msra.mxu0 0.0
    %547 = vmatprep.subr.mxu0 0.0
    %548 = vmatpush1.msra.mxu0 0.0
    %549 = vmatprep.subr.mxu0 0.0
    %550 = vmatpush1.msra.mxu0 0.0
    %551 = vmatprep.subr.mxu0 0.0
    %552 = vmatpush1.msra.mxu0 0.0
    %553 = vmatprep.subr.mxu0 0.0
    %554 = vmatpush1.msra.mxu0 0.0
    %555 = vmatprep.mubr.f32.mxu0 0.0
    %556 = vmatmul.mubr.f32.gmra.mrb[0].mxu0 %v489
    %v557 = vpop.f32.mrb[0].mxu0
    %v558 = vadd.f32 0.0, %v557
    %v559 = vpop.f32.mrb[0].mxu0
    %560 = vdwg.mxu0
    %v561 = vadd.f32 %v483, %v558
    %v562 = vadd.f32 %v561, %v196
    %v563 = vxor.u32 %v562, 2147483648
    %v564 = vmul.f32 %v563, 1.442695
    %v565 = vpow.pop %v564
    %v566 = vadd.f32 %v565, 1.0
    %v567 = vrcp.pop %v566
    %v568 = vmul.f32 1.0, %v567
    %v569 = vadd.f32 %v483, %v207
    %v570 = vadd.f32 %v558, %v212
    %572 = vrot.lane.b32.xlu0 %v570, 96
    %v573 = vpop.permute.xlu0 %572
    %v575 = vmul.f32 %v568, %v573
    %577 = vrot.lane.b32.xlu0 %v575, 32
    %v578 = vpop.permute.xlu0 %577
    %v580 = vadd.f32 %v569, %v578
    %v581 = vtanh.pop %v580
    %v582 = vsub.f32 1.0, %v568
    %584 = vrot.lane.b32.xlu0 %v581, 112
    %v585 = vpop.permute.xlu0 %584
    %v587 = vmul.f32 %v582, %v585
    %v588 = vmul.f32 %v568, %v410
    %v589 = vadd.f32 %v587, %v588
    %v590 = vrot.slane %v26, 3
    %v591 = vrot.slane %v27, 2
    %v592 = vsel %vm39, %v591, %v590
    %v593 = vsel %vm41, %v592, 0
    %595 = vmatprep.subr.mxu0 0.0
    %596 = vmatpush1.msra.mxu0 %v46
    %597 = vmatprep.subr.mxu0 0.0
    %598 = vmatpush1.msra.mxu0 0.0
    %599 = vmatprep.subr.mxu0 0.0
    %600 = vmatpush1.msra.mxu0 0.0
    %601 = vmatprep.subr.mxu0 0.0
    %602 = vmatpush1.msra.mxu0 0.0
    %603 = vmatprep.subr.mxu0 0.0
    %604 = vmatpush1.msra.mxu0 0.0
    %605 = vmatprep.subr.mxu0 0.0
    %606 = vmatpush1.msra.mxu0 0.0
    %607 = vmatprep.subr.mxu0 0.0
    %608 = vmatpush1.msra.mxu0 0.0
    %609 = vmatprep.subr.mxu0 0.0
    %610 = vmatpush1.msra.mxu0 0.0
    %611 = vmatprep.subr.mxu0 0.0
    %612 = vmatpush1.msra.mxu0 0.0
    %613 = vmatprep.subr.mxu0 0.0
    %614 = vmatpush1.msra.mxu0 0.0
    %615 = vmatprep.subr.mxu0 0.0
    %616 = vmatpush1.msra.mxu0 0.0
    %617 = vmatprep.subr.mxu0 0.0
    %618 = vmatpush1.msra.mxu0 0.0
    %619 = vmatprep.subr.mxu0 0.0
    %620 = vmatpush1.msra.mxu0 0.0
    %621 = vmatprep.subr.mxu0 0.0
    %622 = vmatpush1.msra.mxu0 0.0
    %623 = vmatprep.subr.mxu0 0.0
    %624 = vmatpush1.msra.mxu0 0.0
    %625 = vmatprep.subr.mxu0 0.0
    %626 = vmatpush1.msra.mxu0 0.0
    %627 = vmatprep.subr.mxu0 0.0
    %628 = vmatpush1.msra.mxu0 0.0
    %629 = vmatprep.subr.mxu0 0.0
    %630 = vmatpush1.msra.mxu0 0.0
    %631 = vmatprep.subr.mxu0 0.0
    %632 = vmatpush1.msra.mxu0 0.0
    %633 = vmatprep.subr.mxu0 0.0
    %634 = vmatpush1.msra.mxu0 0.0
    %635 = vmatprep.subr.mxu0 0.0
    %636 = vmatpush1.msra.mxu0 0.0
    %637 = vmatprep.subr.mxu0 0.0
    %638 = vmatpush1.msra.mxu0 0.0
    %639 = vmatprep.subr.mxu0 0.0
    %640 = vmatpush1.msra.mxu0 0.0
    %641 = vmatprep.subr.mxu0 0.0
    %642 = vmatpush1.msra.mxu0 0.0
    %643 = vmatprep.subr.mxu0 0.0
    %644 = vmatpush1.msra.mxu0 0.0
    %645 = vmatprep.subr.mxu0 0.0
    %646 = vmatpush1.msra.mxu0 0.0
    %647 = vmatprep.subr.mxu0 0.0
    %648 = vmatpush1.msra.mxu0 0.0
    %649 = vmatprep.subr.mxu0 0.0
    %650 = vmatpush1.msra.mxu0 0.0
    %651 = vmatprep.subr.mxu0 0.0
    %652 = vmatpush1.msra.mxu0 0.0
    %653 = vmatprep.subr.mxu0 0.0
    %654 = vmatpush1.msra.mxu0 0.0
    %655 = vmatprep.subr.mxu0 0.0
    %656 = vmatpush1.msra.mxu0 0.0
    %657 = vmatprep.subr.mxu0 0.0
    %658 = vmatpush1.msra.mxu0 0.0
    %659 = vmatprep.mubr.f32.mxu0 0.0
    %660 = vmatmul.mubr.f32.gmra.mrb[0].mxu0 %v593
    %v661 = vpop.f32.mrb[0].mxu0
    %v662 = vadd.f32 0.0, %v661
    %v663 = vpop.f32.mrb[0].mxu0
    %664 = vdwg.mxu0
    %666 = vrot.lane.b32.xlu0 %v589, 112
    %v667 = vpop.permute.xlu0 %666
    %v668 = vsel %vm118, %v667, 0
    %670 = vmatprep.subr.mxu0 0.0
    %671 = vmatpush1.msra.mxu0 %v29
    %672 = vmatprep.subr.mxu0 0.0
    %673 = vmatpush1.msra.mxu0 %v30
    %674 = vmatprep.subr.mxu0 0.0
    %675 = vmatpush1.msra.mxu0 0.0
    %676 = vmatprep.subr.mxu0 0.0
    %677 = vmatpush1.msra.mxu0 0.0
    %678 = vmatprep.subr.mxu0 0.0
    %679 = vmatpush1.msra.mxu0 0.0
    %680 = vmatprep.subr.mxu0 0.0
    %681 = vmatpush1.msra.mxu0 0.0
    %682 = vmatprep.subr.mxu0 0.0
    %683 = vmatpush1.msra.mxu0 0.0
    %684 = vmatprep.subr.mxu0 0.0
    %685 = vmatpush1.msra.mxu0 0.0
    %686 = vmatprep.subr.mxu0 0.0
    %687 = vmatpush1.msra.mxu0 0.0
    %688 = vmatprep.subr.mxu0 0.0
    %689 = vmatpush1.msra.mxu0 0.0
    %690 = vmatprep.subr.mxu0 0.0
    %691 = vmatpush1.msra.mxu0 0.0
    %692 = vmatprep.subr.mxu0 0.0
    %693 = vmatpush1.msra.mxu0 0.0
    %694 = vmatprep.subr.mxu0 0.0
    %695 = vmatpush1.msra.mxu0 0.0
    %696 = vmatprep.subr.mxu0 0.0
    %697 = vmatpush1.msra.mxu0 0.0
    %698 = vmatprep.subr.mxu0 0.0
    %699 = vmatpush1.msra.mxu0 0.0
    %700 = vmatprep.subr.mxu0 0.0
    %701 = vmatpush1.msra.mxu0 0.0
    %702 = vmatprep.subr.mxu0 0.0
    %703 = vmatpush1.msra.mxu0 0.0
    %704 = vmatprep.subr.mxu0 0.0
    %705 = vmatpush1.msra.mxu0 0.0
    %706 = vmatprep.subr.mxu0 0.0
    %707 = vmatpush1.msra.mxu0 0.0
    %708 = vmatprep.subr.mxu0 0.0
    %709 = vmatpush1.msra.mxu0 0.0
    %710 = vmatprep.subr.mxu0 0.0
    %711 = vmatpush1.msra.mxu0 0.0
    %712 = vmatprep.subr.mxu0 0.0
    %713 = vmatpush1.msra.mxu0 0.0
    %714 = vmatprep.subr.mxu0 0.0
    %715 = vmatpush1.msra.mxu0 0.0
    %716 = vmatprep.subr.mxu0 0.0
    %717 = vmatpush1.msra.mxu0 0.0
    %718 = vmatprep.subr.mxu0 0.0
    %719 = vmatpush1.msra.mxu0 0.0
    %720 = vmatprep.subr.mxu0 0.0
    %721 = vmatpush1.msra.mxu0 0.0
    %722 = vmatprep.subr.mxu0 0.0
    %723 = vmatpush1.msra.mxu0 0.0
    %724 = vmatprep.subr.mxu0 0.0
    %725 = vmatpush1.msra.mxu0 0.0
    %726 = vmatprep.subr.mxu0 0.0
    %727 = vmatpush1.msra.mxu0 0.0
    %728 = vmatprep.subr.mxu0 0.0
    %729 = vmatpush1.msra.mxu0 0.0
    %730 = vmatprep.subr.mxu0 0.0
    %731 = vmatpush1.msra.mxu0 0.0
    %732 = vmatprep.subr.mxu0 0.0
    %733 = vmatpush1.msra.mxu0 0.0
    %734 = vmatprep.mubr.f32.mxu0 0.0
    %735 = vmatmul.mubr.f32.gmra.mrb[0].mxu0 %v668
    %v736 = vpop.f32.mrb[0].mxu0
    %v737 = vadd.f32 0.0, %v736
    %v738 = vpop.f32.mrb[0].mxu0
    %739 = vdwg.mxu0
    %v740 = vadd.f32 %v662, %v737
    %v741 = vadd.f32 %v740, %v196
    %v742 = vxor.u32 %v741, 2147483648
    %v743 = vmul.f32 %v742, 1.442695
    %v744 = vpow.pop %v743
    %v745 = vadd.f32 %v744, 1.0
    %v746 = vrcp.pop %v745
    %v747 = vmul.f32 1.0, %v746
    %v748 = vadd.f32 %v662, %v207
    %v749 = vadd.f32 %v737, %v212
    %751 = vrot.lane.b32.xlu0 %v749, 96
    %v752 = vpop.permute.xlu0 %751
    %v754 = vmul.f32 %v747, %v752
    %756 = vrot.lane.b32.xlu0 %v754, 32
    %v757 = vpop.permute.xlu0 %756
    %v759 = vadd.f32 %v748, %v757
    %v760 = vtanh.pop %v759
    %v761 = vsub.f32 1.0, %v747
    %763 = vrot.lane.b32.xlu0 %v760, 112
    %v764 = vpop.permute.xlu0 %763
    %v766 = vmul.f32 %v761, %v764
    %v767 = vmul.f32 %v747, %v589
    %v768 = vadd.f32 %v766, %v767
    %v769 = vrot.slane %v26, 4
    %v770 = vrot.slane %v27, 3
    %v771 = vsel %vm39, %v770, %v769
    %v772 = vsel %vm41, %v771, 0
    %774 = vmatprep.subr.mxu0 0.0
    %775 = vmatpush1.msra.mxu0 %v46
    %776 = vmatprep.subr.mxu0 0.0
    %777 = vmatpush1.msra.mxu0 0.0
    %778 = vmatprep.subr.mxu0 0.0
    %779 = vmatpush1.msra.mxu0 0.0
    %780 = vmatprep.subr.mxu0 0.0
    %781 = vmatpush1.msra.mxu0 0.0
    %782 = vmatprep.subr.mxu0 0.0
    %783 = vmatpush1.msra.mxu0 0.0
    %784 = vmatprep.subr.mxu0 0.0
    %785 = vmatpush1.msra.mxu0 0.0
    %786 = vmatprep.subr.mxu0 0.0
    %787 = vmatpush1.msra.mxu0 0.0
    %788 = vmatprep.subr.mxu0 0.0
    %789 = vmatpush1.msra.mxu0 0.0
    %790 = vmatprep.subr.mxu0 0.0
    %791 = vmatpush1.msra.mxu0 0.0
    %792 = vmatprep.subr.mxu0 0.0
    %793 = vmatpush1.msra.mxu0 0.0
    %794 = vmatprep.subr.mxu0 0.0
    %795 = vmatpush1.msra.mxu0 0.0
    %796 = vmatprep.subr.mxu0 0.0
    %797 = vmatpush1.msra.mxu0 0.0
    %798 = vmatprep.subr.mxu0 0.0
    %799 = vmatpush1.msra.mxu0 0.0
    %800 = vmatprep.subr.mxu0 0.0
    %801 = vmatpush1.msra.mxu0 0.0
    %802 = vmatprep.subr.mxu0 0.0
    %803 = vmatpush1.msra.mxu0 0.0
    %804 = vmatprep.subr.mxu0 0.0
    %805 = vmatpush1.msra.mxu0 0.0
    %806 = vmatprep.subr.mxu0 0.0
    %807 = vmatpush1.msra.mxu0 0.0
    %808 = vmatprep.subr.mxu0 0.0
    %809 = vmatpush1.msra.mxu0 0.0
    %810 = vmatprep.subr.mxu0 0.0
    %811 = vmatpush1.msra.mxu0 0.0
    %812 = vmatprep.subr.mxu0 0.0
    %813 = vmatpush1.msra.mxu0 0.0
    %814 = vmatprep.subr.mxu0 0.0
    %815 = vmatpush1.msra.mxu0 0.0
    %816 = vmatprep.subr.mxu0 0.0
    %817 = vmatpush1.msra.mxu0 0.0
    %818 = vmatprep.subr.mxu0 0.0
    %819 = vmatpush1.msra.mxu0 0.0
    %820 = vmatprep.subr.mxu0 0.0
    %821 = vmatpush1.msra.mxu0 0.0
    %822 = vmatprep.subr.mxu0 0.0
    %823 = vmatpush1.msra.mxu0 0.0
    %824 = vmatprep.subr.mxu0 0.0
    %825 = vmatpush1.msra.mxu0 0.0
    %826 = vmatprep.subr.mxu0 0.0
    %827 = vmatpush1.msra.mxu0 0.0
    %828 = vmatprep.subr.mxu0 0.0
    %829 = vmatpush1.msra.mxu0 0.0
    %830 = vmatprep.subr.mxu0 0.0
    %831 = vmatpush1.msra.mxu0 0.0
    %832 = vmatprep.subr.mxu0 0.0
    %833 = vmatpush1.msra.mxu0 0.0
    %834 = vmatprep.subr.mxu0 0.0
    %835 = vmatpush1.msra.mxu0 0.0
    %836 = vmatprep.subr.mxu0 0.0
    %837 = vmatpush1.msra.mxu0 0.0
    %838 = vmatprep.mubr.f32.mxu0 0.0
    %839 = vmatmul.mubr.f32.gmra.mrb[0].mxu0 %v772
    %v840 = vpop.f32.mrb[0].mxu0
    %v841 = vadd.f32 0.0, %v840
    %v842 = vpop.f32.mrb[0].mxu0
    %843 = vdwg.mxu0
    %845 = vrot.lane.b32.xlu0 %v768, 112
    %v846 = vpop.permute.xlu0 %845
    %v847 = vsel %vm118, %v846, 0
    %849 = vmatprep.subr.mxu0 0.0
    %850 = vmatpush1.msra.mxu0 %v29
    %851 = vmatprep.subr.mxu0 0.0
    %852 = vmatpush1.msra.mxu0 %v30
    %853 = vmatprep.subr.mxu0 0.0
    %854 = vmatpush1.msra.mxu0 0.0
    %855 = vmatprep.subr.mxu0 0.0
    %856 = vmatpush1.msra.mxu0 0.0
    %857 = vmatprep.subr.mxu0 0.0
    %858 = vmatpush1.msra.mxu0 0.0
    %859 = vmatprep.subr.mxu0 0.0
    %860 = vmatpush1.msra.mxu0 0.0
    %861 = vmatprep.subr.mxu0 0.0
    %862 = vmatpush1.msra.mxu0 0.0
    %863 = vmatprep.subr.mxu0 0.0
    %864 = vmatpush1.msra.mxu0 0.0
    %865 = vmatprep.subr.mxu0 0.0
    %866 = vmatpush1.msra.mxu0 0.0
    %867 = vmatprep.subr.mxu0 0.0
    %868 = vmatpush1.msra.mxu0 0.0
    %869 = vmatprep.subr.mxu0 0.0
    %870 = vmatpush1.msra.mxu0 0.0
    %871 = vmatprep.subr.mxu0 0.0
    %872 = vmatpush1.msra.mxu0 0.0
    %873 = vmatprep.subr.mxu0 0.0
    %874 = vmatpush1.msra.mxu0 0.0
    %875 = vmatprep.subr.mxu0 0.0
    %876 = vmatpush1.msra.mxu0 0.0
    %877 = vmatprep.subr.mxu0 0.0
    %878 = vmatpush1.msra.mxu0 0.0
    %879 = vmatprep.subr.mxu0 0.0
    %880 = vmatpush1.msra.mxu0 0.0
    %881 = vmatprep.subr.mxu0 0.0
    %882 = vmatpush1.msra.mxu0 0.0
    %883 = vmatprep.subr.mxu0 0.0
    %884 = vmatpush1.msra.mxu0 0.0
    %885 = vmatprep.subr.mxu0 0.0
    %886 = vmatpush1.msra.mxu0 0.0
    %887 = vmatprep.subr.mxu0 0.0
    %888 = vmatpush1.msra.mxu0 0.0
    %889 = vmatprep.subr.mxu0 0.0
    %890 = vmatpush1.msra.mxu0 0.0
    %891 = vmatprep.subr.mxu0 0.0
    %892 = vmatpush1.msra.mxu0 0.0
    %893 = vmatprep.subr.mxu0 0.0
    %894 = vmatpush1.msra.mxu0 0.0
    %895 = vmatprep.subr.mxu0 0.0
    %896 = vmatpush1.msra.mxu0 0.0
    %897 = vmatprep.subr.mxu0 0.0
    %898 = vmatpush1.msra.mxu0 0.0
    %899 = vmatprep.subr.mxu0 0.0
    %900 = vmatpush1.msra.mxu0 0.0
    %901 = vmatprep.subr.mxu0 0.0
    %902 = vmatpush1.msra.mxu0 0.0
    %903 = vmatprep.subr.mxu0 0.0
    %904 = vmatpush1.msra.mxu0 0.0
    %905 = vmatprep.subr.mxu0 0.0
    %906 = vmatpush1.msra.mxu0 0.0
    %907 = vmatprep.subr.mxu0 0.0
    %908 = vmatpush1.msra.mxu0 0.0
    %909 = vmatprep.subr.mxu0 0.0
    %910 = vmatpush1.msra.mxu0 0.0
    %911 = vmatprep.subr.mxu0 0.0
    %912 = vmatpush1.msra.mxu0 0.0
    %913 = vmatprep.mubr.f32.mxu0 0.0
    %914 = vmatmul.mubr.f32.gmra.mrb[0].mxu0 %v847
    %v915 = vpop.f32.mrb[0].mxu0
    %v916 = vadd.f32 0.0, %v915
    %v917 = vpop.f32.mrb[0].mxu0
    %918 = vdwg.mxu0
    %v919 = vadd.f32 %v841, %v916
    %v920 = vadd.f32 %v919, %v196
    %v921 = vxor.u32 %v920, 2147483648
    %v922 = vmul.f32 %v921, 1.442695
    %v923 = vpow.pop %v922
    %v924 = vadd.f32 %v923, 1.0
    %v925 = vrcp.pop %v924
    %v926 = vmul.f32 1.0, %v925
    %v927 = vadd.f32 %v841, %v207
    %v928 = vadd.f32 %v916, %v212
    %930 = vrot.lane.b32.xlu0 %v928, 96
    %v931 = vpop.permute.xlu0 %930
    %v933 = vmul.f32 %v926, %v931
    %935 = vrot.lane.b32.xlu0 %v933, 32
    %v936 = vpop.permute.xlu0 %935
    %v938 = vadd.f32 %v927, %v936
    %v939 = vtanh.pop %v938
    %v940 = vsub.f32 1.0, %v926
    %942 = vrot.lane.b32.xlu0 %v939, 112
    %v943 = vpop.permute.xlu0 %942
    %v945 = vmul.f32 %v940, %v943
    %v946 = vmul.f32 %v926, %v768
    %v947 = vadd.f32 %v945, %v946
    %v948 = vrot.slane %v26, 5
    %v949 = vrot.slane %v27, 4
    %v950 = vsel %vm39, %v949, %v948
    %v951 = vsel %vm41, %v950, 0
    %953 = vmatprep.subr.mxu0 0.0
    %954 = vmatpush1.msra.mxu0 %v46
    %955 = vmatprep.subr.mxu0 0.0
    %956 = vmatpush1.msra.mxu0 0.0
    %957 = vmatprep.subr.mxu0 0.0
    %958 = vmatpush1.msra.mxu0 0.0
    %959 = vmatprep.subr.mxu0 0.0
    %960 = vmatpush1.msra.mxu0 0.0
    %961 = vmatprep.subr.mxu0 0.0
    %962 = vmatpush1.msra.mxu0 0.0
    %963 = vmatprep.subr.mxu0 0.0
    %964 = vmatpush1.msra.mxu0 0.0
    %965 = vmatprep.subr.mxu0 0.0
    %966 = vmatpush1.msra.mxu0 0.0
    %967 = vmatprep.subr.mxu0 0.0
    %968 = vmatpush1.msra.mxu0 0.0
    %969 = vmatprep.subr.mxu0 0.0
    %970 = vmatpush1.msra.mxu0 0.0
    %971 = vmatprep.subr.mxu0 0.0
    %972 = vmatpush1.msra.mxu0 0.0
    %973 = vmatprep.subr.mxu0 0.0
    %974 = vmatpush1.msra.mxu0 0.0
    %975 = vmatprep.subr.mxu0 0.0
    %976 = vmatpush1.msra.mxu0 0.0
    %977 = vmatprep.subr.mxu0 0.0
    %978 = vmatpush1.msra.mxu0 0.0
    %979 = vmatprep.subr.mxu0 0.0
    %980 = vmatpush1.msra.mxu0 0.0
    %981 = vmatprep.subr.mxu0 0.0
    %982 = vmatpush1.msra.mxu0 0.0
    %983 = vmatprep.subr.mxu0 0.0
    %984 = vmatpush1.msra.mxu0 0.0
    %985 = vmatprep.subr.mxu0 0.0
    %986 = vmatpush1.msra.mxu0 0.0
    %987 = vmatprep.subr.mxu0 0.0
    %988 = vmatpush1.msra.mxu0 0.0
    %989 = vmatprep.subr.mxu0 0.0
    %990 = vmatpush1.msra.mxu0 0.0
    %991 = vmatprep.subr.mxu0 0.0
    %992 = vmatpush1.msra.mxu0 0.0
    %993 = vmatprep.subr.mxu0 0.0
    %994 = vmatpush1.msra.mxu0 0.0
    %995 = vmatprep.subr.mxu0 0.0
    %996 = vmatpush1.msra.mxu0 0.0
    %997 = vmatprep.subr.mxu0 0.0
    %998 = vmatpush1.msra.mxu0 0.0
    %999 = vmatprep.subr.mxu0 0.0
    %1000 = vmatpush1.msra.mxu0 0.0
    %1001 = vmatprep.subr.mxu0 0.0
    %1002 = vmatpush1.msra.mxu0 0.0
    %1003 = vmatprep.subr.mxu0 0.0
    %1004 = vmatpush1.msra.mxu0 0.0
    %1005 = vmatprep.subr.mxu0 0.0
    %1006 = vmatpush1.msra.mxu0 0.0
    %1007 = vmatprep.subr.mxu0 0.0
    %1008 = vmatpush1.msra.mxu0 0.0
    %1009 = vmatprep.subr.mxu0 0.0
    %1010 = vmatpush1.msra.mxu0 0.0
    %1011 = vmatprep.subr.mxu0 0.0
    %1012 = vmatpush1.msra.mxu0 0.0
    %1013 = vmatprep.subr.mxu0 0.0
    %1014 = vmatpush1.msra.mxu0 0.0
    %1015 = vmatprep.subr.mxu0 0.0
    %1016 = vmatpush1.msra.mxu0 0.0
    %1017 = vmatprep.mubr.f32.mxu0 0.0
    %1018 = vmatmul.mubr.f32.gmra.mrb[0].mxu0 %v951
    %v1019 = vpop.f32.mrb[0].mxu0
    %v1020 = vadd.f32 0.0, %v1019
    %v1021 = vpop.f32.mrb[0].mxu0
    %1022 = vdwg.mxu0
    %1024 = vrot.lane.b32.xlu0 %v947, 112
    %v1025 = vpop.permute.xlu0 %1024
    %v1026 = vsel %vm118, %v1025, 0
    %1028 = vmatprep.subr.mxu0 0.0
    %1029 = vmatpush1.msra.mxu0 %v29
    %1030 = vmatprep.subr.mxu0 0.0
    %1031 = vmatpush1.msra.mxu0 %v30
    %1032 = vmatprep.subr.mxu0 0.0
    %1033 = vmatpush1.msra.mxu0 0.0
    %1034 = vmatprep.subr.mxu0 0.0
    %1035 = vmatpush1.msra.mxu0 0.0
    %1036 = vmatprep.subr.mxu0 0.0
    %1037 = vmatpush1.msra.mxu0 0.0
    %1038 = vmatprep.subr.mxu0 0.0
    %1039 = vmatpush1.msra.mxu0 0.0
    %1040 = vmatprep.subr.mxu0 0.0
    %1041 = vmatpush1.msra.mxu0 0.0
    %1042 = vmatprep.subr.mxu0 0.0
    %1043 = vmatpush1.msra.mxu0 0.0
    %1044 = vmatprep.subr.mxu0 0.0
    %1045 = vmatpush1.msra.mxu0 0.0
    %1046 = vmatprep.subr.mxu0 0.0
    %1047 = vmatpush1.msra.mxu0 0.0
    %1048 = vmatprep.subr.mxu0 0.0
    %1049 = vmatpush1.msra.mxu0 0.0
    %1050 = vmatprep.subr.mxu0 0.0
    %1051 = vmatpush1.msra.mxu0 0.0
    %1052 = vmatprep.subr.mxu0 0.0
    %1053 = vmatpush1.msra.mxu0 0.0
    %1054 = vmatprep.subr.mxu0 0.0
    %1055 = vmatpush1.msra.mxu0 0.0
    %1056 = vmatprep.subr.mxu0 0.0
    %1057 = vmatpush1.msra.mxu0 0.0
    %1058 = vmatprep.subr.mxu0 0.0
    %1059 = vmatpush1.msra.mxu0 0.0
    %1060 = vmatprep.subr.mxu0 0.0
    %1061 = vmatpush1.msra.mxu0 0.0
    %1062 = vmatprep.subr.mxu0 0.0
    %1063 = vmatpush1.msra.mxu0 0.0
    %1064 = vmatprep.subr.mxu0 0.0
    %1065 = vmatpush1.msra.mxu0 0.0
    %1066 = vmatprep.subr.mxu0 0.0
    %1067 = vmatpush1.msra.mxu0 0.0
    %1068 = vmatprep.subr.mxu0 0.0
    %1069 = vmatpush1.msra.mxu0 0.0
    %1070 = vmatprep.subr.mxu0 0.0
    %1071 = vmatpush1.msra.mxu0 0.0
    %1072 = vmatprep.subr.mxu0 0.0
    %1073 = vmatpush1.msra.mxu0 0.0
    %1074 = vmatprep.subr.mxu0 0.0
    %1075 = vmatpush1.msra.mxu0 0.0
    %1076 = vmatprep.subr.mxu0 0.0
    %1077 = vmatpush1.msra.mxu0 0.0
    %1078 = vmatprep.subr.mxu0 0.0
    %1079 = vmatpush1.msra.mxu0 0.0
    %1080 = vmatprep.subr.mxu0 0.0
    %1081 = vmatpush1.msra.mxu0 0.0
    %1082 = vmatprep.subr.mxu0 0.0
    %1083 = vmatpush1.msra.mxu0 0.0
    %1084 = vmatprep.subr.mxu0 0.0
    %1085 = vmatpush1.msra.mxu0 0.0
    %1086 = vmatprep.subr.mxu0 0.0
    %1087 = vmatpush1.msra.mxu0 0.0
    %1088 = vmatprep.subr.mxu0 0.0
    %1089 = vmatpush1.msra.mxu0 0.0
    %1090 = vmatprep.subr.mxu0 0.0
    %1091 = vmatpush1.msra.mxu0 0.0
    %1092 = vmatprep.mubr.f32.mxu0 0.0
    %1093 = vmatmul.mubr.f32.gmra.mrb[0].mxu0 %v1026
    %v1094 = vpop.f32.mrb[0].mxu0
    %v1095 = vadd.f32 0.0, %v1094
    %v1096 = vpop.f32.mrb[0].mxu0
    %1097 = vdwg.mxu0
    %v1098 = vadd.f32 %v1020, %v1095
    %v1099 = vadd.f32 %v1098, %v196
    %v1100 = vxor.u32 %v1099, 2147483648
    %v1101 = vmul.f32 %v1100, 1.442695
    %v1102 = vpow.pop %v1101
    %v1103 = vadd.f32 %v1102, 1.0
    %v1104 = vrcp.pop %v1103
    %v1105 = vmul.f32 1.0, %v1104
    %v1106 = vadd.f32 %v1020, %v207
    %v1107 = vadd.f32 %v1095, %v212
    %1109 = vrot.lane.b32.xlu0 %v1107, 96
    %v1110 = vpop.permute.xlu0 %1109
    %v1112 = vmul.f32 %v1105, %v1110
    %1114 = vrot.lane.b32.xlu0 %v1112, 32
    %v1115 = vpop.permute.xlu0 %1114
    %v1117 = vadd.f32 %v1106, %v1115
    %v1118 = vtanh.pop %v1117
    %v1119 = vsub.f32 1.0, %v1105
    %1121 = vrot.lane.b32.xlu0 %v1118, 112
    %v1122 = vpop.permute.xlu0 %1121
    %v1124 = vmul.f32 %v1119, %v1122
    %v1125 = vmul.f32 %v1105, %v947
    %v1126 = vadd.f32 %v1124, %v1125
    %v1127 = vrot.slane %v26, 6
    %v1128 = vrot.slane %v27, 5
    %v1129 = vsel %vm39, %v1128, %v1127
    %v1130 = vsel %vm41, %v1129, 0
    %1132 = vmatprep.subr.mxu0 0.0
    %1133 = vmatpush1.msra.mxu0 %v46
    %1134 = vmatprep.subr.mxu0 0.0
    %1135 = vmatpush1.msra.mxu0 0.0
    %1136 = vmatprep.subr.mxu0 0.0
    %1137 = vmatpush1.msra.mxu0 0.0
    %1138 = vmatprep.subr.mxu0 0.0
    %1139 = vmatpush1.msra.mxu0 0.0
    %1140 = vmatprep.subr.mxu0 0.0
    %1141 = vmatpush1.msra.mxu0 0.0
    %1142 = vmatprep.subr.mxu0 0.0
    %1143 = vmatpush1.msra.mxu0 0.0
    %1144 = vmatprep.subr.mxu0 0.0
    %1145 = vmatpush1.msra.mxu0 0.0
    %1146 = vmatprep.subr.mxu0 0.0
    %1147 = vmatpush1.msra.mxu0 0.0
    %1148 = vmatprep.subr.mxu0 0.0
    %1149 = vmatpush1.msra.mxu0 0.0
    %1150 = vmatprep.subr.mxu0 0.0
    %1151 = vmatpush1.msra.mxu0 0.0
    %1152 = vmatprep.subr.mxu0 0.0
    %1153 = vmatpush1.msra.mxu0 0.0
    %1154 = vmatprep.subr.mxu0 0.0
    %1155 = vmatpush1.msra.mxu0 0.0
    %1156 = vmatprep.subr.mxu0 0.0
    %1157 = vmatpush1.msra.mxu0 0.0
    %1158 = vmatprep.subr.mxu0 0.0
    %1159 = vmatpush1.msra.mxu0 0.0
    %1160 = vmatprep.subr.mxu0 0.0
    %1161 = vmatpush1.msra.mxu0 0.0
    %1162 = vmatprep.subr.mxu0 0.0
    %1163 = vmatpush1.msra.mxu0 0.0
    %1164 = vmatprep.subr.mxu0 0.0
    %1165 = vmatpush1.msra.mxu0 0.0
    %1166 = vmatprep.subr.mxu0 0.0
    %1167 = vmatpush1.msra.mxu0 0.0
    %1168 = vmatprep.subr.mxu0 0.0
    %1169 = vmatpush1.msra.mxu0 0.0
    %1170 = vmatprep.subr.mxu0 0.0
    %1171 = vmatpush1.msra.mxu0 0.0
    %1172 = vmatprep.subr.mxu0 0.0
    %1173 = vmatpush1.msra.mxu0 0.0
    %1174 = vmatprep.subr.mxu0 0.0
    %1175 = vmatpush1.msra.mxu0 0.0
    %1176 = vmatprep.subr.mxu0 0.0
    %1177 = vmatpush1.msra.mxu0 0.0
    %1178 = vmatprep.subr.mxu0 0.0
    %1179 = vmatpush1.msra.mxu0 0.0
    %1180 = vmatprep.subr.mxu0 0.0
    %1181 = vmatpush1.msra.mxu0 0.0
    %1182 = vmatprep.subr.mxu0 0.0
    %1183 = vmatpush1.msra.mxu0 0.0
    %1184 = vmatprep.subr.mxu0 0.0
    %1185 = vmatpush1.msra.mxu0 0.0
    %1186 = vmatprep.subr.mxu0 0.0
    %1187 = vmatpush1.msra.mxu0 0.0
    %1188 = vmatprep.subr.mxu0 0.0
    %1189 = vmatpush1.msra.mxu0 0.0
    %1190 = vmatprep.subr.mxu0 0.0
    %1191 = vmatpush1.msra.mxu0 0.0
    %1192 = vmatprep.subr.mxu0 0.0
    %1193 = vmatpush1.msra.mxu0 0.0
    %1194 = vmatprep.subr.mxu0 0.0
    %1195 = vmatpush1.msra.mxu0 0.0
    %1196 = vmatprep.mubr.f32.mxu0 0.0
    %1197 = vmatmul.mubr.f32.gmra.mrb[0].mxu0 %v1130
    %v1198 = vpop.f32.mrb[0].mxu0
    %v1199 = vadd.f32 0.0, %v1198
    %v1200 = vpop.f32.mrb[0].mxu0
    %1201 = vdwg.mxu0
    %1203 = vrot.lane.b32.xlu0 %v1126, 112
    %v1204 = vpop.permute.xlu0 %1203
    %v1205 = vsel %vm118, %v1204, 0
    %1207 = vmatprep.subr.mxu0 0.0
    %1208 = vmatpush1.msra.mxu0 %v29
    %1209 = vmatprep.subr.mxu0 0.0
    %1210 = vmatpush1.msra.mxu0 %v30
    %1211 = vmatprep.subr.mxu0 0.0
    %1212 = vmatpush1.msra.mxu0 0.0
    %1213 = vmatprep.subr.mxu0 0.0
    %1214 = vmatpush1.msra.mxu0 0.0
    %1215 = vmatprep.subr.mxu0 0.0
    %1216 = vmatpush1.msra.mxu0 0.0
    %1217 = vmatprep.subr.mxu0 0.0
    %1218 = vmatpush1.msra.mxu0 0.0
    %1219 = vmatprep.subr.mxu0 0.0
    %1220 = vmatpush1.msra.mxu0 0.0
    %1221 = vmatprep.subr.mxu0 0.0
    %1222 = vmatpush1.msra.mxu0 0.0
    %1223 = vmatprep.subr.mxu0 0.0
    %1224 = vmatpush1.msra.mxu0 0.0
    %1225 = vmatprep.subr.mxu0 0.0
    %1226 = vmatpush1.msra.mxu0 0.0
    %1227 = vmatprep.subr.mxu0 0.0
    %1228 = vmatpush1.msra.mxu0 0.0
    %1229 = vmatprep.subr.mxu0 0.0
    %1230 = vmatpush1.msra.mxu0 0.0
    %1231 = vmatprep.subr.mxu0 0.0
    %1232 = vmatpush1.msra.mxu0 0.0
    %1233 = vmatprep.subr.mxu0 0.0
    %1234 = vmatpush1.msra.mxu0 0.0
    %1235 = vmatprep.subr.mxu0 0.0
    %1236 = vmatpush1.msra.mxu0 0.0
    %1237 = vmatprep.subr.mxu0 0.0
    %1238 = vmatpush1.msra.mxu0 0.0
    %1239 = vmatprep.subr.mxu0 0.0
    %1240 = vmatpush1.msra.mxu0 0.0
    %1241 = vmatprep.subr.mxu0 0.0
    %1242 = vmatpush1.msra.mxu0 0.0
    %1243 = vmatprep.subr.mxu0 0.0
    %1244 = vmatpush1.msra.mxu0 0.0
    %1245 = vmatprep.subr.mxu0 0.0
    %1246 = vmatpush1.msra.mxu0 0.0
    %1247 = vmatprep.subr.mxu0 0.0
    %1248 = vmatpush1.msra.mxu0 0.0
    %1249 = vmatprep.subr.mxu0 0.0
    %1250 = vmatpush1.msra.mxu0 0.0
    %1251 = vmatprep.subr.mxu0 0.0
    %1252 = vmatpush1.msra.mxu0 0.0
    %1253 = vmatprep.subr.mxu0 0.0
    %1254 = vmatpush1.msra.mxu0 0.0
    %1255 = vmatprep.subr.mxu0 0.0
    %1256 = vmatpush1.msra.mxu0 0.0
    %1257 = vmatprep.subr.mxu0 0.0
    %1258 = vmatpush1.msra.mxu0 0.0
    %1259 = vmatprep.subr.mxu0 0.0
    %1260 = vmatpush1.msra.mxu0 0.0
    %1261 = vmatprep.subr.mxu0 0.0
    %1262 = vmatpush1.msra.mxu0 0.0
    %1263 = vmatprep.subr.mxu0 0.0
    %1264 = vmatpush1.msra.mxu0 0.0
    %1265 = vmatprep.subr.mxu0 0.0
    %1266 = vmatpush1.msra.mxu0 0.0
    %1267 = vmatprep.subr.mxu0 0.0
    %1268 = vmatpush1.msra.mxu0 0.0
    %1269 = vmatprep.subr.mxu0 0.0
    %1270 = vmatpush1.msra.mxu0 0.0
    %1271 = vmatprep.mubr.f32.mxu0 0.0
    %1272 = vmatmul.mubr.f32.gmra.mrb[0].mxu0 %v1205
    %v1273 = vpop.f32.mrb[0].mxu0
    %v1274 = vadd.f32 0.0, %v1273
    %v1275 = vpop.f32.mrb[0].mxu0
    %1276 = vdwg.mxu0
    %v1277 = vadd.f32 %v1199, %v1274
    %v1278 = vadd.f32 %v1277, %v196
    %v1279 = vxor.u32 %v1278, 2147483648
    %v1280 = vmul.f32 %v1279, 1.442695
    %v1281 = vpow.pop %v1280
    %v1282 = vadd.f32 %v1281, 1.0
    %v1283 = vrcp.pop %v1282
    %v1284 = vmul.f32 1.0, %v1283
    %v1285 = vadd.f32 %v1199, %v207
    %v1286 = vadd.f32 %v1274, %v212
    %1288 = vrot.lane.b32.xlu0 %v1286, 96
    %v1289 = vpop.permute.xlu0 %1288
    %v1291 = vmul.f32 %v1284, %v1289
    %1293 = vrot.lane.b32.xlu0 %v1291, 32
    %v1294 = vpop.permute.xlu0 %1293
    %v1296 = vadd.f32 %v1285, %v1294
    %v1297 = vtanh.pop %v1296
    %v1298 = vsub.f32 1.0, %v1284
    %1300 = vrot.lane.b32.xlu0 %v1297, 112
    %v1301 = vpop.permute.xlu0 %1300
    %v1303 = vmul.f32 %v1298, %v1301
    %v1304 = vmul.f32 %v1284, %v1126
    %v1305 = vadd.f32 %v1303, %v1304
    %v1306 = vrot.slane %v26, 7
    %v1307 = vrot.slane %v27, 6
    %v1308 = vsel %vm39, %v1307, %v1306
    %v1309 = vsel %vm41, %v1308, 0
    %1311 = vmatprep.subr.mxu0 0.0
    %1312 = vmatpush1.msra.mxu0 %v46
    %1313 = vmatprep.subr.mxu0 0.0
    %1314 = vmatpush1.msra.mxu0 0.0
    %1315 = vmatprep.subr.mxu0 0.0
    %1316 = vmatpush1.msra.mxu0 0.0
    %1317 = vmatprep.subr.mxu0 0.0
    %1318 = vmatpush1.msra.mxu0 0.0
    %1319 = vmatprep.subr.mxu0 0.0
    %1320 = vmatpush1.msra.mxu0 0.0
    %1321 = vmatprep.subr.mxu0 0.0
    %1322 = vmatpush1.msra.mxu0 0.0
    %1323 = vmatprep.subr.mxu0 0.0
    %1324 = vmatpush1.msra.mxu0 0.0
    %1325 = vmatprep.subr.mxu0 0.0
    %1326 = vmatpush1.msra.mxu0 0.0
    %1327 = vmatprep.subr.mxu0 0.0
    %1328 = vmatpush1.msra.mxu0 0.0
    %1329 = vmatprep.subr.mxu0 0.0
    %1330 = vmatpush1.msra.mxu0 0.0
    %1331 = vmatprep.subr.mxu0 0.0
    %1332 = vmatpush1.msra.mxu0 0.0
    %1333 = vmatprep.subr.mxu0 0.0
    %1334 = vmatpush1.msra.mxu0 0.0
    %1335 = vmatprep.subr.mxu0 0.0
    %1336 = vmatpush1.msra.mxu0 0.0
    %1337 = vmatprep.subr.mxu0 0.0
    %1338 = vmatpush1.msra.mxu0 0.0
    %1339 = vmatprep.subr.mxu0 0.0
    %1340 = vmatpush1.msra.mxu0 0.0
    %1341 = vmatprep.subr.mxu0 0.0
    %1342 = vmatpush1.msra.mxu0 0.0
    %1343 = vmatprep.subr.mxu0 0.0
    %1344 = vmatpush1.msra.mxu0 0.0
    %1345 = vmatprep.subr.mxu0 0.0
    %1346 = vmatpush1.msra.mxu0 0.0
    %1347 = vmatprep.subr.mxu0 0.0
    %1348 = vmatpush1.msra.mxu0 0.0
    %1349 = vmatprep.subr.mxu0 0.0
    %1350 = vmatpush1.msra.mxu0 0.0
    %1351 = vmatprep.subr.mxu0 0.0
    %1352 = vmatpush1.msra.mxu0 0.0
    %1353 = vmatprep.subr.mxu0 0.0
    %1354 = vmatpush1.msra.mxu0 0.0
    %1355 = vmatprep.subr.mxu0 0.0
    %1356 = vmatpush1.msra.mxu0 0.0
    %1357 = vmatprep.subr.mxu0 0.0
    %1358 = vmatpush1.msra.mxu0 0.0
    %1359 = vmatprep.subr.mxu0 0.0
    %1360 = vmatpush1.msra.mxu0 0.0
    %1361 = vmatprep.subr.mxu0 0.0
    %1362 = vmatpush1.msra.mxu0 0.0
    %1363 = vmatprep.subr.mxu0 0.0
    %1364 = vmatpush1.msra.mxu0 0.0
    %1365 = vmatprep.subr.mxu0 0.0
    %1366 = vmatpush1.msra.mxu0 0.0
    %1367 = vmatprep.subr.mxu0 0.0
    %1368 = vmatpush1.msra.mxu0 0.0
    %1369 = vmatprep.subr.mxu0 0.0
    %1370 = vmatpush1.msra.mxu0 0.0
    %1371 = vmatprep.subr.mxu0 0.0
    %1372 = vmatpush1.msra.mxu0 0.0
    %1373 = vmatprep.subr.mxu0 0.0
    %1374 = vmatpush1.msra.mxu0 0.0
    %1375 = vmatprep.mubr.f32.mxu0 0.0
    %1376 = vmatmul.mubr.f32.gmra.mrb[0].mxu0 %v1309
    %v1377 = vpop.f32.mrb[0].mxu0
    %v1378 = vadd.f32 0.0, %v1377
    %v1379 = vpop.f32.mrb[0].mxu0
    %1380 = vdwg.mxu0
    %1382 = vrot.lane.b32.xlu0 %v1305, 112
    %v1383 = vpop.permute.xlu0 %1382
    %v1384 = vsel %vm118, %v1383, 0
    %1386 = vmatprep.subr.mxu0 0.0
    %1387 = vmatpush1.msra.mxu0 %v29
    %1388 = vmatprep.subr.mxu0 0.0
    %1389 = vmatpush1.msra.mxu0 %v30
    %1390 = vmatprep.subr.mxu0 0.0
    %1391 = vmatpush1.msra.mxu0 0.0
    %1392 = vmatprep.subr.mxu0 0.0
    %1393 = vmatpush1.msra.mxu0 0.0
    %1394 = vmatprep.subr.mxu0 0.0
    %1395 = vmatpush1.msra.mxu0 0.0
    %1396 = vmatprep.subr.mxu0 0.0
    %1397 = vmatpush1.msra.mxu0 0.0
    %1398 = vmatprep.subr.mxu0 0.0
    %1399 = vmatpush1.msra.mxu0 0.0
    %1400 = vmatprep.subr.mxu0 0.0
    %1401 = vmatpush1.msra.mxu0 0.0
    %1402 = vmatprep.subr.mxu0 0.0
    %1403 = vmatpush1.msra.mxu0 0.0
    %1404 = vmatprep.subr.mxu0 0.0
    %1405 = vmatpush1.msra.mxu0 0.0
    %1406 = vmatprep.subr.mxu0 0.0
    %1407 = vmatpush1.msra.mxu0 0.0
    %1408 = vmatprep.subr.mxu0 0.0
    %1409 = vmatpush1.msra.mxu0 0.0
    %1410 = vmatprep.subr.mxu0 0.0
    %1411 = vmatpush1.msra.mxu0 0.0
    %1412 = vmatprep.subr.mxu0 0.0
    %1413 = vmatpush1.msra.mxu0 0.0
    %1414 = vmatprep.subr.mxu0 0.0
    %1415 = vmatpush1.msra.mxu0 0.0
    %1416 = vmatprep.subr.mxu0 0.0
    %1417 = vmatpush1.msra.mxu0 0.0
    %1418 = vmatprep.subr.mxu0 0.0
    %1419 = vmatpush1.msra.mxu0 0.0
    %1420 = vmatprep.subr.mxu0 0.0
    %1421 = vmatpush1.msra.mxu0 0.0
    %1422 = vmatprep.subr.mxu0 0.0
    %1423 = vmatpush1.msra.mxu0 0.0
    %1424 = vmatprep.subr.mxu0 0.0
    %1425 = vmatpush1.msra.mxu0 0.0
    %1426 = vmatprep.subr.mxu0 0.0
    %1427 = vmatpush1.msra.mxu0 0.0
    %1428 = vmatprep.subr.mxu0 0.0
    %1429 = vmatpush1.msra.mxu0 0.0
    %1430 = vmatprep.subr.mxu0 0.0
    %1431 = vmatpush1.msra.mxu0 0.0
    %1432 = vmatprep.subr.mxu0 0.0
    %1433 = vmatpush1.msra.mxu0 0.0
    %1434 = vmatprep.subr.mxu0 0.0
    %1435 = vmatpush1.msra.mxu0 0.0
    %1436 = vmatprep.subr.mxu0 0.0
    %1437 = vmatpush1.msra.mxu0 0.0
    %1438 = vmatprep.subr.mxu0 0.0
    %1439 = vmatpush1.msra.mxu0 0.0
    %1440 = vmatprep.subr.mxu0 0.0
    %1441 = vmatpush1.msra.mxu0 0.0
    %1442 = vmatprep.subr.mxu0 0.0
    %1443 = vmatpush1.msra.mxu0 0.0
    %1444 = vmatprep.subr.mxu0 0.0
    %1445 = vmatpush1.msra.mxu0 0.0
    %1446 = vmatprep.subr.mxu0 0.0
    %1447 = vmatpush1.msra.mxu0 0.0
    %1448 = vmatprep.subr.mxu0 0.0
    %1449 = vmatpush1.msra.mxu0 0.0
    %1450 = vmatprep.mubr.f32.mxu0 0.0
    %1451 = vmatmul.mubr.f32.gmra.mrb[0].mxu0 %v1384
    %v1452 = vpop.f32.mrb[0].mxu0
    %v1453 = vadd.f32 0.0, %v1452
    %v1454 = vpop.f32.mrb[0].mxu0
    %1455 = vdwg.mxu0
    %v1456 = vadd.f32 %v1378, %v1453
    %v1457 = vadd.f32 %v1456, %v196
    %v1458 = vxor.u32 %v1457, 2147483648
    %v1459 = vmul.f32 %v1458, 1.442695
    %v1460 = vpow.pop %v1459
    %v1461 = vadd.f32 %v1460, 1.0
    %v1462 = vrcp.pop %v1461
    %v1463 = vmul.f32 1.0, %v1462
    %v1464 = vadd.f32 %v1378, %v207
    %v1465 = vadd.f32 %v1453, %v212
    %1467 = vrot.lane.b32.xlu0 %v1465, 96
    %v1468 = vpop.permute.xlu0 %1467
    %v1470 = vmul.f32 %v1463, %v1468
    %1472 = vrot.lane.b32.xlu0 %v1470, 32
    %v1473 = vpop.permute.xlu0 %1472
    %v1475 = vadd.f32 %v1464, %v1473
    %v1476 = vtanh.pop %v1475
    %v1477 = vsub.f32 1.0, %v1463
    %1479 = vrot.lane.b32.xlu0 %v1476, 112
    %v1480 = vpop.permute.xlu0 %1479
    %v1482 = vmul.f32 %v1477, %v1480
    %v1483 = vmul.f32 %v1463, %v1305
    %v1484 = vadd.f32 %v1482, %v1483
    %1486 = vrot.lane.b32.xlu0 %v1484, 112
    %v1487 = vpop.permute.xlu0 %1486
    %vm1489 = vcmask 123904
    %1490 = vst.msk [vmem:[#allocation5] sm:$0x3] %vm1489, %v1487
    %s1491 = scalar_lea.vmem [#allocation2], 40
    %v1492 = vld [vmem:[%s1491] sm:$0xff]
    %v1493 = vld [vmem:[%s1491 + $0x8] sm:$0xff]
    %v1494 = vld [vmem:[%s1491 + $0x10] sm:$0xff]
    %v1495 = vld [vmem:[%s1491 + $0x18] sm:$0xff]
    %v1496 = vld [vmem:[%s1491 + $0x20] sm:$0x3]
    %v1498 = vrot.slane %v1496, 1
    %v1500 = vadd.f32 %v1496, %v1498
    %1501 = vmatprep.subr.mxu0 0.0
    %1502 = vmatpush1.msra.mxu0 %v1492
    %1503 = vmatprep.subr.mxu0 0.0
    %1504 = vmatpush1.msra.mxu0 %v1493
    %1505 = vmatprep.subr.mxu0 0.0
    %1506 = vmatpush1.msra.mxu0 0.0
    %1507 = vmatprep.subr.mxu0 0.0
    %1508 = vmatpush1.msra.mxu0 0.0
    %1509 = vmatprep.subr.mxu0 0.0
    %1510 = vmatpush1.msra.mxu0 0.0
    %1511 = vmatprep.subr.mxu0 0.0
    %1512 = vmatpush1.msra.mxu0 0.0
    %1513 = vmatprep.subr.mxu0 0.0
    %1514 = vmatpush1.msra.mxu0 0.0
    %1515 = vmatprep.subr.mxu0 0.0
    %1516 = vmatpush1.msra.mxu0 0.0
    %1517 = vmatprep.subr.mxu0 0.0
    %1518 = vmatpush1.msra.mxu0 0.0
    %1519 = vmatprep.subr.mxu0 0.0
    %1520 = vmatpush1.msra.mxu0 0.0
    %1521 = vmatprep.subr.mxu0 0.0
    %1522 = vmatpush1.msra.mxu0 0.0
    %1523 = vmatprep.subr.mxu0 0.0
    %1524 = vmatpush1.msra.mxu0 0.0
    %1525 = vmatprep.subr.mxu0 0.0
    %1526 = vmatpush1.msra.mxu0 0.0
    %1527 = vmatprep.subr.mxu0 0.0
    %1528 = vmatpush1.msra.mxu0 0.0
    %1529 = vmatprep.subr.mxu0 0.0
    %1530 = vmatpush1.msra.mxu0 0.0
    %1531 = vmatprep.subr.mxu0 0.0
    %1532 = vmatpush1.msra.mxu0 0.0
    %1533 = vmatprep.subr.mxu0 0.0
    %1534 = vmatpush1.msra.mxu0 0.0
    %1535 = vmatprep.subr.mxu0 0.0
    %1536 = vmatpush1.msra.mxu0 0.0
    %1537 = vmatprep.subr.mxu0 0.0
    %1538 = vmatpush1.msra.mxu0 0.0
    %1539 = vmatprep.subr.mxu0 0.0
    %1540 = vmatpush1.msra.mxu0 0.0
    %1541 = vmatprep.subr.mxu0 0.0
    %1542 = vmatpush1.msra.mxu0 0.0
    %1543 = vmatprep.subr.mxu0 0.0
    %1544 = vmatpush1.msra.mxu0 0.0
    %1545 = vmatprep.subr.mxu0 0.0
    %1546 = vmatpush1.msra.mxu0 0.0
    %1547 = vmatprep.subr.mxu0 0.0
    %1548 = vmatpush1.msra.mxu0 0.0
    %1549 = vmatprep.subr.mxu0 0.0
    %1550 = vmatpush1.msra.mxu0 0.0
    %1551 = vmatprep.subr.mxu0 0.0
    %1552 = vmatpush1.msra.mxu0 0.0
    %1553 = vmatprep.subr.mxu0 0.0
    %1554 = vmatpush1.msra.mxu0 0.0
    %1555 = vmatprep.subr.mxu0 0.0
    %1556 = vmatpush1.msra.mxu0 0.0
    %1557 = vmatprep.subr.mxu0 0.0
    %1558 = vmatpush1.msra.mxu0 0.0
    %1559 = vmatprep.subr.mxu0 0.0
    %1560 = vmatpush1.msra.mxu0 0.0
    %1561 = vmatprep.subr.mxu0 0.0
    %1562 = vmatpush1.msra.mxu0 0.0
    %1563 = vmatprep.subr.mxu0 0.0
    %1564 = vmatpush1.msra.mxu0 0.0
    %1565 = vmatprep.mubr.f32.mxu0 0.0
    %1566 = vmatmul.mubr.f32.gmra.mrb[0].mxu0 %v310
    %v1567 = vpop.f32.mrb[0].mxu0
    %v1568 = vadd.f32 0.0, %v1567
    %v1569 = vpop.f32.mrb[0].mxu0
    %1570 = vdwg.mxu0
    %1571 = vmatprep.subr.mxu0 0.0
    %1572 = vmatpush1.msra.mxu0 %v1494
    %1573 = vmatprep.subr.mxu0 0.0
    %1574 = vmatpush1.msra.mxu0 %v1495
    %1575 = vmatprep.subr.mxu0 0.0
    %1576 = vmatpush1.msra.mxu0 0.0
    %1577 = vmatprep.subr.mxu0 0.0
    %1578 = vmatpush1.msra.mxu0 0.0
    %1579 = vmatprep.subr.mxu0 0.0
    %1580 = vmatpush1.msra.mxu0 0.0
    %1581 = vmatprep.subr.mxu0 0.0
    %1582 = vmatpush1.msra.mxu0 0.0
    %1583 = vmatprep.subr.mxu0 0.0
    %1584 = vmatpush1.msra.mxu0 0.0
    %1585 = vmatprep.subr.mxu0 0.0
    %1586 = vmatpush1.msra.mxu0 0.0
    %1587 = vmatprep.subr.mxu0 0.0
    %1588 = vmatpush1.msra.mxu0 0.0
    %1589 = vmatprep.subr.mxu0 0.0
    %1590 = vmatpush1.msra.mxu0 0.0
    %1591 = vmatprep.subr.mxu0 0.0
    %1592 = vmatpush1.msra.mxu0 0.0
    %1593 = vmatprep.subr.mxu0 0.0
    %1594 = vmatpush1.msra.mxu0 0.0
    %1595 = vmatprep.subr.mxu0 0.0
    %1596 = vmatpush1.msra.mxu0 0.0
    %1597 = vmatprep.subr.mxu0 0.0
    %1598 = vmatpush1.msra.mxu0 0.0
    %1599 = vmatprep.subr.mxu0 0.0
    %1600 = vmatpush1.msra.mxu0 0.0
    %1601 = vmatprep.subr.mxu0 0.0
    %1602 = vmatpush1.msra.mxu0 0.0
    %1603 = vmatprep.subr.mxu0 0.0
    %1604 = vmatpush1.msra.mxu0 0.0
    %1605 = vmatprep.subr.mxu0 0.0
    %1606 = vmatpush1.msra.mxu0 0.0
    %1607 = vmatprep.subr.mxu0 0.0
    %1608 = vmatpush1.msra.mxu0 0.0
    %1609 = vmatprep.subr.mxu0 0.0
    %1610 = vmatpush1.msra.mxu0 0.0
    %1611 = vmatprep.subr.mxu0 0.0
    %1612 = vmatpush1.msra.mxu0 0.0
    %1613 = vmatprep.subr.mxu0 0.0
    %1614 = vmatpush1.msra.mxu0 0.0
    %1615 = vmatprep.subr.mxu0 0.0
    %1616 = vmatpush1.msra.mxu0 0.0
    %1617 = vmatprep.subr.mxu0 0.0
    %1618 = vmatpush1.msra.mxu0 0.0
    %1619 = vmatprep.subr.mxu0 0.0
    %1620 = vmatpush1.msra.mxu0 0.0
    %1621 = vmatprep.subr.mxu0 0.0
    %1622 = vmatpush1.msra.mxu0 0.0
    %1623 = vmatprep.subr.mxu0 0.0
    %1624 = vmatpush1.msra.mxu0 0.0
    %1625 = vmatprep.subr.mxu0 0.0
    %1626 = vmatpush1.msra.mxu0 0.0
    %1627 = vmatprep.subr.mxu0 0.0
    %1628 = vmatpush1.msra.mxu0 0.0
    %1629 = vmatprep.subr.mxu0 0.0
    %1630 = vmatpush1.msra.mxu0 0.0
    %1631 = vmatprep.subr.mxu0 0.0
    %1632 = vmatpush1.msra.mxu0 0.0
    %1633 = vmatprep.subr.mxu0 0.0
    %1634 = vmatpush1.msra.mxu0 0.0
    %1635 = vmatprep.mubr.f32.mxu0 0.0
    %1636 = vmatmul.mubr.f32.gmra.mrb[0].mxu0 %v120
    %v1637 = vpop.f32.mrb[0].mxu0
    %v1638 = vadd.f32 0.0, %v1637
    %v1639 = vpop.f32.mrb[0].mxu0
    %1640 = vdwg.mxu0
    %v1641 = vadd.f32 %v1568, %v1638
    %v1642 = vlaneseq
    %v1643 = vshrl.u32 %v1642, 7
    %v1644 = vsub.s32 0, %v1643
    %v1645 = vrot.slane %v1500, %v1644
    %v1646 = vadd.f32 %v1641, %v1645
    %v1647 = vxor.u32 %v1646, 2147483648
    %v1648 = vmul.f32 %v1647, 1.442695
    %v1649 = vpow.pop %v1648
    %v1650 = vadd.f32 %v1649, 1.0
    %v1651 = vrcp.pop %v1650
    %v1652 = vmul.f32 1.0, %v1651
    %v1653 = vlaneseq
    %v1654 = vshrl.u32 %v1653, 7
    %v1655 = vsub.s32 0, %v1654
    %v1656 = vrot.slane %v1496, %v1655
    %v1657 = vadd.f32 %v1568, %v1656
    %v1658 = vlaneseq
    %v1659 = vshrl.u32 %v1658, 7
    %v1660 = vsub.s32 1, %v1659
    %v1661 = vrot.slane %v1496, %v1660
    %v1662 = vadd.f32 %v1638, %v1661
    %1664 = vrot.lane.b32.xlu0 %v1662, 96
    %v1665 = vpop.permute.xlu0 %1664
    %v1667 = vmul.f32 %v1652, %v1665
    %1669 = vrot.lane.b32.xlu0 %v1667, 32
    %v1670 = vpop.permute.xlu0 %1669
    %v1672 = vadd.f32 %v1657, %v1670
    %v1673 = vtanh.pop %v1672
    %v1674 = vsub.f32 1.0, %v1652
    %1676 = vrot.lane.b32.xlu0 %v1673, 112
    %v1677 = vpop.permute.xlu0 %1676
    %v1679 = vmul.f32 %v1674, %v1677
    %v1680 = vmul.f32 %v1652, 0.0
    %v1681 = vadd.f32 %v1679, %v1680
    %1682 = vmatprep.subr.mxu0 0.0
    %1683 = vmatpush1.msra.mxu0 %v1492
    %1684 = vmatprep.subr.mxu0 0.0
    %1685 = vmatpush1.msra.mxu0 %v1493
    %1686 = vmatprep.subr.mxu0 0.0
    %1687 = vmatpush1.msra.mxu0 0.0
    %1688 = vmatprep.subr.mxu0 0.0
    %1689 = vmatpush1.msra.mxu0 0.0
    %1690 = vmatprep.subr.mxu0 0.0
    %1691 = vmatpush1.msra.mxu0 0.0
    %1692 = vmatprep.subr.mxu0 0.0
    %1693 = vmatpush1.msra.mxu0 0.0
    %1694 = vmatprep.subr.mxu0 0.0
    %1695 = vmatpush1.msra.mxu0 0.0
    %1696 = vmatprep.subr.mxu0 0.0
    %1697 = vmatpush1.msra.mxu0 0.0
    %1698 = vmatprep.subr.mxu0 0.0
    %1699 = vmatpush1.msra.mxu0 0.0
    %1700 = vmatprep.subr.mxu0 0.0
    %1701 = vmatpush1.msra.mxu0 0.0
    %1702 = vmatprep.subr.mxu0 0.0
    %1703 = vmatpush1.msra.mxu0 0.0
    %1704 = vmatprep.subr.mxu0 0.0
    %1705 = vmatpush1.msra.mxu0 0.0
    %1706 = vmatprep.subr.mxu0 0.0
    %1707 = vmatpush1.msra.mxu0 0.0
    %1708 = vmatprep.subr.mxu0 0.0
    %1709 = vmatpush1.msra.mxu0 0.0
    %1710 = vmatprep.subr.mxu0 0.0
    %1711 = vmatpush1.msra.mxu0 0.0
    %1712 = vmatprep.subr.mxu0 0.0
    %1713 = vmatpush1.msra.mxu0 0.0
    %1714 = vmatprep.subr.mxu0 0.0
    %1715 = vmatpush1.msra.mxu0 0.0
    %1716 = vmatprep.subr.mxu0 0.0
    %1717 = vmatpush1.msra.mxu0 0.0
    %1718 = vmatprep.subr.mxu0 0.0
    %1719 = vmatpush1.msra.mxu0 0.0
    %1720 = vmatprep.subr.mxu0 0.0
    %1721 = vmatpush1.msra.mxu0 0.0
    %1722 = vmatprep.subr.mxu0 0.0
    %1723 = vmatpush1.msra.mxu0 0.0
    %1724 = vmatprep.subr.mxu0 0.0
    %1725 = vmatpush1.msra.mxu0 0.0
    %1726 = vmatprep.subr.mxu0 0.0
    %1727 = vmatpush1.msra.mxu0 0.0
    %1728 = vmatprep.subr.mxu0 0.0
    %1729 = vmatpush1.msra.mxu0 0.0
    %1730 = vmatprep.subr.mxu0 0.0
    %1731 = vmatpush1.msra.mxu0 0.0
    %1732 = vmatprep.subr.mxu0 0.0
    %1733 = vmatpush1.msra.mxu0 0.0
    %1734 = vmatprep.subr.mxu0 0.0
    %1735 = vmatpush1.msra.mxu0 0.0
    %1736 = vmatprep.subr.mxu0 0.0
    %1737 = vmatpush1.msra.mxu0 0.0
    %1738 = vmatprep.subr.mxu0 0.0
    %1739 = vmatpush1.msra.mxu0 0.0
    %1740 = vmatprep.subr.mxu0 0.0
    %1741 = vmatpush1.msra.mxu0 0.0
    %1742 = vmatprep.subr.mxu0 0.0
    %1743 = vmatpush1.msra.mxu0 0.0
    %1744 = vmatprep.subr.mxu0 0.0
    %1745 = vmatpush1.msra.mxu0 0.0
    %1746 = vmatprep.mubr.f32.mxu0 0.0
    %1747 = vmatmul.mubr.f32.gmra.mrb[0].mxu0 %v489
    %v1748 = vpop.f32.mrb[0].mxu0
    %v1749 = vadd.f32 0.0, %v1748
    %v1750 = vpop.f32.mrb[0].mxu0
    %1751 = vdwg.mxu0
    %1753 = vrot.lane.b32.xlu0 %v1681, 112
    %v1754 = vpop.permute.xlu0 %1753
    %v1755 = vsel %vm118, %v1754, 0
    %1757 = vmatprep.subr.mxu0 0.0
    %1758 = vmatpush1.msra.mxu0 %v1494
    %1759 = vmatprep.subr.mxu0 0.0
    %1760 = vmatpush1.msra.mxu0 %v1495
    %1761 = vmatprep.subr.mxu0 0.0
    %1762 = vmatpush1.msra.mxu0 0.0
    %1763 = vmatprep.subr.mxu0 0.0
    %1764 = vmatpush1.msra.mxu0 0.0
    %1765 = vmatprep.subr.mxu0 0.0
    %1766 = vmatpush1.msra.mxu0 0.0
    %1767 = vmatprep.subr.mxu0 0.0
    %1768 = vmatpush1.msra.mxu0 0.0
    %1769 = vmatprep.subr.mxu0 0.0
    %1770 = vmatpush1.msra.mxu0 0.0
    %1771 = vmatprep.subr.mxu0 0.0
    %1772 = vmatpush1.msra.mxu0 0.0
    %1773 = vmatprep.subr.mxu0 0.0
    %1774 = vmatpush1.msra.mxu0 0.0
    %1775 = vmatprep.subr.mxu0 0.0
    %1776 = vmatpush1.msra.mxu0 0.0
    %1777 = vmatprep.subr.mxu0 0.0
    %1778 = vmatpush1.msra.mxu0 0.0
    %1779 = vmatprep.subr.mxu0 0.0
    %1780 = vmatpush1.msra.mxu0 0.0
    %1781 = vmatprep.subr.mxu0 0.0
    %1782 = vmatpush1.msra.mxu0 0.0
    %1783 = vmatprep.subr.mxu0 0.0
    %1784 = vmatpush1.msra.mxu0 0.0
    %1785 = vmatprep.subr.mxu0 0.0
    %1786 = vmatpush1.msra.mxu0 0.0
    %1787 = vmatprep.subr.mxu0 0.0
    %1788 = vmatpush1.msra.mxu0 0.0
    %1789 = vmatprep.subr.mxu0 0.0
    %1790 = vmatpush1.msra.mxu0 0.0
    %1791 = vmatprep.subr.mxu0 0.0
    %1792 = vmatpush1.msra.mxu0 0.0
    %1793 = vmatprep.subr.mxu0 0.0
    %1794 = vmatpush1.msra.mxu0 0.0
    %1795 = vmatprep.subr.mxu0 0.0
    %1796 = vmatpush1.msra.mxu0 0.0
    %1797 = vmatprep.subr.mxu0 0.0
    %1798 = vmatpush1.msra.mxu0 0.0
    %1799 = vmatprep.subr.mxu0 0.0
    %1800 = vmatpush1.msra.mxu0 0.0
    %1801 = vmatprep.subr.mxu0 0.0
    %1802 = vmatpush1.msra.mxu0 0.0
    %1803 = vmatprep.subr.mxu0 0.0
    %1804 = vmatpush1.msra.mxu0 0.0
    %1805 = vmatprep.subr.mxu0 0.0
    %1806 = vmatpush1.msra.mxu0 0.0
    %1807 = vmatprep.subr.mxu0 0.0
    %1808 = vmatpush1.msra.mxu0 0.0
    %1809 = vmatprep.subr.mxu0 0.0
    %1810 = vmatpush1.msra.mxu0 0.0
    %1811 = vmatprep.subr.mxu0 0.0
    %1812 = vmatpush1.msra.mxu0 0.0
    %1813 = vmatprep.subr.mxu0 0.0
    %1814 = vmatpush1.msra.mxu0 0.0
    %1815 = vmatprep.subr.mxu0 0.0
    %1816 = vmatpush1.msra.mxu0 0.0
    %1817 = vmatprep.subr.mxu0 0.0
    %1818 = vmatpush1.msra.mxu0 0.0
    %1819 = vmatprep.subr.mxu0 0.0
    %1820 = vmatpush1.msra.mxu0 0.0
    %1821 = vmatprep.mubr.f32.mxu0 0.0
    %1822 = vmatmul.mubr.f32.gmra.mrb[0].mxu0 %v1755
    %v1823 = vpop.f32.mrb[0].mxu0
    %v1824 = vadd.f32 0.0, %v1823
    %v1825 = vpop.f32.mrb[0].mxu0
    %1826 = vdwg.mxu0
    %v1827 = vadd.f32 %v1749, %v1824
    %v1828 = vadd.f32 %v1827, %v1645
    %v1829 = vxor.u32 %v1828, 2147483648
    %v1830 = vmul.f32 %v1829, 1.442695
    %v1831 = vpow.pop %v1830
    %v1832 = vadd.f32 %v1831, 1.0
    %v1833 = vrcp.pop %v1832
    %v1834 = vmul.f32 1.0, %v1833
    %v1835 = vadd.f32 %v1749, %v1656
    %v1836 = vadd.f32 %v1824, %v1661
    %1838 = vrot.lane.b32.xlu0 %v1836, 96
    %v1839 = vpop.permute.xlu0 %1838
    %v1841 = vmul.f32 %v1834, %v1839
    %1843 = vrot.lane.b32.xlu0 %v1841, 32
    %v1844 = vpop.permute.xlu0 %1843
    %v1846 = vadd.f32 %v1835, %v1844
    %v1847 = vtanh.pop %v1846
    %v1848 = vsub.f32 1.0, %v1834
    %1850 = vrot.lane.b32.xlu0 %v1847, 112
    %v1851 = vpop.permute.xlu0 %1850
    %v1853 = vmul.f32 %v1848, %v1851
    %v1854 = vmul.f32 %v1834, %v1681
    %v1855 = vadd.f32 %v1853, %v1854
    %1856 = vmatprep.subr.mxu0 0.0
    %1857 = vmatpush1.msra.mxu0 %v1492
    %1858 = vmatprep.subr.mxu0 0.0
    %1859 = vmatpush1.msra.mxu0 %v1493
    %1860 = vmatprep.subr.mxu0 0.0
    %1861 = vmatpush1.msra.mxu0 0.0
    %1862 = vmatprep.subr.mxu0 0.0
    %1863 = vmatpush1.msra.mxu0 0.0
    %1864 = vmatprep.subr.mxu0 0.0
    %1865 = vmatpush1.msra.mxu0 0.0
    %1866 = vmatprep.subr.mxu0 0.0
    %1867 = vmatpush1.msra.mxu0 0.0
    %1868 = vmatprep.subr.mxu0 0.0
    %1869 = vmatpush1.msra.mxu0 0.0
    %1870 = vmatprep.subr.mxu0 0.0
    %1871 = vmatpush1.msra.mxu0 0.0
    %1872 = vmatprep.subr.mxu0 0.0
    %1873 = vmatpush1.msra.mxu0 0.0
    %1874 = vmatprep.subr.mxu0 0.0
    %1875 = vmatpush1.msra.mxu0 0.0
    %1876 = vmatprep.subr.mxu0 0.0
    %1877 = vmatpush1.msra.mxu0 0.0
    %1878 = vmatprep.subr.mxu0 0.0
    %1879 = vmatpush1.msra.mxu0 0.0
    %1880 = vmatprep.subr.mxu0 0.0
    %1881 = vmatpush1.msra.mxu0 0.0
    %1882 = vmatprep.subr.mxu0 0.0
    %1883 = vmatpush1.msra.mxu0 0.0
    %1884 = vmatprep.subr.mxu0 0.0
    %1885 = vmatpush1.msra.mxu0 0.0
    %1886 = vmatprep.subr.mxu0 0.0
    %1887 = vmatpush1.msra.mxu0 0.0
    %1888 = vmatprep.subr.mxu0 0.0
    %1889 = vmatpush1.msra.mxu0 0.0
    %1890 = vmatprep.subr.mxu0 0.0
    %1891 = vmatpush1.msra.mxu0 0.0
    %1892 = vmatprep.subr.mxu0 0.0
    %1893 = vmatpush1.msra.mxu0 0.0
    %1894 = vmatprep.subr.mxu0 0.0
    %1895 = vmatpush1.msra.mxu0 0.0
    %1896 = vmatprep.subr.mxu0 0.0
    %1897 = vmatpush1.msra.mxu0 0.0
    %1898 = vmatprep.subr.mxu0 0.0
    %1899 = vmatpush1.msra.mxu0 0.0
    %1900 = vmatprep.subr.mxu0 0.0
    %1901 = vmatpush1.msra.mxu0 0.0
    %1902 = vmatprep.subr.mxu0 0.0
    %1903 = vmatpush1.msra.mxu0 0.0
    %1904 = vmatprep.subr.mxu0 0.0
    %1905 = vmatpush1.msra.mxu0 0.0
    %1906 = vmatprep.subr.mxu0 0.0
    %1907 = vmatpush1.msra.mxu0 0.0
    %1908 = vmatprep.subr.mxu0 0.0
    %1909 = vmatpush1.msra.mxu0 0.0
    %1910 = vmatprep.subr.mxu0 0.0
    %1911 = vmatpush1.msra.mxu0 0.0
    %1912 = vmatprep.subr.mxu0 0.0
    %1913 = vmatpush1.msra.mxu0 0.0
    %1914 = vmatprep.subr.mxu0 0.0
    %1915 = vmatpush1.msra.mxu0 0.0
    %1916 = vmatprep.subr.mxu0 0.0
    %1917 = vmatpush1.msra.mxu0 0.0
    %1918 = vmatprep.subr.mxu0 0.0
    %1919 = vmatpush1.msra.mxu0 0.0
    %1920 = vmatprep.mubr.f32.mxu0 0.0
    %1921 = vmatmul.mubr.f32.gmra.mrb[0].mxu0 %v668
    %v1922 = vpop.f32.mrb[0].mxu0
    %v1923 = vadd.f32 0.0, %v1922
    %v1924 = vpop.f32.mrb[0].mxu0
    %1925 = vdwg.mxu0
    %1927 = vrot.lane.b32.xlu0 %v1855, 112
    %v1928 = vpop.permute.xlu0 %1927
    %v1929 = vsel %vm118, %v1928, 0
    %1931 = vmatprep.subr.mxu0 0.0
    %1932 = vmatpush1.msra.mxu0 %v1494
    %1933 = vmatprep.subr.mxu0 0.0
    %1934 = vmatpush1.msra.mxu0 %v1495
    %1935 = vmatprep.subr.mxu0 0.0
    %1936 = vmatpush1.msra.mxu0 0.0
    %1937 = vmatprep.subr.mxu0 0.0
    %1938 = vmatpush1.msra.mxu0 0.0
    %1939 = vmatprep.subr.mxu0 0.0
    %1940 = vmatpush1.msra.mxu0 0.0
    %1941 = vmatprep.subr.mxu0 0.0
    %1942 = vmatpush1.msra.mxu0 0.0
    %1943 = vmatprep.subr.mxu0 0.0
    %1944 = vmatpush1.msra.mxu0 0.0
    %1945 = vmatprep.subr.mxu0 0.0
    %1946 = vmatpush1.msra.mxu0 0.0
    %1947 = vmatprep.subr.mxu0 0.0
    %1948 = vmatpush1.msra.mxu0 0.0
    %1949 = vmatprep.subr.mxu0 0.0
    %1950 = vmatpush1.msra.mxu0 0.0
    %1951 = vmatprep.subr.mxu0 0.0
    %1952 = vmatpush1.msra.mxu0 0.0
    %1953 = vmatprep.subr.mxu0 0.0
    %1954 = vmatpush1.msra.mxu0 0.0
    %1955 = vmatprep.subr.mxu0 0.0
    %1956 = vmatpush1.msra.mxu0 0.0
    %1957 = vmatprep.subr.mxu0 0.0
    %1958 = vmatpush1.msra.mxu0 0.0
    %1959 = vmatprep.subr.mxu0 0.0
    %1960 = vmatpush1.msra.mxu0 0.0
    %1961 = vmatprep.subr.mxu0 0.0
    %1962 = vmatpush1.msra.mxu0 0.0
    %1963 = vmatprep.subr.mxu0 0.0
    %1964 = vmatpush1.msra.mxu0 0.0
    %1965 = vmatprep.subr.mxu0 0.0
    %1966 = vmatpush1.msra.mxu0 0.0
    %1967 = vmatprep.subr.mxu0 0.0
    %1968 = vmatpush1.msra.mxu0 0.0
    %1969 = vmatprep.subr.mxu0 0.0
    %1970 = vmatpush1.msra.mxu0 0.0
    %1971 = vmatprep.subr.mxu0 0.0
    %1972 = vmatpush1.msra.mxu0 0.0
    %1973 = vmatprep.subr.mxu0 0.0
    %1974 = vmatpush1.msra.mxu0 0.0
    %1975 = vmatprep.subr.mxu0 0.0
    %1976 = vmatpush1.msra.mxu0 0.0
    %1977 = vmatprep.subr.mxu0 0.0
    %1978 = vmatpush1.msra.mxu0 0.0
    %1979 = vmatprep.subr.mxu0 0.0
    %1980 = vmatpush1.msra.mxu0 0.0
    %1981 = vmatprep.subr.mxu0 0.0
    %1982 = vmatpush1.msra.mxu0 0.0
    %1983 = vmatprep.subr.mxu0 0.0
    %1984 = vmatpush1.msra.mxu0 0.0
    %1985 = vmatprep.subr.mxu0 0.0
    %1986 = vmatpush1.msra.mxu0 0.0
    %1987 = vmatprep.subr.mxu0 0.0
    %1988 = vmatpush1.msra.mxu0 0.0
    %1989 = vmatprep.subr.mxu0 0.0
    %1990 = vmatpush1.msra.mxu0 0.0
    %1991 = vmatprep.subr.mxu0 0.0
    %1992 = vmatpush1.msra.mxu0 0.0
    %1993 = vmatprep.subr.mxu0 0.0
    %1994 = vmatpush1.msra.mxu0 0.0
    %1995 = vmatprep.mubr.f32.mxu0 0.0
    %1996 = vmatmul.mubr.f32.gmra.mrb[0].mxu0 %v1929
    %v1997 = vpop.f32.mrb[0].mxu0
    %v1998 = vadd.f32 0.0, %v1997
    %v1999 = vpop.f32.mrb[0].mxu0
    %2000 = vdwg.mxu0
    %v2001 = vadd.f32 %v1923, %v1998
    %v2002 = vadd.f32 %v2001, %v1645
    %v2003 = vxor.u32 %v2002, 2147483648
    %v2004 = vmul.f32 %v2003, 1.442695
    %v2005 = vpow.pop %v2004
    %v2006 = vadd.f32 %v2005, 1.0
    %v2007 = vrcp.pop %v2006
    %v2008 = vmul.f32 1.0, %v2007
    %v2009 = vadd.f32 %v1923, %v1656
    %v2010 = vadd.f32 %v1998, %v1661
    %2012 = vrot.lane.b32.xlu0 %v2010, 96
    %v2013 = vpop.permute.xlu0 %2012
    %v2015 = vmul.f32 %v2008, %v2013
    %2017 = vrot.lane.b32.xlu0 %v2015, 32
    %v2018 = vpop.permute.xlu0 %2017
    %v2020 = vadd.f32 %v2009, %v2018
    %v2021 = vtanh.pop %v2020
    %v2022 = vsub.f32 1.0, %v2008
    %2024 = vrot.lane.b32.xlu0 %v2021, 112
    %v2025 = vpop.permute.xlu0 %2024
    %v2027 = vmul.f32 %v2022, %v2025
    %v2028 = vmul.f32 %v2008, %v1855
    %v2029 = vadd.f32 %v2027, %v2028
    %2030 = vmatprep.subr.mxu0 0.0
    %2031 = vmatpush1.msra.mxu0 %v1492
    %2032 = vmatprep.subr.mxu0 0.0
    %2033 = vmatpush1.msra.mxu0 %v1493
    %2034 = vmatprep.subr.mxu0 0.0
    %2035 = vmatpush1.msra.mxu0 0.0
    %2036 = vmatprep.subr.mxu0 0.0
    %2037 = vmatpush1.msra.mxu0 0.0
    %2038 = vmatprep.subr.mxu0 0.0
    %2039 = vmatpush1.msra.mxu0 0.0
    %2040 = vmatprep.subr.mxu0 0.0
    %2041 = vmatpush1.msra.mxu0 0.0
    %2042 = vmatprep.subr.mxu0 0.0
    %2043 = vmatpush1.msra.mxu0 0.0
    %2044 = vmatprep.subr.mxu0 0.0
    %2045 = vmatpush1.msra.mxu0 0.0
    %2046 = vmatprep.subr.mxu0 0.0
    %2047 = vmatpush1.msra.mxu0 0.0
    %2048 = vmatprep.subr.mxu0 0.0
    %2049 = vmatpush1.msra.mxu0 0.0
    %2050 = vmatprep.subr.mxu0 0.0
    %2051 = vmatpush1.msra.mxu0 0.0
    %2052 = vmatprep.subr.mxu0 0.0
    %2053 = vmatpush1.msra.mxu0 0.0
    %2054 = vmatprep.subr.mxu0 0.0
    %2055 = vmatpush1.msra.mxu0 0.0
    %2056 = vmatprep.subr.mxu0 0.0
    %2057 = vmatpush1.msra.mxu0 0.0
    %2058 = vmatprep.subr.mxu0 0.0
    %2059 = vmatpush1.msra.mxu0 0.0
    %2060 = vmatprep.subr.mxu0 0.0
    %2061 = vmatpush1.msra.mxu0 0.0
    %2062 = vmatprep.subr.mxu0 0.0
    %2063 = vmatpush1.msra.mxu0 0.0
    %2064 = vmatprep.subr.mxu0 0.0
    %2065 = vmatpush1.msra.mxu0 0.0
    %2066 = vmatprep.subr.mxu0 0.0
    %2067 = vmatpush1.msra.mxu0 0.0
    %2068 = vmatprep.subr.mxu0 0.0
    %2069 = vmatpush1.msra.mxu0 0.0
    %2070 = vmatprep.subr.mxu0 0.0
    %2071 = vmatpush1.msra.mxu0 0.0
    %2072 = vmatprep.subr.mxu0 0.0
    %2073 = vmatpush1.msra.mxu0 0.0
    %2074 = vmatprep.subr.mxu0 0.0
    %2075 = vmatpush1.msra.mxu0 0.0
    %2076 = vmatprep.subr.mxu0 0.0
    %2077 = vmatpush1.msra.mxu0 0.0
    %2078 = vmatprep.subr.mxu0 0.0
    %2079 = vmatpush1.msra.mxu0 0.0
    %2080 = vmatprep.subr.mxu0 0.0
    %2081 = vmatpush1.msra.mxu0 0.0
    %2082 = vmatprep.subr.mxu0 0.0
    %2083 = vmatpush1.msra.mxu0 0.0
    %2084 = vmatprep.subr.mxu0 0.0
    %2085 = vmatpush1.msra.mxu0 0.0
    %2086 = vmatprep.subr.mxu0 0.0
    %2087 = vmatpush1.msra.mxu0 0.0
    %2088 = vmatprep.subr.mxu0 0.0
    %2089 = vmatpush1.msra.mxu0 0.0
    %2090 = vmatprep.subr.mxu0 0.0
    %2091 = vmatpush1.msra.mxu0 0.0
    %2092 = vmatprep.subr.mxu0 0.0
    %2093 = vmatpush1.msra.mxu0 0.0
    %2094 = vmatprep.mubr.f32.mxu0 0.0
    %2095 = vmatmul.mubr.f32.gmra.mrb[0].mxu0 %v847
    %v2096 = vpop.f32.mrb[0].mxu0
    %v2097 = vadd.f32 0.0, %v2096
    %v2098 = vpop.f32.mrb[0].mxu0
    %2099 = vdwg.mxu0
    %2101 = vrot.lane.b32.xlu0 %v2029, 112
    %v2102 = vpop.permute.xlu0 %2101
    %v2103 = vsel %vm118, %v2102, 0
    %2105 = vmatprep.subr.mxu0 0.0
    %2106 = vmatpush1.msra.mxu0 %v1494
    %2107 = vmatprep.subr.mxu0 0.0
    %2108 = vmatpush1.msra.mxu0 %v1495
    %2109 = vmatprep.subr.mxu0 0.0
    %2110 = vmatpush1.msra.mxu0 0.0
    %2111 = vmatprep.subr.mxu0 0.0
    %2112 = vmatpush1.msra.mxu0 0.0
    %2113 = vmatprep.subr.mxu0 0.0
    %2114 = vmatpush1.msra.mxu0 0.0
    %2115 = vmatprep.subr.mxu0 0.0
    %2116 = vmatpush1.msra.mxu0 0.0
    %2117 = vmatprep.subr.mxu0 0.0
    %2118 = vmatpush1.msra.mxu0 0.0
    %2119 = vmatprep.subr.mxu0 0.0
    %2120 = vmatpush1.msra.mxu0 0.0
    %2121 = vmatprep.subr.mxu0 0.0
    %2122 = vmatpush1.msra.mxu0 0.0
    %2123 = vmatprep.subr.mxu0 0.0
    %2124 = vmatpush1.msra.mxu0 0.0
    %2125 = vmatprep.subr.mxu0 0.0
    %2126 = vmatpush1.msra.mxu0 0.0
    %2127 = vmatprep.subr.mxu0 0.0
    %2128 = vmatpush1.msra.mxu0 0.0
    %2129 = vmatprep.subr.mxu0 0.0
    %2130 = vmatpush1.msra.mxu0 0.0
    %2131 = vmatprep.subr.mxu0 0.0
    %2132 = vmatpush1.msra.mxu0 0.0
    %2133 = vmatprep.subr.mxu0 0.0
    %2134 = vmatpush1.msra.mxu0 0.0
    %2135 = vmatprep.subr.mxu0 0.0
    %2136 = vmatpush1.msra.mxu0 0.0
    %2137 = vmatprep.subr.mxu0 0.0
    %2138 = vmatpush1.msra.mxu0 0.0
    %2139 = vmatprep.subr.mxu0 0.0
    %2140 = vmatpush1.msra.mxu0 0.0
    %2141 = vmatprep.subr.mxu0 0.0
    %2142 = vmatpush1.msra.mxu0 0.0
    %2143 = vmatprep.subr.mxu0 0.0
    %2144 = vmatpush1.msra.mxu0 0.0
    %2145 = vmatprep.subr.mxu0 0.0
    %2146 = vmatpush1.msra.mxu0 0.0
    %2147 = vmatprep.subr.mxu0 0.0
    %2148 = vmatpush1.msra.mxu0 0.0
    %2149 = vmatprep.subr.mxu0 0.0
    %2150 = vmatpush1.msra.mxu0 0.0
    %2151 = vmatprep.subr.mxu0 0.0
    %2152 = vmatpush1.msra.mxu0 0.0
    %2153 = vmatprep.subr.mxu0 0.0
    %2154 = vmatpush1.msra.mxu0 0.0
    %2155 = vmatprep.subr.mxu0 0.0
    %2156 = vmatpush1.msra.mxu0 0.0
    %2157 = vmatprep.subr.mxu0 0.0
    %2158 = vmatpush1.msra.mxu0 0.0
    %2159 = vmatprep.subr.mxu0 0.0
    %2160 = vmatpush1.msra.mxu0 0.0
    %2161 = vmatprep.subr.mxu0 0.0
    %2162 = vmatpush1.msra.mxu0 0.0
    %2163 = vmatprep.subr.mxu0 0.0
    %2164 = vmatpush1.msra.mxu0 0.0
    %2165 = vmatprep.subr.mxu0 0.0
    %2166 = vmatpush1.msra.mxu0 0.0
    %2167 = vmatprep.subr.mxu0 0.0
    %2168 = vmatpush1.msra.mxu0 0.0
    %2169 = vmatprep.mubr.f32.mxu0 0.0
    %2170 = vmatmul.mubr.f32.gmra.mrb[0].mxu0 %v2103
    %v2171 = vpop.f32.mrb[0].mxu0
    %v2172 = vadd.f32 0.0, %v2171
    %v2173 = vpop.f32.mrb[0].mxu0
    %2174 = vdwg.mxu0
    %v2175 = vadd.f32 %v2097, %v2172
    %v2176 = vadd.f32 %v2175, %v1645
    %v2177 = vxor.u32 %v2176, 2147483648
    %v2178 = vmul.f32 %v2177, 1.442695
    %v2179 = vpow.pop %v2178
    %v2180 = vadd.f32 %v2179, 1.0
    %v2181 = vrcp.pop %v2180
    %v2182 = vmul.f32 1.0, %v2181
    %v2183 = vadd.f32 %v2097, %v1656
    %v2184 = vadd.f32 %v2172, %v1661
    %2186 = vrot.lane.b32.xlu0 %v2184, 96
    %v2187 = vpop.permute.xlu0 %2186
    %v2189 = vmul.f32 %v2182, %v2187
    %2191 = vrot.lane.b32.xlu0 %v2189, 32
    %v2192 = vpop.permute.xlu0 %2191
    %v2194 = vadd.f32 %v2183, %v2192
    %v2195 = vtanh.pop %v2194
    %v2196 = vsub.f32 1.0, %v2182
    %2198 = vrot.lane.b32.xlu0 %v2195, 112
    %v2199 = vpop.permute.xlu0 %2198
    %v2201 = vmul.f32 %v2196, %v2199
    %v2202 = vmul.f32 %v2182, %v2029
    %v2203 = vadd.f32 %v2201, %v2202
    %2204 = vmatprep.subr.mxu0 0.0
    %2205 = vmatpush1.msra.mxu0 %v1492
    %2206 = vmatprep.subr.mxu0 0.0
    %2207 = vmatpush1.msra.mxu0 %v1493
    %2208 = vmatprep.subr.mxu0 0.0
    %2209 = vmatpush1.msra.mxu0 0.0
    %2210 = vmatprep.subr.mxu0 0.0
    %2211 = vmatpush1.msra.mxu0 0.0
    %2212 = vmatprep.subr.mxu0 0.0
    %2213 = vmatpush1.msra.mxu0 0.0
    %2214 = vmatprep.subr.mxu0 0.0
    %2215 = vmatpush1.msra.mxu0 0.0
    %2216 = vmatprep.subr.mxu0 0.0
    %2217 = vmatpush1.msra.mxu0 0.0
    %2218 = vmatprep.subr.mxu0 0.0
    %2219 = vmatpush1.msra.mxu0 0.0
    %2220 = vmatprep.subr.mxu0 0.0
    %2221 = vmatpush1.msra.mxu0 0.0
    %2222 = vmatprep.subr.mxu0 0.0
    %2223 = vmatpush1.msra.mxu0 0.0
    %2224 = vmatprep.subr.mxu0 0.0
    %2225 = vmatpush1.msra.mxu0 0.0
    %2226 = vmatprep.subr.mxu0 0.0
    %2227 = vmatpush1.msra.mxu0 0.0
    %2228 = vmatprep.subr.mxu0 0.0
    %2229 = vmatpush1.msra.mxu0 0.0
    %2230 = vmatprep.subr.mxu0 0.0
    %2231 = vmatpush1.msra.mxu0 0.0
    %2232 = vmatprep.subr.mxu0 0.0
    %2233 = vmatpush1.msra.mxu0 0.0
    %2234 = vmatprep.subr.mxu0 0.0
    %2235 = vmatpush1.msra.mxu0 0.0
    %2236 = vmatprep.subr.mxu0 0.0
    %2237 = vmatpush1.msra.mxu0 0.0
    %2238 = vmatprep.subr.mxu0 0.0
    %2239 = vmatpush1.msra.mxu0 0.0
    %2240 = vmatprep.subr.mxu0 0.0
    %2241 = vmatpush1.msra.mxu0 0.0
    %2242 = vmatprep.subr.mxu0 0.0
    %2243 = vmatpush1.msra.mxu0 0.0
    %2244 = vmatprep.subr.mxu0 0.0
    %2245 = vmatpush1.msra.mxu0 0.0
    %2246 = vmatprep.subr.mxu0 0.0
    %2247 = vmatpush1.msra.mxu0 0.0
    %2248 = vmatprep.subr.mxu0 0.0
    %2249 = vmatpush1.msra.mxu0 0.0
    %2250 = vmatprep.subr.mxu0 0.0
    %2251 = vmatpush1.msra.mxu0 0.0
    %2252 = vmatprep.subr.mxu0 0.0
    %2253 = vmatpush1.msra.mxu0 0.0
    %2254 = vmatprep.subr.mxu0 0.0
    %2255 = vmatpush1.msra.mxu0 0.0
    %2256 = vmatprep.subr.mxu0 0.0
    %2257 = vmatpush1.msra.mxu0 0.0
    %2258 = vmatprep.subr.mxu0 0.0
    %2259 = vmatpush1.msra.mxu0 0.0
    %2260 = vmatprep.subr.mxu0 0.0
    %2261 = vmatpush1.msra.mxu0 0.0
    %2262 = vmatprep.subr.mxu0 0.0
    %2263 = vmatpush1.msra.mxu0 0.0
    %2264 = vmatprep.subr.mxu0 0.0
    %2265 = vmatpush1.msra.mxu0 0.0
    %2266 = vmatprep.subr.mxu0 0.0
    %2267 = vmatpush1.msra.mxu0 0.0
    %2268 = vmatprep.mubr.f32.mxu0 0.0
    %2269 = vmatmul.mubr.f32.gmra.mrb[0].mxu0 %v1026
    %v2270 = vpop.f32.mrb[0].mxu0
    %v2271 = vadd.f32 0.0, %v2270
    %v2272 = vpop.f32.mrb[0].mxu0
    %2273 = vdwg.mxu0
    %2275 = vrot.lane.b32.xlu0 %v2203, 112
    %v2276 = vpop.permute.xlu0 %2275
    %v2277 = vsel %vm118, %v2276, 0
    %2279 = vmatprep.subr.mxu0 0.0
    %2280 = vmatpush1.msra.mxu0 %v1494
    %2281 = vmatprep.subr.mxu0 0.0
    %2282 = vmatpush1.msra.mxu0 %v1495
    %2283 = vmatprep.subr.mxu0 0.0
    %2284 = vmatpush1.msra.mxu0 0.0
    %2285 = vmatprep.subr.mxu0 0.0
    %2286 = vmatpush1.msra.mxu0 0.0
    %2287 = vmatprep.subr.mxu0 0.0
    %2288 = vmatpush1.msra.mxu0 0.0
    %2289 = vmatprep.subr.mxu0 0.0
    %2290 = vmatpush1.msra.mxu0 0.0
    %2291 = vmatprep.subr.mxu0 0.0
    %2292 = vmatpush1.msra.mxu0 0.0
    %2293 = vmatprep.subr.mxu0 0.0
    %2294 = vmatpush1.msra.mxu0 0.0
    %2295 = vmatprep.subr.mxu0 0.0
    %2296 = vmatpush1.msra.mxu0 0.0
    %2297 = vmatprep.subr.mxu0 0.0
    %2298 = vmatpush1.msra.mxu0 0.0
    %2299 = vmatprep.subr.mxu0 0.0
    %2300 = vmatpush1.msra.mxu0 0.0
    %2301 = vmatprep.subr.mxu0 0.0
    %2302 = vmatpush1.msra.mxu0 0.0
    %2303 = vmatprep.subr.mxu0 0.0
    %2304 = vmatpush1.msra.mxu0 0.0
    %2305 = vmatprep.subr.mxu0 0.0
    %2306 = vmatpush1.msra.mxu0 0.0
    %2307 = vmatprep.subr.mxu0 0.0
    %2308 = vmatpush1.msra.mxu0 0.0
    %2309 = vmatprep.subr.mxu0 0.0
    %2310 = vmatpush1.msra.mxu0 0.0
    %2311 = vmatprep.subr.mxu0 0.0
    %2312 = vmatpush1.msra.mxu0 0.0
    %2313 = vmatprep.subr.mxu0 0.0
    %2314 = vmatpush1.msra.mxu0 0.0
    %2315 = vmatprep.subr.mxu0 0.0
    %2316 = vmatpush1.msra.mxu0 0.0
    %2317 = vmatprep.subr.mxu0 0.0
    %2318 = vmatpush1.msra.mxu0 0.0
    %2319 = vmatprep.subr.mxu0 0.0
    %2320 = vmatpush1.msra.mxu0 0.0
    %2321 = vmatprep.subr.mxu0 0.0
    %2322 = vmatpush1.msra.mxu0 0.0
    %2323 = vmatprep.subr.mxu0 0.0
    %2324 = vmatpush1.msra.mxu0 0.0
    %2325 = vmatprep.subr.mxu0 0.0
    %2326 = vmatpush1.msra.mxu0 0.0
    %2327 = vmatprep.subr.mxu0 0.0
    %2328 = vmatpush1.msra.mxu0 0.0
    %2329 = vmatprep.subr.mxu0 0.0
    %2330 = vmatpush1.msra.mxu0 0.0
    %2331 = vmatprep.subr.mxu0 0.0
    %2332 = vmatpush1.msra.mxu0 0.0
    %2333 = vmatprep.subr.mxu0 0.0
    %2334 = vmatpush1.msra.mxu0 0.0
    %2335 = vmatprep.subr.mxu0 0.0
    %2336 = vmatpush1.msra.mxu0 0.0
    %2337 = vmatprep.subr.mxu0 0.0
    %2338 = vmatpush1.msra.mxu0 0.0
    %2339 = vmatprep.subr.mxu0 0.0
    %2340 = vmatpush1.msra.mxu0 0.0
    %2341 = vmatprep.subr.mxu0 0.0
    %2342 = vmatpush1.msra.mxu0 0.0
    %2343 = vmatprep.mubr.f32.mxu0 0.0
    %2344 = vmatmul.mubr.f32.gmra.mrb[0].mxu0 %v2277
    %v2345 = vpop.f32.mrb[0].mxu0
    %v2346 = vadd.f32 0.0, %v2345
    %v2347 = vpop.f32.mrb[0].mxu0
    %2348 = vdwg.mxu0
    %v2349 = vadd.f32 %v2271, %v2346
    %v2350 = vadd.f32 %v2349, %v1645
    %v2351 = vxor.u32 %v2350, 2147483648
    %v2352 = vmul.f32 %v2351, 1.442695
    %v2353 = vpow.pop %v2352
    %v2354 = vadd.f32 %v2353, 1.0
    %v2355 = vrcp.pop %v2354
    %v2356 = vmul.f32 1.0, %v2355
    %v2357 = vadd.f32 %v2271, %v1656
    %v2358 = vadd.f32 %v2346, %v1661
    %2360 = vrot.lane.b32.xlu0 %v2358, 96
    %v2361 = vpop.permute.xlu0 %2360
    %v2363 = vmul.f32 %v2356, %v2361
    %2365 = vrot.lane.b32.xlu0 %v2363, 32
    %v2366 = vpop.permute.xlu0 %2365
    %v2368 = vadd.f32 %v2357, %v2366
    %v2369 = vtanh.pop %v2368
    %v2370 = vsub.f32 1.0, %v2356
    %2372 = vrot.lane.b32.xlu0 %v2369, 112
    %v2373 = vpop.permute.xlu0 %2372
    %v2375 = vmul.f32 %v2370, %v2373
    %v2376 = vmul.f32 %v2356, %v2203
    %v2377 = vadd.f32 %v2375, %v2376
    %2378 = vmatprep.subr.mxu0 0.0
    %2379 = vmatpush1.msra.mxu0 %v1492
    %2380 = vmatprep.subr.mxu0 0.0
    %2381 = vmatpush1.msra.mxu0 %v1493
    %2382 = vmatprep.subr.mxu0 0.0
    %2383 = vmatpush1.msra.mxu0 0.0
    %2384 = vmatprep.subr.mxu0 0.0
    %2385 = vmatpush1.msra.mxu0 0.0
    %2386 = vmatprep.subr.mxu0 0.0
    %2387 = vmatpush1.msra.mxu0 0.0
    %2388 = vmatprep.subr.mxu0 0.0
    %2389 = vmatpush1.msra.mxu0 0.0
    %2390 = vmatprep.subr.mxu0 0.0
    %2391 = vmatpush1.msra.mxu0 0.0
    %2392 = vmatprep.subr.mxu0 0.0
    %2393 = vmatpush1.msra.mxu0 0.0
    %2394 = vmatprep.subr.mxu0 0.0
    %2395 = vmatpush1.msra.mxu0 0.0
    %2396 = vmatprep.subr.mxu0 0.0
    %2397 = vmatpush1.msra.mxu0 0.0
    %2398 = vmatprep.subr.mxu0 0.0
    %2399 = vmatpush1.msra.mxu0 0.0
    %2400 = vmatprep.subr.mxu0 0.0
    %2401 = vmatpush1.msra.mxu0 0.0
    %2402 = vmatprep.subr.mxu0 0.0
    %2403 = vmatpush1.msra.mxu0 0.0
    %2404 = vmatprep.subr.mxu0 0.0
    %2405 = vmatpush1.msra.mxu0 0.0
    %2406 = vmatprep.subr.mxu0 0.0
    %2407 = vmatpush1.msra.mxu0 0.0
    %2408 = vmatprep.subr.mxu0 0.0
    %2409 = vmatpush1.msra.mxu0 0.0
    %2410 = vmatprep.subr.mxu0 0.0
    %2411 = vmatpush1.msra.mxu0 0.0
    %2412 = vmatprep.subr.mxu0 0.0
    %2413 = vmatpush1.msra.mxu0 0.0
    %2414 = vmatprep.subr.mxu0 0.0
    %2415 = vmatpush1.msra.mxu0 0.0
    %2416 = vmatprep.subr.mxu0 0.0
    %2417 = vmatpush1.msra.mxu0 0.0
    %2418 = vmatprep.subr.mxu0 0.0
    %2419 = vmatpush1.msra.mxu0 0.0
    %2420 = vmatprep.subr.mxu0 0.0
    %2421 = vmatpush1.msra.mxu0 0.0
    %2422 = vmatprep.subr.mxu0 0.0
    %2423 = vmatpush1.msra.mxu0 0.0
    %2424 = vmatprep.subr.mxu0 0.0
    %2425 = vmatpush1.msra.mxu0 0.0
    %2426 = vmatprep.subr.mxu0 0.0
    %2427 = vmatpush1.msra.mxu0 0.0
    %2428 = vmatprep.subr.mxu0 0.0
    %2429 = vmatpush1.msra.mxu0 0.0
    %2430 = vmatprep.subr.mxu0 0.0
    %2431 = vmatpush1.msra.mxu0 0.0
    %2432 = vmatprep.subr.mxu0 0.0
    %2433 = vmatpush1.msra.mxu0 0.0
    %2434 = vmatprep.subr.mxu0 0.0
    %2435 = vmatpush1.msra.mxu0 0.0
    %2436 = vmatprep.subr.mxu0 0.0
    %2437 = vmatpush1.msra.mxu0 0.0
    %2438 = vmatprep.subr.mxu0 0.0
    %2439 = vmatpush1.msra.mxu0 0.0
    %2440 = vmatprep.subr.mxu0 0.0
    %2441 = vmatpush1.msra.mxu0 0.0
    %2442 = vmatprep.mubr.f32.mxu0 0.0
    %2443 = vmatmul.mubr.f32.gmra.mrb[0].mxu0 %v1205
    %v2444 = vpop.f32.mrb[0].mxu0
    %v2445 = vadd.f32 0.0, %v2444
    %v2446 = vpop.f32.mrb[0].mxu0
    %2447 = vdwg.mxu0
    %2449 = vrot.lane.b32.xlu0 %v2377, 112
    %v2450 = vpop.permute.xlu0 %2449
    %v2451 = vsel %vm118, %v2450, 0
    %2453 = vmatprep.subr.mxu0 0.0
    %2454 = vmatpush1.msra.mxu0 %v1494
    %2455 = vmatprep.subr.mxu0 0.0
    %2456 = vmatpush1.msra.mxu0 %v1495
    %2457 = vmatprep.subr.mxu0 0.0
    %2458 = vmatpush1.msra.mxu0 0.0
    %2459 = vmatprep.subr.mxu0 0.0
    %2460 = vmatpush1.msra.mxu0 0.0
    %2461 = vmatprep.subr.mxu0 0.0
    %2462 = vmatpush1.msra.mxu0 0.0
    %2463 = vmatprep.subr.mxu0 0.0
    %2464 = vmatpush1.msra.mxu0 0.0
    %2465 = vmatprep.subr.mxu0 0.0
    %2466 = vmatpush1.msra.mxu0 0.0
    %2467 = vmatprep.subr.mxu0 0.0
    %2468 = vmatpush1.msra.mxu0 0.0
    %2469 = vmatprep.subr.mxu0 0.0
    %2470 = vmatpush1.msra.mxu0 0.0
    %2471 = vmatprep.subr.mxu0 0.0
    %2472 = vmatpush1.msra.mxu0 0.0
    %2473 = vmatprep.subr.mxu0 0.0
    %2474 = vmatpush1.msra.mxu0 0.0
    %2475 = vmatprep.subr.mxu0 0.0
    %2476 = vmatpush1.msra.mxu0 0.0
    %2477 = vmatprep.subr.mxu0 0.0
    %2478 = vmatpush1.msra.mxu0 0.0
    %2479 = vmatprep.subr.mxu0 0.0
    %2480 = vmatpush1.msra.mxu0 0.0
    %2481 = vmatprep.subr.mxu0 0.0
    %2482 = vmatpush1.msra.mxu0 0.0
    %2483 = vmatprep.subr.mxu0 0.0
    %2484 = vmatpush1.msra.mxu0 0.0
    %2485 = vmatprep.subr.mxu0 0.0
    %2486 = vmatpush1.msra.mxu0 0.0
    %2487 = vmatprep.subr.mxu0 0.0
    %2488 = vmatpush1.msra.mxu0 0.0
    %2489 = vmatprep.subr.mxu0 0.0
    %2490 = vmatpush1.msra.mxu0 0.0
    %2491 = vmatprep.subr.mxu0 0.0
    %2492 = vmatpush1.msra.mxu0 0.0
    %2493 = vmatprep.subr.mxu0 0.0
    %2494 = vmatpush1.msra.mxu0 0.0
    %2495 = vmatprep.subr.mxu0 0.0
    %2496 = vmatpush1.msra.mxu0 0.0
    %2497 = vmatprep.subr.mxu0 0.0
    %2498 = vmatpush1.msra.mxu0 0.0
    %2499 = vmatprep.subr.mxu0 0.0
    %2500 = vmatpush1.msra.mxu0 0.0
    %2501 = vmatprep.subr.mxu0 0.0
    %2502 = vmatpush1.msra.mxu0 0.0
    %2503 = vmatprep.subr.mxu0 0.0
    %2504 = vmatpush1.msra.mxu0 0.0
    %2505 = vmatprep.subr.mxu0 0.0
    %2506 = vmatpush1.msra.mxu0 0.0
    %2507 = vmatprep.subr.mxu0 0.0
    %2508 = vmatpush1.msra.mxu0 0.0
    %2509 = vmatprep.subr.mxu0 0.0
    %2510 = vmatpush1.msra.mxu0 0.0
    %2511 = vmatprep.subr.mxu0 0.0
    %2512 = vmatpush1.msra.mxu0 0.0
    %2513 = vmatprep.subr.mxu0 0.0
    %2514 = vmatpush1.msra.mxu0 0.0
    %2515 = vmatprep.subr.mxu0 0.0
    %2516 = vmatpush1.msra.mxu0 0.0
    %2517 = vmatprep.mubr.f32.mxu0 0.0
    %2518 = vmatmul.mubr.f32.gmra.mrb[0].mxu0 %v2451
    %v2519 = vpop.f32.mrb[0].mxu0
    %v2520 = vadd.f32 0.0, %v2519
    %v2521 = vpop.f32.mrb[0].mxu0
    %2522 = vdwg.mxu0
    %v2523 = vadd.f32 %v2445, %v2520
    %v2524 = vadd.f32 %v2523, %v1645
    %v2525 = vxor.u32 %v2524, 2147483648
    %v2526 = vmul.f32 %v2525, 1.442695
    %v2527 = vpow.pop %v2526
    %v2528 = vadd.f32 %v2527, 1.0
    %v2529 = vrcp.pop %v2528
    %v2530 = vmul.f32 1.0, %v2529
    %v2531 = vadd.f32 %v2445, %v1656
    %v2532 = vadd.f32 %v2520, %v1661
    %2534 = vrot.lane.b32.xlu0 %v2532, 96
    %v2535 = vpop.permute.xlu0 %2534
    %v2537 = vmul.f32 %v2530, %v2535
    %2539 = vrot.lane.b32.xlu0 %v2537, 32
    %v2540 = vpop.permute.xlu0 %2539
    %v2542 = vadd.f32 %v2531, %v2540
    %v2543 = vtanh.pop %v2542
    %v2544 = vsub.f32 1.0, %v2530
    %2546 = vrot.lane.b32.xlu0 %v2543, 112
    %v2547 = vpop.permute.xlu0 %2546
    %v2549 = vmul.f32 %v2544, %v2547
    %v2550 = vmul.f32 %v2530, %v2377
    %v2551 = vadd.f32 %v2549, %v2550
    %2552 = vmatprep.subr.mxu0 0.0
    %2553 = vmatpush1.msra.mxu0 %v1492
    %2554 = vmatprep.subr.mxu0 0.0
    %2555 = vmatpush1.msra.mxu0 %v1493
    %2556 = vmatprep.subr.mxu0 0.0
    %2557 = vmatpush1.msra.mxu0 0.0
    %2558 = vmatprep.subr.mxu0 0.0
    %2559 = vmatpush1.msra.mxu0 0.0
    %2560 = vmatprep.subr.mxu0 0.0
    %2561 = vmatpush1.msra.mxu0 0.0
    %2562 = vmatprep.subr.mxu0 0.0
    %2563 = vmatpush1.msra.mxu0 0.0
    %2564 = vmatprep.subr.mxu0 0.0
    %2565 = vmatpush1.msra.mxu0 0.0
    %2566 = vmatprep.subr.mxu0 0.0
    %2567 = vmatpush1.msra.mxu0 0.0
    %2568 = vmatprep.subr.mxu0 0.0
    %2569 = vmatpush1.msra.mxu0 0.0
    %2570 = vmatprep.subr.mxu0 0.0
    %2571 = vmatpush1.msra.mxu0 0.0
    %2572 = vmatprep.subr.mxu0 0.0
    %2573 = vmatpush1.msra.mxu0 0.0
    %2574 = vmatprep.subr.mxu0 0.0
    %2575 = vmatpush1.msra.mxu0 0.0
    %2576 = vmatprep.subr.mxu0 0.0
    %2577 = vmatpush1.msra.mxu0 0.0
    %2578 = vmatprep.subr.mxu0 0.0
    %2579 = vmatpush1.msra.mxu0 0.0
    %2580 = vmatprep.subr.mxu0 0.0
    %2581 = vmatpush1.msra.mxu0 0.0
    %2582 = vmatprep.subr.mxu0 0.0
    %2583 = vmatpush1.msra.mxu0 0.0
    %2584 = vmatprep.subr.mxu0 0.0
    %2585 = vmatpush1.msra.mxu0 0.0
    %2586 = vmatprep.subr.mxu0 0.0
    %2587 = vmatpush1.msra.mxu0 0.0
    %2588 = vmatprep.subr.mxu0 0.0
    %2589 = vmatpush1.msra.mxu0 0.0
    %2590 = vmatprep.subr.mxu0 0.0
    %2591 = vmatpush1.msra.mxu0 0.0
    %2592 = vmatprep.subr.mxu0 0.0
    %2593 = vmatpush1.msra.mxu0 0.0
    %2594 = vmatprep.subr.mxu0 0.0
    %2595 = vmatpush1.msra.mxu0 0.0
    %2596 = vmatprep.subr.mxu0 0.0
    %2597 = vmatpush1.msra.mxu0 0.0
    %2598 = vmatprep.subr.mxu0 0.0
    %2599 = vmatpush1.msra.mxu0 0.0
    %2600 = vmatprep.subr.mxu0 0.0
    %2601 = vmatpush1.msra.mxu0 0.0
    %2602 = vmatprep.subr.mxu0 0.0
    %2603 = vmatpush1.msra.mxu0 0.0
    %2604 = vmatprep.subr.mxu0 0.0
    %2605 = vmatpush1.msra.mxu0 0.0
    %2606 = vmatprep.subr.mxu0 0.0
    %2607 = vmatpush1.msra.mxu0 0.0
    %2608 = vmatprep.subr.mxu0 0.0
    %2609 = vmatpush1.msra.mxu0 0.0
    %2610 = vmatprep.subr.mxu0 0.0
    %2611 = vmatpush1.msra.mxu0 0.0
    %2612 = vmatprep.subr.mxu0 0.0
    %2613 = vmatpush1.msra.mxu0 0.0
    %2614 = vmatprep.subr.mxu0 0.0
    %2615 = vmatpush1.msra.mxu0 0.0
    %2616 = vmatprep.mubr.f32.mxu0 0.0
    %2617 = vmatmul.mubr.f32.gmra.mrb[0].mxu0 %v1384
    %v2618 = vpop.f32.mrb[0].mxu0
    %v2619 = vadd.f32 0.0, %v2618
    %v2620 = vpop.f32.mrb[0].mxu0
    %2621 = vdwg.mxu0
    %2623 = vrot.lane.b32.xlu0 %v2551, 112
    %v2624 = vpop.permute.xlu0 %2623
    %v2625 = vsel %vm118, %v2624, 0
    %2627 = vmatprep.subr.mxu0 0.0
    %2628 = vmatpush1.msra.mxu0 %v1494
    %2629 = vmatprep.subr.mxu0 0.0
    %2630 = vmatpush1.msra.mxu0 %v1495
    %2631 = vmatprep.subr.mxu0 0.0
    %2632 = vmatpush1.msra.mxu0 0.0
    %2633 = vmatprep.subr.mxu0 0.0
    %2634 = vmatpush1.msra.mxu0 0.0
    %2635 = vmatprep.subr.mxu0 0.0
    %2636 = vmatpush1.msra.mxu0 0.0
    %2637 = vmatprep.subr.mxu0 0.0
    %2638 = vmatpush1.msra.mxu0 0.0
    %2639 = vmatprep.subr.mxu0 0.0
    %2640 = vmatpush1.msra.mxu0 0.0
    %2641 = vmatprep.subr.mxu0 0.0
    %2642 = vmatpush1.msra.mxu0 0.0
    %2643 = vmatprep.subr.mxu0 0.0
    %2644 = vmatpush1.msra.mxu0 0.0
    %2645 = vmatprep.subr.mxu0 0.0
    %2646 = vmatpush1.msra.mxu0 0.0
    %2647 = vmatprep.subr.mxu0 0.0
    %2648 = vmatpush1.msra.mxu0 0.0
    %2649 = vmatprep.subr.mxu0 0.0
    %2650 = vmatpush1.msra.mxu0 0.0
    %2651 = vmatprep.subr.mxu0 0.0
    %2652 = vmatpush1.msra.mxu0 0.0
    %2653 = vmatprep.subr.mxu0 0.0
    %2654 = vmatpush1.msra.mxu0 0.0
    %2655 = vmatprep.subr.mxu0 0.0
    %2656 = vmatpush1.msra.mxu0 0.0
    %2657 = vmatprep.subr.mxu0 0.0
    %2658 = vmatpush1.msra.mxu0 0.0
    %2659 = vmatprep.subr.mxu0 0.0
    %2660 = vmatpush1.msra.mxu0 0.0
    %2661 = vmatprep.subr.mxu0 0.0
    %2662 = vmatpush1.msra.mxu0 0.0
    %2663 = vmatprep.subr.mxu0 0.0
    %2664 = vmatpush1.msra.mxu0 0.0
    %2665 = vmatprep.subr.mxu0 0.0
    %2666 = vmatpush1.msra.mxu0 0.0
    %2667 = vmatprep.subr.mxu0 0.0
    %2668 = vmatpush1.msra.mxu0 0.0
    %2669 = vmatprep.subr.mxu0 0.0
    %2670 = vmatpush1.msra.mxu0 0.0
    %2671 = vmatprep.subr.mxu0 0.0
    %2672 = vmatpush1.msra.mxu0 0.0
    %2673 = vmatprep.subr.mxu0 0.0
    %2674 = vmatpush1.msra.mxu0 0.0
    %2675 = vmatprep.subr.mxu0 0.0
    %2676 = vmatpush1.msra.mxu0 0.0
    %2677 = vmatprep.subr.mxu0 0.0
    %2678 = vmatpush1.msra.mxu0 0.0
    %2679 = vmatprep.subr.mxu0 0.0
    %2680 = vmatpush1.msra.mxu0 0.0
    %2681 = vmatprep.subr.mxu0 0.0
    %2682 = vmatpush1.msra.mxu0 0.0
    %2683 = vmatprep.subr.mxu0 0.0
    %2684 = vmatpush1.msra.mxu0 0.0
    %2685 = vmatprep.subr.mxu0 0.0
    %2686 = vmatpush1.msra.mxu0 0.0
    %2687 = vmatprep.subr.mxu0 0.0
    %2688 = vmatpush1.msra.mxu0 0.0
    %2689 = vmatprep.subr.mxu0 0.0
    %2690 = vmatpush1.msra.mxu0 0.0
    %2691 = vmatprep.mubr.f32.mxu0 0.0
    %2692 = vmatmul.mubr.f32.gmra.mrb[0].mxu0 %v2625
    %v2693 = vpop.f32.mrb[0].mxu0
    %v2694 = vadd.f32 0.0, %v2693
    %v2695 = vpop.f32.mrb[0].mxu0
    %2696 = vdwg.mxu0
    %v2697 = vadd.f32 %v2619, %v2694
    %v2698 = vadd.f32 %v2697, %v1645
    %v2699 = vxor.u32 %v2698, 2147483648
    %v2700 = vmul.f32 %v2699, 1.442695
    %v2701 = vpow.pop %v2700
    %v2702 = vadd.f32 %v2701, 1.0
    %v2703 = vrcp.pop %v2702
    %v2704 = vmul.f32 1.0, %v2703
    %v2705 = vadd.f32 %v2619, %v1656
    %v2706 = vadd.f32 %v2694, %v1661
    %2708 = vrot.lane.b32.xlu0 %v2706, 96
    %v2709 = vpop.permute.xlu0 %2708
    %v2711 = vmul.f32 %v2704, %v2709
    %2713 = vrot.lane.b32.xlu0 %v2711, 32
    %v2714 = vpop.permute.xlu0 %2713
    %v2716 = vadd.f32 %v2705, %v2714
    %v2717 = vtanh.pop %v2716
    %v2718 = vsub.f32 1.0, %v2704
    %2720 = vrot.lane.b32.xlu0 %v2717, 112
    %v2721 = vpop.permute.xlu0 %2720
    %v2723 = vmul.f32 %v2718, %v2721
    %v2724 = vmul.f32 %v2704, %v2551
    %v2725 = vadd.f32 %v2723, %v2724
    %v2726 = vsel %vm118, %v1487, 0
    %2728 = vmatprep.subr.mxu0 0.0
    %2729 = vmatpush1.msra.mxu0 %v1492
    %2730 = vmatprep.subr.mxu0 0.0
    %2731 = vmatpush1.msra.mxu0 %v1493
    %2732 = vmatprep.subr.mxu0 0.0
    %2733 = vmatpush1.msra.mxu0 0.0
    %2734 = vmatprep.subr.mxu0 0.0
    %2735 = vmatpush1.msra.mxu0 0.0
    %2736 = vmatprep.subr.mxu0 0.0
    %2737 = vmatpush1.msra.mxu0 0.0
    %2738 = vmatprep.subr.mxu0 0.0
    %2739 = vmatpush1.msra.mxu0 0.0
    %2740 = vmatprep.subr.mxu0 0.0
    %2741 = vmatpush1.msra.mxu0 0.0
    %2742 = vmatprep.subr.mxu0 0.0
    %2743 = vmatpush1.msra.mxu0 0.0
    %2744 = vmatprep.subr.mxu0 0.0
    %2745 = vmatpush1.msra.mxu0 0.0
    %2746 = vmatprep.subr.mxu0 0.0
    %2747 = vmatpush1.msra.mxu0 0.0
    %2748 = vmatprep.subr.mxu0 0.0
    %2749 = vmatpush1.msra.mxu0 0.0
    %2750 = vmatprep.subr.mxu0 0.0
    %2751 = vmatpush1.msra.mxu0 0.0
    %2752 = vmatprep.subr.mxu0 0.0
    %2753 = vmatpush1.msra.mxu0 0.0
    %2754 = vmatprep.subr.mxu0 0.0
    %2755 = vmatpush1.msra.mxu0 0.0
    %2756 = vmatprep.subr.mxu0 0.0
    %2757 = vmatpush1.msra.mxu0 0.0
    %2758 = vmatprep.subr.mxu0 0.0
    %2759 = vmatpush1.msra.mxu0 0.0
    %2760 = vmatprep.subr.mxu0 0.0
    %2761 = vmatpush1.msra.mxu0 0.0
    %2762 = vmatprep.subr.mxu0 0.0
    %2763 = vmatpush1.msra.mxu0 0.0
    %2764 = vmatprep.subr.mxu0 0.0
    %2765 = vmatpush1.msra.mxu0 0.0
    %2766 = vmatprep.subr.mxu0 0.0
    %2767 = vmatpush1.msra.mxu0 0.0
    %2768 = vmatprep.subr.mxu0 0.0
    %2769 = vmatpush1.msra.mxu0 0.0
    %2770 = vmatprep.subr.mxu0 0.0
    %2771 = vmatpush1.msra.mxu0 0.0
    %2772 = vmatprep.subr.mxu0 0.0
    %2773 = vmatpush1.msra.mxu0 0.0
    %2774 = vmatprep.subr.mxu0 0.0
    %2775 = vmatpush1.msra.mxu0 0.0
    %2776 = vmatprep.subr.mxu0 0.0
    %2777 = vmatpush1.msra.mxu0 0.0
    %2778 = vmatprep.subr.mxu0 0.0
    %2779 = vmatpush1.msra.mxu0 0.0
    %2780 = vmatprep.subr.mxu0 0.0
    %2781 = vmatpush1.msra.mxu0 0.0
    %2782 = vmatprep.subr.mxu0 0.0
    %2783 = vmatpush1.msra.mxu0 0.0
    %2784 = vmatprep.subr.mxu0 0.0
    %2785 = vmatpush1.msra.mxu0 0.0
    %2786 = vmatprep.subr.mxu0 0.0
    %2787 = vmatpush1.msra.mxu0 0.0
    %2788 = vmatprep.subr.mxu0 0.0
    %2789 = vmatpush1.msra.mxu0 0.0
    %2790 = vmatprep.subr.mxu0 0.0
    %2791 = vmatpush1.msra.mxu0 0.0
    %2792 = vmatprep.mubr.f32.mxu0 0.0
    %2793 = vmatmul.mubr.f32.gmra.mrb[0].mxu0 %v2726
    %v2794 = vpop.f32.mrb[0].mxu0
    %v2795 = vadd.f32 0.0, %v2794
    %v2796 = vpop.f32.mrb[0].mxu0
    %2797 = vdwg.mxu0
    %2799 = vrot.lane.b32.xlu0 %v2725, 112
    %v2800 = vpop.permute.xlu0 %2799
    %v2801 = vsel %vm118, %v2800, 0
    %2803 = vmatprep.subr.mxu0 0.0
    %2804 = vmatpush1.msra.mxu0 %v1494
    %2805 = vmatprep.subr.mxu0 0.0
    %2806 = vmatpush1.msra.mxu0 %v1495
    %2807 = vmatprep.subr.mxu0 0.0
    %2808 = vmatpush1.msra.mxu0 0.0
    %2809 = vmatprep.subr.mxu0 0.0
    %2810 = vmatpush1.msra.mxu0 0.0
    %2811 = vmatprep.subr.mxu0 0.0
    %2812 = vmatpush1.msra.mxu0 0.0
    %2813 = vmatprep.subr.mxu0 0.0
    %2814 = vmatpush1.msra.mxu0 0.0
    %2815 = vmatprep.subr.mxu0 0.0
    %2816 = vmatpush1.msra.mxu0 0.0
    %2817 = vmatprep.subr.mxu0 0.0
    %2818 = vmatpush1.msra.mxu0 0.0
    %2819 = vmatprep.subr.mxu0 0.0
    %2820 = vmatpush1.msra.mxu0 0.0
    %2821 = vmatprep.subr.mxu0 0.0
    %2822 = vmatpush1.msra.mxu0 0.0
    %2823 = vmatprep.subr.mxu0 0.0
    %2824 = vmatpush1.msra.mxu0 0.0
    %2825 = vmatprep.subr.mxu0 0.0
    %2826 = vmatpush1.msra.mxu0 0.0
    %2827 = vmatprep.subr.mxu0 0.0
    %2828 = vmatpush1.msra.mxu0 0.0
    %2829 = vmatprep.subr.mxu0 0.0
    %2830 = vmatpush1.msra.mxu0 0.0
    %2831 = vmatprep.subr.mxu0 0.0
    %2832 = vmatpush1.msra.mxu0 0.0
    %2833 = vmatprep.subr.mxu0 0.0
    %2834 = vmatpush1.msra.mxu0 0.0
    %2835 = vmatprep.subr.mxu0 0.0
    %2836 = vmatpush1.msra.mxu0 0.0
    %2837 = vmatprep.subr.mxu0 0.0
    %2838 = vmatpush1.msra.mxu0 0.0
    %2839 = vmatprep.subr.mxu0 0.0
    %2840 = vmatpush1.msra.mxu0 0.0
    %2841 = vmatprep.subr.mxu0 0.0
    %2842 = vmatpush1.msra.mxu0 0.0
    %2843 = vmatprep.subr.mxu0 0.0
    %2844 = vmatpush1.msra.mxu0 0.0
    %2845 = vmatprep.subr.mxu0 0.0
    %2846 = vmatpush1.msra.mxu0 0.0
    %2847 = vmatprep.subr.mxu0 0.0
    %2848 = vmatpush1.msra.mxu0 0.0
    %2849 = vmatprep.subr.mxu0 0.0
    %2850 = vmatpush1.msra.mxu0 0.0
    %2851 = vmatprep.subr.mxu0 0.0
    %2852 = vmatpush1.msra.mxu0 0.0
    %2853 = vmatprep.subr.mxu0 0.0
    %2854 = vmatpush1.msra.mxu0 0.0
    %2855 = vmatprep.subr.mxu0 0.0
    %2856 = vmatpush1.msra.mxu0 0.0
    %2857 = vmatprep.subr.mxu0 0.0
    %2858 = vmatpush1.msra.mxu0 0.0
    %2859 = vmatprep.subr.mxu0 0.0
    %2860 = vmatpush1.msra.mxu0 0.0
    %2861 = vmatprep.subr.mxu0 0.0
    %2862 = vmatpush1.msra.mxu0 0.0
    %2863 = vmatprep.subr.mxu0 0.0
    %2864 = vmatpush1.msra.mxu0 0.0
    %2865 = vmatprep.subr.mxu0 0.0
    %2866 = vmatpush1.msra.mxu0 0.0
    %2867 = vmatprep.mubr.f32.mxu0 0.0
    %2868 = vmatmul.mubr.f32.gmra.mrb[0].mxu0 %v2801
    %v2869 = vpop.f32.mrb[0].mxu0
    %v2870 = vadd.f32 0.0, %v2869
    %v2871 = vpop.f32.mrb[0].mxu0
    %2872 = vdwg.mxu0
    %v2873 = vadd.f32 %v2795, %v2870
    %v2874 = vadd.f32 %v2873, %v1645
    %v2875 = vxor.u32 %v2874, 2147483648
    %v2876 = vmul.f32 %v2875, 1.442695
    %v2877 = vpow.pop %v2876
    %v2878 = vadd.f32 %v2877, 1.0
    %v2879 = vrcp.pop %v2878
    %v2880 = vmul.f32 1.0, %v2879
    %v2881 = vadd.f32 %v2795, %v1656
    %v2882 = vadd.f32 %v2870, %v1661
    %2884 = vrot.lane.b32.xlu0 %v2882, 96
    %v2885 = vpop.permute.xlu0 %2884
    %v2887 = vmul.f32 %v2880, %v2885
    %2889 = vrot.lane.b32.xlu0 %v2887, 32
    %v2890 = vpop.permute.xlu0 %2889
    %v2892 = vadd.f32 %v2881, %v2890
    %v2893 = vtanh.pop %v2892
    %v2894 = vsub.f32 1.0, %v2880
    %2896 = vrot.lane.b32.xlu0 %v2893, 112
    %v2897 = vpop.permute.xlu0 %2896
    %v2899 = vmul.f32 %v2894, %v2897
    %v2900 = vmul.f32 %v2880, %v2725
    %v2901 = vadd.f32 %v2899, %v2900
    %vm2902 = vcmask 255104
    %2903 = vst.msk [vmem:[#allocation5] sm:$0x3] %vm2902, %v2901
    %s2904 = scalar_lea.vmem [#allocation2], 80
    %v2905 = vld [vmem:[%s2904] sm:$0xff]
    %v2906 = vld [vmem:[%s2904 + $0x8] sm:$0xff]
    %v2907 = vld [vmem:[%s2904 + $0x10] sm:$0xff]
    %v2908 = vld [vmem:[%s2904 + $0x18] sm:$0xff]
    %v2909 = vld [vmem:[%s2904 + $0x20] sm:$0x3]
    %v2911 = vrot.slane %v2909, 1
    %v2913 = vadd.f32 %v2909, %v2911
    %2914 = vmatprep.subr.mxu0 0.0
    %2915 = vmatpush1.msra.mxu0 %v2905
    %2916 = vmatprep.subr.mxu0 0.0
    %2917 = vmatpush1.msra.mxu0 %v2906
    %2918 = vmatprep.subr.mxu0 0.0
    %2919 = vmatpush1.msra.mxu0 0.0
    %2920 = vmatprep.subr.mxu0 0.0
    %2921 = vmatpush1.msra.mxu0 0.0
    %2922 = vmatprep.subr.mxu0 0.0
    %2923 = vmatpush1.msra.mxu0 0.0
    %2924 = vmatprep.subr.mxu0 0.0
    %2925 = vmatpush1.msra.mxu0 0.0
    %2926 = vmatprep.subr.mxu0 0.0
    %2927 = vmatpush1.msra.mxu0 0.0
    %2928 = vmatprep.subr.mxu0 0.0
    %2929 = vmatpush1.msra.mxu0 0.0
    %2930 = vmatprep.subr.mxu0 0.0
    %2931 = vmatpush1.msra.mxu0 0.0
    %2932 = vmatprep.subr.mxu0 0.0
    %2933 = vmatpush1.msra.mxu0 0.0
    %2934 = vmatprep.subr.mxu0 0.0
    %2935 = vmatpush1.msra.mxu0 0.0
    %2936 = vmatprep.subr.mxu0 0.0
    %2937 = vmatpush1.msra.mxu0 0.0
    %2938 = vmatprep.subr.mxu0 0.0
    %2939 = vmatpush1.msra.mxu0 0.0
    %2940 = vmatprep.subr.mxu0 0.0
    %2941 = vmatpush1.msra.mxu0 0.0
    %2942 = vmatprep.subr.mxu0 0.0
    %2943 = vmatpush1.msra.mxu0 0.0
    %2944 = vmatprep.subr.mxu0 0.0
    %2945 = vmatpush1.msra.mxu0 0.0
    %2946 = vmatprep.subr.mxu0 0.0
    %2947 = vmatpush1.msra.mxu0 0.0
    %2948 = vmatprep.subr.mxu0 0.0
    %2949 = vmatpush1.msra.mxu0 0.0
    %2950 = vmatprep.subr.mxu0 0.0
    %2951 = vmatpush1.msra.mxu0 0.0
    %2952 = vmatprep.subr.mxu0 0.0
    %2953 = vmatpush1.msra.mxu0 0.0
    %2954 = vmatprep.subr.mxu0 0.0
    %2955 = vmatpush1.msra.mxu0 0.0
    %2956 = vmatprep.subr.mxu0 0.0
    %2957 = vmatpush1.msra.mxu0 0.0
    %2958 = vmatprep.subr.mxu0 0.0
    %2959 = vmatpush1.msra.mxu0 0.0
    %2960 = vmatprep.subr.mxu0 0.0
    %2961 = vmatpush1.msra.mxu0 0.0
    %2962 = vmatprep.subr.mxu0 0.0
    %2963 = vmatpush1.msra.mxu0 0.0
    %2964 = vmatprep.subr.mxu0 0.0
    %2965 = vmatpush1.msra.mxu0 0.0
    %2966 = vmatprep.subr.mxu0 0.0
    %2967 = vmatpush1.msra.mxu0 0.0
    %2968 = vmatprep.subr.mxu0 0.0
    %2969 = vmatpush1.msra.mxu0 0.0
    %2970 = vmatprep.subr.mxu0 0.0
    %2971 = vmatpush1.msra.mxu0 0.0
    %2972 = vmatprep.subr.mxu0 0.0
    %2973 = vmatpush1.msra.mxu0 0.0
    %2974 = vmatprep.subr.mxu0 0.0
    %2975 = vmatpush1.msra.mxu0 0.0
    %2976 = vmatprep.subr.mxu0 0.0
    %2977 = vmatpush1.msra.mxu0 0.0
    %2978 = vmatprep.mubr.f32.mxu0 0.0
    %2979 = vmatmul.mubr.f32.gmra.mrb[0].mxu0 %v1755
    %v2980 = vpop.f32.mrb[0].mxu0
    %v2981 = vadd.f32 0.0, %v2980
    %v2982 = vpop.f32.mrb[0].mxu0
    %2983 = vdwg.mxu0
    %2984 = vmatprep.subr.mxu0 0.0
    %2985 = vmatpush1.msra.mxu0 %v2907
    %2986 = vmatprep.subr.mxu0 0.0
    %2987 = vmatpush1.msra.mxu0 %v2908
    %2988 = vmatprep.subr.mxu0 0.0
    %2989 = vmatpush1.msra.mxu0 0.0
    %2990 = vmatprep.subr.mxu0 0.0
    %2991 = vmatpush1.msra.mxu0 0.0
    %2992 = vmatprep.subr.mxu0 0.0
    %2993 = vmatpush1.msra.mxu0 0.0
    %2994 = vmatprep.subr.mxu0 0.0
    %2995 = vmatpush1.msra.mxu0 0.0
    %2996 = vmatprep.subr.mxu0 0.0
    %2997 = vmatpush1.msra.mxu0 0.0
    %2998 = vmatprep.subr.mxu0 0.0
    %2999 = vmatpush1.msra.mxu0 0.0
    %3000 = vmatprep.subr.mxu0 0.0
    %3001 = vmatpush1.msra.mxu0 0.0
    %3002 = vmatprep.subr.mxu0 0.0
    %3003 = vmatpush1.msra.mxu0 0.0
    %3004 = vmatprep.subr.mxu0 0.0
    %3005 = vmatpush1.msra.mxu0 0.0
    %3006 = vmatprep.subr.mxu0 0.0
    %3007 = vmatpush1.msra.mxu0 0.0
    %3008 = vmatprep.subr.mxu0 0.0
    %3009 = vmatpush1.msra.mxu0 0.0
    %3010 = vmatprep.subr.mxu0 0.0
    %3011 = vmatpush1.msra.mxu0 0.0
    %3012 = vmatprep.subr.mxu0 0.0
    %3013 = vmatpush1.msra.mxu0 0.0
    %3014 = vmatprep.subr.mxu0 0.0
    %3015 = vmatpush1.msra.mxu0 0.0
    %3016 = vmatprep.subr.mxu0 0.0
    %3017 = vmatpush1.msra.mxu0 0.0
    %3018 = vmatprep.subr.mxu0 0.0
    %3019 = vmatpush1.msra.mxu0 0.0
    %3020 = vmatprep.subr.mxu0 0.0
    %3021 = vmatpush1.msra.mxu0 0.0
    %3022 = vmatprep.subr.mxu0 0.0
    %3023 = vmatpush1.msra.mxu0 0.0
    %3024 = vmatprep.subr.mxu0 0.0
    %3025 = vmatpush1.msra.mxu0 0.0
    %3026 = vmatprep.subr.mxu0 0.0
    %3027 = vmatpush1.msra.mxu0 0.0
    %3028 = vmatprep.subr.mxu0 0.0
    %3029 = vmatpush1.msra.mxu0 0.0
    %3030 = vmatprep.subr.mxu0 0.0
    %3031 = vmatpush1.msra.mxu0 0.0
    %3032 = vmatprep.subr.mxu0 0.0
    %3033 = vmatpush1.msra.mxu0 0.0
    %3034 = vmatprep.subr.mxu0 0.0
    %3035 = vmatpush1.msra.mxu0 0.0
    %3036 = vmatprep.subr.mxu0 0.0
    %3037 = vmatpush1.msra.mxu0 0.0
    %3038 = vmatprep.subr.mxu0 0.0
    %3039 = vmatpush1.msra.mxu0 0.0
    %3040 = vmatprep.subr.mxu0 0.0
    %3041 = vmatpush1.msra.mxu0 0.0
    %3042 = vmatprep.subr.mxu0 0.0
    %3043 = vmatpush1.msra.mxu0 0.0
    %3044 = vmatprep.subr.mxu0 0.0
    %3045 = vmatpush1.msra.mxu0 0.0
    %3046 = vmatprep.subr.mxu0 0.0
    %3047 = vmatpush1.msra.mxu0 0.0
    %3048 = vmatprep.mubr.f32.mxu0 0.0
    %3049 = vmatmul.mubr.f32.gmra.mrb[0].mxu0 %v120
    %v3050 = vpop.f32.mrb[0].mxu0
    %v3051 = vadd.f32 0.0, %v3050
    %v3052 = vpop.f32.mrb[0].mxu0
    %3053 = vdwg.mxu0
    %v3054 = vadd.f32 %v2981, %v3051
    %v3055 = vlaneseq
    %v3056 = vshrl.u32 %v3055, 7
    %v3057 = vsub.s32 0, %v3056
    %v3058 = vrot.slane %v2913, %v3057
    %v3059 = vadd.f32 %v3054, %v3058
    %v3060 = vxor.u32 %v3059, 2147483648
    %v3061 = vmul.f32 %v3060, 1.442695
    %v3062 = vpow.pop %v3061
    %v3063 = vadd.f32 %v3062, 1.0
    %v3064 = vrcp.pop %v3063
    %v3065 = vmul.f32 1.0, %v3064
    %v3066 = vlaneseq
    %v3067 = vshrl.u32 %v3066, 7
    %v3068 = vsub.s32 0, %v3067
    %v3069 = vrot.slane %v2909, %v3068
    %v3070 = vadd.f32 %v2981, %v3069
    %v3071 = vlaneseq
    %v3072 = vshrl.u32 %v3071, 7
    %v3073 = vsub.s32 1, %v3072
    %v3074 = vrot.slane %v2909, %v3073
    %v3075 = vadd.f32 %v3051, %v3074
    %3077 = vrot.lane.b32.xlu0 %v3075, 96
    %v3078 = vpop.permute.xlu0 %3077
    %v3080 = vmul.f32 %v3065, %v3078
    %3082 = vrot.lane.b32.xlu0 %v3080, 32
    %v3083 = vpop.permute.xlu0 %3082
    %v3085 = vadd.f32 %v3070, %v3083
    %v3086 = vtanh.pop %v3085
    %v3087 = vsub.f32 1.0, %v3065
    %3089 = vrot.lane.b32.xlu0 %v3086, 112
    %v3090 = vpop.permute.xlu0 %3089
    %v3092 = vmul.f32 %v3087, %v3090
    %v3093 = vmul.f32 %v3065, 0.0
    %v3094 = vadd.f32 %v3092, %v3093
    %3095 = vmatprep.subr.mxu0 0.0
    %3096 = vmatpush1.msra.mxu0 %v2905
    %3097 = vmatprep.subr.mxu0 0.0
    %3098 = vmatpush1.msra.mxu0 %v2906
    %3099 = vmatprep.subr.mxu0 0.0
    %3100 = vmatpush1.msra.mxu0 0.0
    %3101 = vmatprep.subr.mxu0 0.0
    %3102 = vmatpush1.msra.mxu0 0.0
    %3103 = vmatprep.subr.mxu0 0.0
    %3104 = vmatpush1.msra.mxu0 0.0
    %3105 = vmatprep.subr.mxu0 0.0
    %3106 = vmatpush1.msra.mxu0 0.0
    %3107 = vmatprep.subr.mxu0 0.0
    %3108 = vmatpush1.msra.mxu0 0.0
    %3109 = vmatprep.subr.mxu0 0.0
    %3110 = vmatpush1.msra.mxu0 0.0
    %3111 = vmatprep.subr.mxu0 0.0
    %3112 = vmatpush1.msra.mxu0 0.0
    %3113 = vmatprep.subr.mxu0 0.0
    %3114 = vmatpush1.msra.mxu0 0.0
    %3115 = vmatprep.subr.mxu0 0.0
    %3116 = vmatpush1.msra.mxu0 0.0
    %3117 = vmatprep.subr.mxu0 0.0
    %3118 = vmatpush1.msra.mxu0 0.0
    %3119 = vmatprep.subr.mxu0 0.0
    %3120 = vmatpush1.msra.mxu0 0.0
    %3121 = vmatprep.subr.mxu0 0.0
    %3122 = vmatpush1.msra.mxu0 0.0
    %3123 = vmatprep.subr.mxu0 0.0
    %3124 = vmatpush1.msra.mxu0 0.0
    %3125 = vmatprep.subr.mxu0 0.0
    %3126 = vmatpush1.msra.mxu0 0.0
    %3127 = vmatprep.subr.mxu0 0.0
    %3128 = vmatpush1.msra.mxu0 0.0
    %3129 = vmatprep.subr.mxu0 0.0
    %3130 = vmatpush1.msra.mxu0 0.0
    %3131 = vmatprep.subr.mxu0 0.0
    %3132 = vmatpush1.msra.mxu0 0.0
    %3133 = vmatprep.subr.mxu0 0.0
    %3134 = vmatpush1.msra.mxu0 0.0
    %3135 = vmatprep.subr.mxu0 0.0
    %3136 = vmatpush1.msra.mxu0 0.0
    %3137 = vmatprep.subr.mxu0 0.0
    %3138 = vmatpush1.msra.mxu0 0.0
    %3139 = vmatprep.subr.mxu0 0.0
    %3140 = vmatpush1.msra.mxu0 0.0
    %3141 = vmatprep.subr.mxu0 0.0
    %3142 = vmatpush1.msra.mxu0 0.0
    %3143 = vmatprep.subr.mxu0 0.0
    %3144 = vmatpush1.msra.mxu0 0.0
    %3145 = vmatprep.subr.mxu0 0.0
    %3146 = vmatpush1.msra.mxu0 0.0
    %3147 = vmatprep.subr.mxu0 0.0
    %3148 = vmatpush1.msra.mxu0 0.0
    %3149 = vmatprep.subr.mxu0 0.0
    %3150 = vmatpush1.msra.mxu0 0.0
    %3151 = vmatprep.subr.mxu0 0.0
    %3152 = vmatpush1.msra.mxu0 0.0
    %3153 = vmatprep.subr.mxu0 0.0
    %3154 = vmatpush1.msra.mxu0 0.0
    %3155 = vmatprep.subr.mxu0 0.0
    %3156 = vmatpush1.msra.mxu0 0.0
    %3157 = vmatprep.subr.mxu0 0.0
    %3158 = vmatpush1.msra.mxu0 0.0
    %3159 = vmatprep.mubr.f32.mxu0 0.0
    %3160 = vmatmul.mubr.f32.gmra.mrb[0].mxu0 %v1929
    %v3161 = vpop.f32.mrb[0].mxu0
    %v3162 = vadd.f32 0.0, %v3161
    %v3163 = vpop.f32.mrb[0].mxu0
    %3164 = vdwg.mxu0
    %3166 = vrot.lane.b32.xlu0 %v3094, 112
    %v3167 = vpop.permute.xlu0 %3166
    %v3168 = vsel %vm118, %v3167, 0
    %3170 = vmatprep.subr.mxu0 0.0
    %3171 = vmatpush1.msra.mxu0 %v2907
    %3172 = vmatprep.subr.mxu0 0.0
    %3173 = vmatpush1.msra.mxu0 %v2908
    %3174 = vmatprep.subr.mxu0 0.0
    %3175 = vmatpush1.msra.mxu0 0.0
    %3176 = vmatprep.subr.mxu0 0.0
    %3177 = vmatpush1.msra.mxu0 0.0
    %3178 = vmatprep.subr.mxu0 0.0
    %3179 = vmatpush1.msra.mxu0 0.0
    %3180 = vmatprep.subr.mxu0 0.0
    %3181 = vmatpush1.msra.mxu0 0.0
    %3182 = vmatprep.subr.mxu0 0.0
    %3183 = vmatpush1.msra.mxu0 0.0
    %3184 = vmatprep.subr.mxu0 0.0
    %3185 = vmatpush1.msra.mxu0 0.0
    %3186 = vmatprep.subr.mxu0 0.0
    %3187 = vmatpush1.msra.mxu0 0.0
    %3188 = vmatprep.subr.mxu0 0.0
    %3189 = vmatpush1.msra.mxu0 0.0
    %3190 = vmatprep.subr.mxu0 0.0
    %3191 = vmatpush1.msra.mxu0 0.0
    %3192 = vmatprep.subr.mxu0 0.0
    %3193 = vmatpush1.msra.mxu0 0.0
    %3194 = vmatprep.subr.mxu0 0.0
    %3195 = vmatpush1.msra.mxu0 0.0
    %3196 = vmatprep.subr.mxu0 0.0
    %3197 = vmatpush1.msra.mxu0 0.0
    %3198 = vmatprep.subr.mxu0 0.0
    %3199 = vmatpush1.msra.mxu0 0.0
    %3200 = vmatprep.subr.mxu0 0.0
    %3201 = vmatpush1.msra.mxu0 0.0
    %3202 = vmatprep.subr.mxu0 0.0
    %3203 = vmatpush1.msra.mxu0 0.0
    %3204 = vmatprep.subr.mxu0 0.0
    %3205 = vmatpush1.msra.mxu0 0.0
    %3206 = vmatprep.subr.mxu0 0.0
    %3207 = vmatpush1.msra.mxu0 0.0
    %3208 = vmatprep.subr.mxu0 0.0
    %3209 = vmatpush1.msra.mxu0 0.0
    %3210 = vmatprep.subr.mxu0 0.0
    %3211 = vmatpush1.msra.mxu0 0.0
    %3212 = vmatprep.subr.mxu0 0.0
    %3213 = vmatpush1.msra.mxu0 0.0
    %3214 = vmatprep.subr.mxu0 0.0
    %3215 = vmatpush1.msra.mxu0 0.0
    %3216 = vmatprep.subr.mxu0 0.0
    %3217 = vmatpush1.msra.mxu0 0.0
    %3218 = vmatprep.subr.mxu0 0.0
    %3219 = vmatpush1.msra.mxu0 0.0
    %3220 = vmatprep.subr.mxu0 0.0
    %3221 = vmatpush1.msra.mxu0 0.0
    %3222 = vmatprep.subr.mxu0 0.0
    %3223 = vmatpush1.msra.mxu0 0.0
    %3224 = vmatprep.subr.mxu0 0.0
    %3225 = vmatpush1.msra.mxu0 0.0
    %3226 = vmatprep.subr.mxu0 0.0
    %3227 = vmatpush1.msra.mxu0 0.0
    %3228 = vmatprep.subr.mxu0 0.0
    %3229 = vmatpush1.msra.mxu0 0.0
    %3230 = vmatprep.subr.mxu0 0.0
    %3231 = vmatpush1.msra.mxu0 0.0
    %3232 = vmatprep.subr.mxu0 0.0
    %3233 = vmatpush1.msra.mxu0 0.0
    %3234 = vmatprep.mubr.f32.mxu0 0.0
    %3235 = vmatmul.mubr.f32.gmra.mrb[0].mxu0 %v3168
    %v3236 = vpop.f32.mrb[0].mxu0
    %v3237 = vadd.f32 0.0, %v3236
    %v3238 = vpop.f32.mrb[0].mxu0
    %3239 = vdwg.mxu0
    %v3240 = vadd.f32 %v3162, %v3237
    %v3241 = vadd.f32 %v3240, %v3058
    %v3242 = vxor.u32 %v3241, 2147483648
    %v3243 = vmul.f32 %v3242, 1.442695
    %v3244 = vpow.pop %v3243
    %v3245 = vadd.f32 %v3244, 1.0
    %v3246 = vrcp.pop %v3245
    %v3247 = vmul.f32 1.0, %v3246
    %v3248 = vadd.f32 %v3162, %v3069
    %v3249 = vadd.f32 %v3237, %v3074
    %3251 = vrot.lane.b32.xlu0 %v3249, 96
    %v3252 = vpop.permute.xlu0 %3251
    %v3254 = vmul.f32 %v3247, %v3252
    %3256 = vrot.lane.b32.xlu0 %v3254, 32
    %v3257 = vpop.permute.xlu0 %3256
    %v3259 = vadd.f32 %v3248, %v3257
    %v3260 = vtanh.pop %v3259
    %v3261 = vsub.f32 1.0, %v3247
    %3263 = vrot.lane.b32.xlu0 %v3260, 112
    %v3264 = vpop.permute.xlu0 %3263
    %v3266 = vmul.f32 %v3261, %v3264
    %v3267 = vmul.f32 %v3247, %v3094
    %v3268 = vadd.f32 %v3266, %v3267
    %3269 = vmatprep.subr.mxu0 0.0
    %3270 = vmatpush1.msra.mxu0 %v2905
    %3271 = vmatprep.subr.mxu0 0.0
    %3272 = vmatpush1.msra.mxu0 %v2906
    %3273 = vmatprep.subr.mxu0 0.0
    %3274 = vmatpush1.msra.mxu0 0.0
    %3275 = vmatprep.subr.mxu0 0.0
    %3276 = vmatpush1.msra.mxu0 0.0
    %3277 = vmatprep.subr.mxu0 0.0
    %3278 = vmatpush1.msra.mxu0 0.0
    %3279 = vmatprep.subr.mxu0 0.0
    %3280 = vmatpush1.msra.mxu0 0.0
    %3281 = vmatprep.subr.mxu0 0.0
    %3282 = vmatpush1.msra.mxu0 0.0
    %3283 = vmatprep.subr.mxu0 0.0
    %3284 = vmatpush1.msra.mxu0 0.0
    %3285 = vmatprep.subr.mxu0 0.0
    %3286 = vmatpush1.msra.mxu0 0.0
    %3287 = vmatprep.subr.mxu0 0.0
    %3288 = vmatpush1.msra.mxu0 0.0
    %3289 = vmatprep.subr.mxu0 0.0
    %3290 = vmatpush1.msra.mxu0 0.0
    %3291 = vmatprep.subr.mxu0 0.0
    %3292 = vmatpush1.msra.mxu0 0.0
    %3293 = vmatprep.subr.mxu0 0.0
    %3294 = vmatpush1.msra.mxu0 0.0
    %3295 = vmatprep.subr.mxu0 0.0
    %3296 = vmatpush1.msra.mxu0 0.0
    %3297 = vmatprep.subr.mxu0 0.0
    %3298 = vmatpush1.msra.mxu0 0.0
    %3299 = vmatprep.subr.mxu0 0.0
    %3300 = vmatpush1.msra.mxu0 0.0
    %3301 = vmatprep.subr.mxu0 0.0
    %3302 = vmatpush1.msra.mxu0 0.0
    %3303 = vmatprep.subr.mxu0 0.0
    %3304 = vmatpush1.msra.mxu0 0.0
    %3305 = vmatprep.subr.mxu0 0.0
    %3306 = vmatpush1.msra.mxu0 0.0
    %3307 = vmatprep.subr.mxu0 0.0
    %3308 = vmatpush1.msra.mxu0 0.0
    %3309 = vmatprep.subr.mxu0 0.0
    %3310 = vmatpush1.msra.mxu0 0.0
    %3311 = vmatprep.subr.mxu0 0.0
    %3312 = vmatpush1.msra.mxu0 0.0
    %3313 = vmatprep.subr.mxu0 0.0
    %3314 = vmatpush1.msra.mxu0 0.0
    %3315 = vmatprep.subr.mxu0 0.0
    %3316 = vmatpush1.msra.mxu0 0.0
    %3317 = vmatprep.subr.mxu0 0.0
    %3318 = vmatpush1.msra.mxu0 0.0
    %3319 = vmatprep.subr.mxu0 0.0
    %3320 = vmatpush1.msra.mxu0 0.0
    %3321 = vmatprep.subr.mxu0 0.0
    %3322 = vmatpush1.msra.mxu0 0.0
    %3323 = vmatprep.subr.mxu0 0.0
    %3324 = vmatpush1.msra.mxu0 0.0
    %3325 = vmatprep.subr.mxu0 0.0
    %3326 = vmatpush1.msra.mxu0 0.0
    %3327 = vmatprep.subr.mxu0 0.0
    %3328 = vmatpush1.msra.mxu0 0.0
    %3329 = vmatprep.subr.mxu0 0.0
    %3330 = vmatpush1.msra.mxu0 0.0
    %3331 = vmatprep.subr.mxu0 0.0
    %3332 = vmatpush1.msra.mxu0 0.0
    %3333 = vmatprep.mubr.f32.mxu0 0.0
    %3334 = vmatmul.mubr.f32.gmra.mrb[0].mxu0 %v2103
    %v3335 = vpop.f32.mrb[0].mxu0
    %v3336 = vadd.f32 0.0, %v3335
    %v3337 = vpop.f32.mrb[0].mxu0
    %3338 = vdwg.mxu0
    %3340 = vrot.lane.b32.xlu0 %v3268, 112
    %v3341 = vpop.permute.xlu0 %3340
    %v3342 = vsel %vm118, %v3341, 0
    %3344 = vmatprep.subr.mxu0 0.0
    %3345 = vmatpush1.msra.mxu0 %v2907
    %3346 = vmatprep.subr.mxu0 0.0
    %3347 = vmatpush1.msra.mxu0 %v2908
    %3348 = vmatprep.subr.mxu0 0.0
    %3349 = vmatpush1.msra.mxu0 0.0
    %3350 = vmatprep.subr.mxu0 0.0
    %3351 = vmatpush1.msra.mxu0 0.0
    %3352 = vmatprep.subr.mxu0 0.0
    %3353 = vmatpush1.msra.mxu0 0.0
    %3354 = vmatprep.subr.mxu0 0.0
    %3355 = vmatpush1.msra.mxu0 0.0
    %3356 = vmatprep.subr.mxu0 0.0
    %3357 = vmatpush1.msra.mxu0 0.0
    %3358 = vmatprep.subr.mxu0 0.0
    %3359 = vmatpush1.msra.mxu0 0.0
    %3360 = vmatprep.subr.mxu0 0.0
    %3361 = vmatpush1.msra.mxu0 0.0
    %3362 = vmatprep.subr.mxu0 0.0
    %3363 = vmatpush1.msra.mxu0 0.0
    %3364 = vmatprep.subr.mxu0 0.0
    %3365 = vmatpush1.msra.mxu0 0.0
    %3366 = vmatprep.subr.mxu0 0.0
    %3367 = vmatpush1.msra.mxu0 0.0
    %3368 = vmatprep.subr.mxu0 0.0
    %3369 = vmatpush1.msra.mxu0 0.0
    %3370 = vmatprep.subr.mxu0 0.0
    %3371 = vmatpush1.msra.mxu0 0.0
    %3372 = vmatprep.subr.mxu0 0.0
    %3373 = vmatpush1.msra.mxu0 0.0
    %3374 = vmatprep.subr.mxu0 0.0
    %3375 = vmatpush1.msra.mxu0 0.0
    %3376 = vmatprep.subr.mxu0 0.0
    %3377 = vmatpush1.msra.mxu0 0.0
    %3378 = vmatprep.subr.mxu0 0.0
    %3379 = vmatpush1.msra.mxu0 0.0
    %3380 = vmatprep.subr.mxu0 0.0
    %3381 = vmatpush1.msra.mxu0 0.0
    %3382 = vmatprep.subr.mxu0 0.0
    %3383 = vmatpush1.msra.mxu0 0.0
    %3384 = vmatprep.subr.mxu0 0.0
    %3385 = vmatpush1.msra.mxu0 0.0
    %3386 = vmatprep.subr.mxu0 0.0
    %3387 = vmatpush1.msra.mxu0 0.0
    %3388 = vmatprep.subr.mxu0 0.0
    %3389 = vmatpush1.msra.mxu0 0.0
    %3390 = vmatprep.subr.mxu0 0.0
    %3391 = vmatpush1.msra.mxu0 0.0
    %3392 = vmatprep.subr.mxu0 0.0
    %3393 = vmatpush1.msra.mxu0 0.0
    %3394 = vmatprep.subr.mxu0 0.0
    %3395 = vmatpush1.msra.mxu0 0.0
    %3396 = vmatprep.subr.mxu0 0.0
    %3397 = vmatpush1.msra.mxu0 0.0
    %3398 = vmatprep.subr.mxu0 0.0
    %3399 = vmatpush1.msra.mxu0 0.0
    %3400 = vmatprep.subr.mxu0 0.0
    %3401 = vmatpush1.msra.mxu0 0.0
    %3402 = vmatprep.subr.mxu0 0.0
    %3403 = vmatpush1.msra.mxu0 0.0
    %3404 = vmatprep.subr.mxu0 0.0
    %3405 = vmatpush1.msra.mxu0 0.0
    %3406 = vmatprep.subr.mxu0 0.0
    %3407 = vmatpush1.msra.mxu0 0.0
    %3408 = vmatprep.mubr.f32.mxu0 0.0
    %3409 = vmatmul.mubr.f32.gmra.mrb[0].mxu0 %v3342
    %v3410 = vpop.f32.mrb[0].mxu0
    %v3411 = vadd.f32 0.0, %v3410
    %v3412 = vpop.f32.mrb[0].mxu0
    %3413 = vdwg.mxu0
    %v3414 = vadd.f32 %v3336, %v3411
    %v3415 = vadd.f32 %v3414, %v3058
    %v3416 = vxor.u32 %v3415, 2147483648
    %v3417 = vmul.f32 %v3416, 1.442695
    %v3418 = vpow.pop %v3417
    %v3419 = vadd.f32 %v3418, 1.0
    %v3420 = vrcp.pop %v3419
    %v3421 = vmul.f32 1.0, %v3420
    %v3422 = vadd.f32 %v3336, %v3069
    %v3423 = vadd.f32 %v3411, %v3074
    %3425 = vrot.lane.b32.xlu0 %v3423, 96
    %v3426 = vpop.permute.xlu0 %3425
    %v3428 = vmul.f32 %v3421, %v3426
    %3430 = vrot.lane.b32.xlu0 %v3428, 32
    %v3431 = vpop.permute.xlu0 %3430
    %v3433 = vadd.f32 %v3422, %v3431
    %v3434 = vtanh.pop %v3433
    %v3435 = vsub.f32 1.0, %v3421
    %3437 = vrot.lane.b32.xlu0 %v3434, 112
    %v3438 = vpop.permute.xlu0 %3437
    %v3440 = vmul.f32 %v3435, %v3438
    %v3441 = vmul.f32 %v3421, %v3268
    %v3442 = vadd.f32 %v3440, %v3441
    %3443 = vmatprep.subr.mxu0 0.0
    %3444 = vmatpush1.msra.mxu0 %v2905
    %3445 = vmatprep.subr.mxu0 0.0
    %3446 = vmatpush1.msra.mxu0 %v2906
    %3447 = vmatprep.subr.mxu0 0.0
    %3448 = vmatpush1.msra.mxu0 0.0
    %3449 = vmatprep.subr.mxu0 0.0
    %3450 = vmatpush1.msra.mxu0 0.0
    %3451 = vmatprep.subr.mxu0 0.0
    %3452 = vmatpush1.msra.mxu0 0.0
    %3453 = vmatprep.subr.mxu0 0.0
    %3454 = vmatpush1.msra.mxu0 0.0
    %3455 = vmatprep.subr.mxu0 0.0
    %3456 = vmatpush1.msra.mxu0 0.0
    %3457 = vmatprep.subr.mxu0 0.0
    %3458 = vmatpush1.msra.mxu0 0.0
    %3459 = vmatprep.subr.mxu0 0.0
    %3460 = vmatpush1.msra.mxu0 0.0
    %3461 = vmatprep.subr.mxu0 0.0
    %3462 = vmatpush1.msra.mxu0 0.0
    %3463 = vmatprep.subr.mxu0 0.0
    %3464 = vmatpush1.msra.mxu0 0.0
    %3465 = vmatprep.subr.mxu0 0.0
    %3466 = vmatpush1.msra.mxu0 0.0
    %3467 = vmatprep.subr.mxu0 0.0
    %3468 = vmatpush1.msra.mxu0 0.0
    %3469 = vmatprep.subr.mxu0 0.0
    %3470 = vmatpush1.msra.mxu0 0.0
    %3471 = vmatprep.subr.mxu0 0.0
    %3472 = vmatpush1.msra.mxu0 0.0
    %3473 = vmatprep.subr.mxu0 0.0
    %3474 = vmatpush1.msra.mxu0 0.0
    %3475 = vmatprep.subr.mxu0 0.0
    %3476 = vmatpush1.msra.mxu0 0.0
    %3477 = vmatprep.subr.mxu0 0.0
    %3478 = vmatpush1.msra.mxu0 0.0
    %3479 = vmatprep.subr.mxu0 0.0
    %3480 = vmatpush1.msra.mxu0 0.0
    %3481 = vmatprep.subr.mxu0 0.0
    %3482 = vmatpush1.msra.mxu0 0.0
    %3483 = vmatprep.subr.mxu0 0.0
    %3484 = vmatpush1.msra.mxu0 0.0
    %3485 = vmatprep.subr.mxu0 0.0
    %3486 = vmatpush1.msra.mxu0 0.0
    %3487 = vmatprep.subr.mxu0 0.0
    %3488 = vmatpush1.msra.mxu0 0.0
    %3489 = vmatprep.subr.mxu0 0.0
    %3490 = vmatpush1.msra.mxu0 0.0
    %3491 = vmatprep.subr.mxu0 0.0
    %3492 = vmatpush1.msra.mxu0 0.0
    %3493 = vmatprep.subr.mxu0 0.0
    %3494 = vmatpush1.msra.mxu0 0.0
    %3495 = vmatprep.subr.mxu0 0.0
    %3496 = vmatpush1.msra.mxu0 0.0
    %3497 = vmatprep.subr.mxu0 0.0
    %3498 = vmatpush1.msra.mxu0 0.0
    %3499 = vmatprep.subr.mxu0 0.0
    %3500 = vmatpush1.msra.mxu0 0.0
    %3501 = vmatprep.subr.mxu0 0.0
    %3502 = vmatpush1.msra.mxu0 0.0
    %3503 = vmatprep.subr.mxu0 0.0
    %3504 = vmatpush1.msra.mxu0 0.0
    %3505 = vmatprep.subr.mxu0 0.0
    %3506 = vmatpush1.msra.mxu0 0.0
    %3507 = vmatprep.mubr.f32.mxu0 0.0
    %3508 = vmatmul.mubr.f32.gmra.mrb[0].mxu0 %v2277
    %v3509 = vpop.f32.mrb[0].mxu0
    %v3510 = vadd.f32 0.0, %v3509
    %v3511 = vpop.f32.mrb[0].mxu0
    %3512 = vdwg.mxu0
    %3514 = vrot.lane.b32.xlu0 %v3442, 112
    %v3515 = vpop.permute.xlu0 %3514
    %v3516 = vsel %vm118, %v3515, 0
    %3518 = vmatprep.subr.mxu0 0.0
    %3519 = vmatpush1.msra.mxu0 %v2907
    %3520 = vmatprep.subr.mxu0 0.0
    %3521 = vmatpush1.msra.mxu0 %v2908
    %3522 = vmatprep.subr.mxu0 0.0
    %3523 = vmatpush1.msra.mxu0 0.0
    %3524 = vmatprep.subr.mxu0 0.0
    %3525 = vmatpush1.msra.mxu0 0.0
    %3526 = vmatprep.subr.mxu0 0.0
    %3527 = vmatpush1.msra.mxu0 0.0
    %3528 = vmatprep.subr.mxu0 0.0
    %3529 = vmatpush1.msra.mxu0 0.0
    %3530 = vmatprep.subr.mxu0 0.0
    %3531 = vmatpush1.msra.mxu0 0.0
    %3532 = vmatprep.subr.mxu0 0.0
    %3533 = vmatpush1.msra.mxu0 0.0
    %3534 = vmatprep.subr.mxu0 0.0
    %3535 = vmatpush1.msra.mxu0 0.0
    %3536 = vmatprep.subr.mxu0 0.0
    %3537 = vmatpush1.msra.mxu0 0.0
    %3538 = vmatprep.subr.mxu0 0.0
    %3539 = vmatpush1.msra.mxu0 0.0
    %3540 = vmatprep.subr.mxu0 0.0
    %3541 = vmatpush1.msra.mxu0 0.0
    %3542 = vmatprep.subr.mxu0 0.0
    %3543 = vmatpush1.msra.mxu0 0.0
    %3544 = vmatprep.subr.mxu0 0.0
    %3545 = vmatpush1.msra.mxu0 0.0
    %3546 = vmatprep.subr.mxu0 0.0
    %3547 = vmatpush1.msra.mxu0 0.0
    %3548 = vmatprep.subr.mxu0 0.0
    %3549 = vmatpush1.msra.mxu0 0.0
    %3550 = vmatprep.subr.mxu0 0.0
    %3551 = vmatpush1.msra.mxu0 0.0
    %3552 = vmatprep.subr.mxu0 0.0
    %3553 = vmatpush1.msra.mxu0 0.0
    %3554 = vmatprep.subr.mxu0 0.0
    %3555 = vmatpush1.msra.mxu0 0.0
    %3556 = vmatprep.subr.mxu0 0.0
    %3557 = vmatpush1.msra.mxu0 0.0
    %3558 = vmatprep.subr.mxu0 0.0
    %3559 = vmatpush1.msra.mxu0 0.0
    %3560 = vmatprep.subr.mxu0 0.0
    %3561 = vmatpush1.msra.mxu0 0.0
    %3562 = vmatprep.subr.mxu0 0.0
    %3563 = vmatpush1.msra.mxu0 0.0
    %3564 = vmatprep.subr.mxu0 0.0
    %3565 = vmatpush1.msra.mxu0 0.0
    %3566 = vmatprep.subr.mxu0 0.0
    %3567 = vmatpush1.msra.mxu0 0.0
    %3568 = vmatprep.subr.mxu0 0.0
    %3569 = vmatpush1.msra.mxu0 0.0
    %3570 = vmatprep.subr.mxu0 0.0
    %3571 = vmatpush1.msra.mxu0 0.0
    %3572 = vmatprep.subr.mxu0 0.0
    %3573 = vmatpush1.msra.mxu0 0.0
    %3574 = vmatprep.subr.mxu0 0.0
    %3575 = vmatpush1.msra.mxu0 0.0
    %3576 = vmatprep.subr.mxu0 0.0
    %3577 = vmatpush1.msra.mxu0 0.0
    %3578 = vmatprep.subr.mxu0 0.0
    %3579 = vmatpush1.msra.mxu0 0.0
    %3580 = vmatprep.subr.mxu0 0.0
    %3581 = vmatpush1.msra.mxu0 0.0
    %3582 = vmatprep.mubr.f32.mxu0 0.0
    %3583 = vmatmul.mubr.f32.gmra.mrb[0].mxu0 %v3516
    %v3584 = vpop.f32.mrb[0].mxu0
    %v3585 = vadd.f32 0.0, %v3584
    %v3586 = vpop.f32.mrb[0].mxu0
    %3587 = vdwg.mxu0
    %v3588 = vadd.f32 %v3510, %v3585
    %v3589 = vadd.f32 %v3588, %v3058
    %v3590 = vxor.u32 %v3589, 2147483648
    %v3591 = vmul.f32 %v3590, 1.442695
    %v3592 = vpow.pop %v3591
    %v3593 = vadd.f32 %v3592, 1.0
    %v3594 = vrcp.pop %v3593
    %v3595 = vmul.f32 1.0, %v3594
    %v3596 = vadd.f32 %v3510, %v3069
    %v3597 = vadd.f32 %v3585, %v3074
    %3599 = vrot.lane.b32.xlu0 %v3597, 96
    %v3600 = vpop.permute.xlu0 %3599
    %v3602 = vmul.f32 %v3595, %v3600
    %3604 = vrot.lane.b32.xlu0 %v3602, 32
    %v3605 = vpop.permute.xlu0 %3604
    %v3607 = vadd.f32 %v3596, %v3605
    %v3608 = vtanh.pop %v3607
    %v3609 = vsub.f32 1.0, %v3595
    %3611 = vrot.lane.b32.xlu0 %v3608, 112
    %v3612 = vpop.permute.xlu0 %3611
    %v3614 = vmul.f32 %v3609, %v3612
    %v3615 = vmul.f32 %v3595, %v3442
    %v3616 = vadd.f32 %v3614, %v3615
    %3617 = vmatprep.subr.mxu0 0.0
    %3618 = vmatpush1.msra.mxu0 %v2905
    %3619 = vmatprep.subr.mxu0 0.0
    %3620 = vmatpush1.msra.mxu0 %v2906
    %3621 = vmatprep.subr.mxu0 0.0
    %3622 = vmatpush1.msra.mxu0 0.0
    %3623 = vmatprep.subr.mxu0 0.0
    %3624 = vmatpush1.msra.mxu0 0.0
    %3625 = vmatprep.subr.mxu0 0.0
    %3626 = vmatpush1.msra.mxu0 0.0
    %3627 = vmatprep.subr.mxu0 0.0
    %3628 = vmatpush1.msra.mxu0 0.0
    %3629 = vmatprep.subr.mxu0 0.0
    %3630 = vmatpush1.msra.mxu0 0.0
    %3631 = vmatprep.subr.mxu0 0.0
    %3632 = vmatpush1.msra.mxu0 0.0
    %3633 = vmatprep.subr.mxu0 0.0
    %3634 = vmatpush1.msra.mxu0 0.0
    %3635 = vmatprep.subr.mxu0 0.0
    %3636 = vmatpush1.msra.mxu0 0.0
    %3637 = vmatprep.subr.mxu0 0.0
    %3638 = vmatpush1.msra.mxu0 0.0
    %3639 = vmatprep.subr.mxu0 0.0
    %3640 = vmatpush1.msra.mxu0 0.0
    %3641 = vmatprep.subr.mxu0 0.0
    %3642 = vmatpush1.msra.mxu0 0.0
    %3643 = vmatprep.subr.mxu0 0.0
    %3644 = vmatpush1.msra.mxu0 0.0
    %3645 = vmatprep.subr.mxu0 0.0
    %3646 = vmatpush1.msra.mxu0 0.0
    %3647 = vmatprep.subr.mxu0 0.0
    %3648 = vmatpush1.msra.mxu0 0.0
    %3649 = vmatprep.subr.mxu0 0.0
    %3650 = vmatpush1.msra.mxu0 0.0
    %3651 = vmatprep.subr.mxu0 0.0
    %3652 = vmatpush1.msra.mxu0 0.0
    %3653 = vmatprep.subr.mxu0 0.0
    %3654 = vmatpush1.msra.mxu0 0.0
    %3655 = vmatprep.subr.mxu0 0.0
    %3656 = vmatpush1.msra.mxu0 0.0
    %3657 = vmatprep.subr.mxu0 0.0
    %3658 = vmatpush1.msra.mxu0 0.0
    %3659 = vmatprep.subr.mxu0 0.0
    %3660 = vmatpush1.msra.mxu0 0.0
    %3661 = vmatprep.subr.mxu0 0.0
    %3662 = vmatpush1.msra.mxu0 0.0
    %3663 = vmatprep.subr.mxu0 0.0
    %3664 = vmatpush1.msra.mxu0 0.0
    %3665 = vmatprep.subr.mxu0 0.0
    %3666 = vmatpush1.msra.mxu0 0.0
    %3667 = vmatprep.subr.mxu0 0.0
    %3668 = vmatpush1.msra.mxu0 0.0
    %3669 = vmatprep.subr.mxu0 0.0
    %3670 = vmatpush1.msra.mxu0 0.0
    %3671 = vmatprep.subr.mxu0 0.0
    %3672 = vmatpush1.msra.mxu0 0.0
    %3673 = vmatprep.subr.mxu0 0.0
    %3674 = vmatpush1.msra.mxu0 0.0
    %3675 = vmatprep.subr.mxu0 0.0
    %3676 = vmatpush1.msra.mxu0 0.0
    %3677 = vmatprep.subr.mxu0 0.0
    %3678 = vmatpush1.msra.mxu0 0.0
    %3679 = vmatprep.subr.mxu0 0.0
    %3680 = vmatpush1.msra.mxu0 0.0
    %3681 = vmatprep.mubr.f32.mxu0 0.0
    %3682 = vmatmul.mubr.f32.gmra.mrb[0].mxu0 %v2451
    %v3683 = vpop.f32.mrb[0].mxu0
    %v3684 = vadd.f32 0.0, %v3683
    %v3685 = vpop.f32.mrb[0].mxu0
    %3686 = vdwg.mxu0
    %3688 = vrot.lane.b32.xlu0 %v3616, 112
    %v3689 = vpop.permute.xlu0 %3688
    %v3690 = vsel %vm118, %v3689, 0
    %3692 = vmatprep.subr.mxu0 0.0
    %3693 = vmatpush1.msra.mxu0 %v2907
    %3694 = vmatprep.subr.mxu0 0.0
    %3695 = vmatpush1.msra.mxu0 %v2908
    %3696 = vmatprep.subr.mxu0 0.0
    %3697 = vmatpush1.msra.mxu0 0.0
    %3698 = vmatprep.subr.mxu0 0.0
    %3699 = vmatpush1.msra.mxu0 0.0
    %3700 = vmatprep.subr.mxu0 0.0
    %3701 = vmatpush1.msra.mxu0 0.0
    %3702 = vmatprep.subr.mxu0 0.0
    %3703 = vmatpush1.msra.mxu0 0.0
    %3704 = vmatprep.subr.mxu0 0.0
    %3705 = vmatpush1.msra.mxu0 0.0
    %3706 = vmatprep.subr.mxu0 0.0
    %3707 = vmatpush1.msra.mxu0 0.0
    %3708 = vmatprep.subr.mxu0 0.0
    %3709 = vmatpush1.msra.mxu0 0.0
    %3710 = vmatprep.subr.mxu0 0.0
    %3711 = vmatpush1.msra.mxu0 0.0
    %3712 = vmatprep.subr.mxu0 0.0
    %3713 = vmatpush1.msra.mxu0 0.0
    %3714 = vmatprep.subr.mxu0 0.0
    %3715 = vmatpush1.msra.mxu0 0.0
    %3716 = vmatprep.subr.mxu0 0.0
    %3717 = vmatpush1.msra.mxu0 0.0
    %3718 = vmatprep.subr.mxu0 0.0
    %3719 = vmatpush1.msra.mxu0 0.0
    %3720 = vmatprep.subr.mxu0 0.0
    %3721 = vmatpush1.msra.mxu0 0.0
    %3722 = vmatprep.subr.mxu0 0.0
    %3723 = vmatpush1.msra.mxu0 0.0
    %3724 = vmatprep.subr.mxu0 0.0
    %3725 = vmatpush1.msra.mxu0 0.0
    %3726 = vmatprep.subr.mxu0 0.0
    %3727 = vmatpush1.msra.mxu0 0.0
    %3728 = vmatprep.subr.mxu0 0.0
    %3729 = vmatpush1.msra.mxu0 0.0
    %3730 = vmatprep.subr.mxu0 0.0
    %3731 = vmatpush1.msra.mxu0 0.0
    %3732 = vmatprep.subr.mxu0 0.0
    %3733 = vmatpush1.msra.mxu0 0.0
    %3734 = vmatprep.subr.mxu0 0.0
    %3735 = vmatpush1.msra.mxu0 0.0
    %3736 = vmatprep.subr.mxu0 0.0
    %3737 = vmatpush1.msra.mxu0 0.0
    %3738 = vmatprep.subr.mxu0 0.0
    %3739 = vmatpush1.msra.mxu0 0.0
    %3740 = vmatprep.subr.mxu0 0.0
    %3741 = vmatpush1.msra.mxu0 0.0
    %3742 = vmatprep.subr.mxu0 0.0
    %3743 = vmatpush1.msra.mxu0 0.0
    %3744 = vmatprep.subr.mxu0 0.0
    %3745 = vmatpush1.msra.mxu0 0.0
    %3746 = vmatprep.subr.mxu0 0.0
    %3747 = vmatpush1.msra.mxu0 0.0
    %3748 = vmatprep.subr.mxu0 0.0
    %3749 = vmatpush1.msra.mxu0 0.0
    %3750 = vmatprep.subr.mxu0 0.0
    %3751 = vmatpush1.msra.mxu0 0.0
    %3752 = vmatprep.subr.mxu0 0.0
    %3753 = vmatpush1.msra.mxu0 0.0
    %3754 = vmatprep.subr.mxu0 0.0
    %3755 = vmatpush1.msra.mxu0 0.0
    %3756 = vmatprep.mubr.f32.mxu0 0.0
    %3757 = vmatmul.mubr.f32.gmra.mrb[0].mxu0 %v3690
    %v3758 = vpop.f32.mrb[0].mxu0
    %v3759 = vadd.f32 0.0, %v3758
    %v3760 = vpop.f32.mrb[0].mxu0
    %3761 = vdwg.mxu0
    %v3762 = vadd.f32 %v3684, %v3759
    %v3763 = vadd.f32 %v3762, %v3058
    %v3764 = vxor.u32 %v3763, 2147483648
    %v3765 = vmul.f32 %v3764, 1.442695
    %v3766 = vpow.pop %v3765
    %v3767 = vadd.f32 %v3766, 1.0
    %v3768 = vrcp.pop %v3767
    %v3769 = vmul.f32 1.0, %v3768
    %v3770 = vadd.f32 %v3684, %v3069
    %v3771 = vadd.f32 %v3759, %v3074
    %3773 = vrot.lane.b32.xlu0 %v3771, 96
    %v3774 = vpop.permute.xlu0 %3773
    %v3776 = vmul.f32 %v3769, %v3774
    %3778 = vrot.lane.b32.xlu0 %v3776, 32
    %v3779 = vpop.permute.xlu0 %3778
    %v3781 = vadd.f32 %v3770, %v3779
    %v3782 = vtanh.pop %v3781
    %v3783 = vsub.f32 1.0, %v3769
    %3785 = vrot.lane.b32.xlu0 %v3782, 112
    %v3786 = vpop.permute.xlu0 %3785
    %v3788 = vmul.f32 %v3783, %v3786
    %v3789 = vmul.f32 %v3769, %v3616
    %v3790 = vadd.f32 %v3788, %v3789
    %3791 = vmatprep.subr.mxu0 0.0
    %3792 = vmatpush1.msra.mxu0 %v2905
    %3793 = vmatprep.subr.mxu0 0.0
    %3794 = vmatpush1.msra.mxu0 %v2906
    %3795 = vmatprep.subr.mxu0 0.0
    %3796 = vmatpush1.msra.mxu0 0.0
    %3797 = vmatprep.subr.mxu0 0.0
    %3798 = vmatpush1.msra.mxu0 0.0
    %3799 = vmatprep.subr.mxu0 0.0
    %3800 = vmatpush1.msra.mxu0 0.0
    %3801 = vmatprep.subr.mxu0 0.0
    %3802 = vmatpush1.msra.mxu0 0.0
    %3803 = vmatprep.subr.mxu0 0.0
    %3804 = vmatpush1.msra.mxu0 0.0
    %3805 = vmatprep.subr.mxu0 0.0
    %3806 = vmatpush1.msra.mxu0 0.0
    %3807 = vmatprep.subr.mxu0 0.0
    %3808 = vmatpush1.msra.mxu0 0.0
    %3809 = vmatprep.subr.mxu0 0.0
    %3810 = vmatpush1.msra.mxu0 0.0
    %3811 = vmatprep.subr.mxu0 0.0
    %3812 = vmatpush1.msra.mxu0 0.0
    %3813 = vmatprep.subr.mxu0 0.0
    %3814 = vmatpush1.msra.mxu0 0.0
    %3815 = vmatprep.subr.mxu0 0.0
    %3816 = vmatpush1.msra.mxu0 0.0
    %3817 = vmatprep.subr.mxu0 0.0
    %3818 = vmatpush1.msra.mxu0 0.0
    %3819 = vmatprep.subr.mxu0 0.0
    %3820 = vmatpush1.msra.mxu0 0.0
    %3821 = vmatprep.subr.mxu0 0.0
    %3822 = vmatpush1.msra.mxu0 0.0
    %3823 = vmatprep.subr.mxu0 0.0
    %3824 = vmatpush1.msra.mxu0 0.0
    %3825 = vmatprep.subr.mxu0 0.0
    %3826 = vmatpush1.msra.mxu0 0.0
    %3827 = vmatprep.subr.mxu0 0.0
    %3828 = vmatpush1.msra.mxu0 0.0
    %3829 = vmatprep.subr.mxu0 0.0
    %3830 = vmatpush1.msra.mxu0 0.0
    %3831 = vmatprep.subr.mxu0 0.0
    %3832 = vmatpush1.msra.mxu0 0.0
    %3833 = vmatprep.subr.mxu0 0.0
    %3834 = vmatpush1.msra.mxu0 0.0
    %3835 = vmatprep.subr.mxu0 0.0
    %3836 = vmatpush1.msra.mxu0 0.0
    %3837 = vmatprep.subr.mxu0 0.0
    %3838 = vmatpush1.msra.mxu0 0.0
    %3839 = vmatprep.subr.mxu0 0.0
    %3840 = vmatpush1.msra.mxu0 0.0
    %3841 = vmatprep.subr.mxu0 0.0
    %3842 = vmatpush1.msra.mxu0 0.0
    %3843 = vmatprep.subr.mxu0 0.0
    %3844 = vmatpush1.msra.mxu0 0.0
    %3845 = vmatprep.subr.mxu0 0.0
    %3846 = vmatpush1.msra.mxu0 0.0
    %3847 = vmatprep.subr.mxu0 0.0
    %3848 = vmatpush1.msra.mxu0 0.0
    %3849 = vmatprep.subr.mxu0 0.0
    %3850 = vmatpush1.msra.mxu0 0.0
    %3851 = vmatprep.subr.mxu0 0.0
    %3852 = vmatpush1.msra.mxu0 0.0
    %3853 = vmatprep.subr.mxu0 0.0
    %3854 = vmatpush1.msra.mxu0 0.0
    %3855 = vmatprep.mubr.f32.mxu0 0.0
    %3856 = vmatmul.mubr.f32.gmra.mrb[0].mxu0 %v2625
    %v3857 = vpop.f32.mrb[0].mxu0
    %v3858 = vadd.f32 0.0, %v3857
    %v3859 = vpop.f32.mrb[0].mxu0
    %3860 = vdwg.mxu0
    %3862 = vrot.lane.b32.xlu0 %v3790, 112
    %v3863 = vpop.permute.xlu0 %3862
    %v3864 = vsel %vm118, %v3863, 0
    %3866 = vmatprep.subr.mxu0 0.0
    %3867 = vmatpush1.msra.mxu0 %v2907
    %3868 = vmatprep.subr.mxu0 0.0
    %3869 = vmatpush1.msra.mxu0 %v2908
    %3870 = vmatprep.subr.mxu0 0.0
    %3871 = vmatpush1.msra.mxu0 0.0
    %3872 = vmatprep.subr.mxu0 0.0
    %3873 = vmatpush1.msra.mxu0 0.0
    %3874 = vmatprep.subr.mxu0 0.0
    %3875 = vmatpush1.msra.mxu0 0.0
    %3876 = vmatprep.subr.mxu0 0.0
    %3877 = vmatpush1.msra.mxu0 0.0
    %3878 = vmatprep.subr.mxu0 0.0
    %3879 = vmatpush1.msra.mxu0 0.0
    %3880 = vmatprep.subr.mxu0 0.0
    %3881 = vmatpush1.msra.mxu0 0.0
    %3882 = vmatprep.subr.mxu0 0.0
    %3883 = vmatpush1.msra.mxu0 0.0
    %3884 = vmatprep.subr.mxu0 0.0
    %3885 = vmatpush1.msra.mxu0 0.0
    %3886 = vmatprep.subr.mxu0 0.0
    %3887 = vmatpush1.msra.mxu0 0.0
    %3888 = vmatprep.subr.mxu0 0.0
    %3889 = vmatpush1.msra.mxu0 0.0
    %3890 = vmatprep.subr.mxu0 0.0
    %3891 = vmatpush1.msra.mxu0 0.0
    %3892 = vmatprep.subr.mxu0 0.0
    %3893 = vmatpush1.msra.mxu0 0.0
    %3894 = vmatprep.subr.mxu0 0.0
    %3895 = vmatpush1.msra.mxu0 0.0
    %3896 = vmatprep.subr.mxu0 0.0
    %3897 = vmatpush1.msra.mxu0 0.0
    %3898 = vmatprep.subr.mxu0 0.0
    %3899 = vmatpush1.msra.mxu0 0.0
    %3900 = vmatprep.subr.mxu0 0.0
    %3901 = vmatpush1.msra.mxu0 0.0
    %3902 = vmatprep.subr.mxu0 0.0
    %3903 = vmatpush1.msra.mxu0 0.0
    %3904 = vmatprep.subr.mxu0 0.0
    %3905 = vmatpush1.msra.mxu0 0.0
    %3906 = vmatprep.subr.mxu0 0.0
    %3907 = vmatpush1.msra.mxu0 0.0
    %3908 = vmatprep.subr.mxu0 0.0
    %3909 = vmatpush1.msra.mxu0 0.0
    %3910 = vmatprep.subr.mxu0 0.0
    %3911 = vmatpush1.msra.mxu0 0.0
    %3912 = vmatprep.subr.mxu0 0.0
    %3913 = vmatpush1.msra.mxu0 0.0
    %3914 = vmatprep.subr.mxu0 0.0
    %3915 = vmatpush1.msra.mxu0 0.0
    %3916 = vmatprep.subr.mxu0 0.0
    %3917 = vmatpush1.msra.mxu0 0.0
    %3918 = vmatprep.subr.mxu0 0.0
    %3919 = vmatpush1.msra.mxu0 0.0
    %3920 = vmatprep.subr.mxu0 0.0
    %3921 = vmatpush1.msra.mxu0 0.0
    %3922 = vmatprep.subr.mxu0 0.0
    %3923 = vmatpush1.msra.mxu0 0.0
    %3924 = vmatprep.subr.mxu0 0.0
    %3925 = vmatpush1.msra.mxu0 0.0
    %3926 = vmatprep.subr.mxu0 0.0
    %3927 = vmatpush1.msra.mxu0 0.0
    %3928 = vmatprep.subr.mxu0 0.0
    %3929 = vmatpush1.msra.mxu0 0.0
    %3930 = vmatprep.mubr.f32.mxu0 0.0
    %3931 = vmatmul.mubr.f32.gmra.mrb[0].mxu0 %v3864
    %v3932 = vpop.f32.mrb[0].mxu0
    %v3933 = vadd.f32 0.0, %v3932
    %v3934 = vpop.f32.mrb[0].mxu0
    %3935 = vdwg.mxu0
    %v3936 = vadd.f32 %v3858, %v3933
    %v3937 = vadd.f32 %v3936, %v3058
    %v3938 = vxor.u32 %v3937, 2147483648
    %v3939 = vmul.f32 %v3938, 1.442695
    %v3940 = vpow.pop %v3939
    %v3941 = vadd.f32 %v3940, 1.0
    %v3942 = vrcp.pop %v3941
    %v3943 = vmul.f32 1.0, %v3942
    %v3944 = vadd.f32 %v3858, %v3069
    %v3945 = vadd.f32 %v3933, %v3074
    %3947 = vrot.lane.b32.xlu0 %v3945, 96
    %v3948 = vpop.permute.xlu0 %3947
    %v3950 = vmul.f32 %v3943, %v3948
    %3952 = vrot.lane.b32.xlu0 %v3950, 32
    %v3953 = vpop.permute.xlu0 %3952
    %v3955 = vadd.f32 %v3944, %v3953
    %v3956 = vtanh.pop %v3955
    %v3957 = vsub.f32 1.0, %v3943
    %3959 = vrot.lane.b32.xlu0 %v3956, 112
    %v3960 = vpop.permute.xlu0 %3959
    %v3962 = vmul.f32 %v3957, %v3960
    %v3963 = vmul.f32 %v3943, %v3790
    %v3964 = vadd.f32 %v3962, %v3963
    %3965 = vmatprep.subr.mxu0 0.0
    %3966 = vmatpush1.msra.mxu0 %v2905
    %3967 = vmatprep.subr.mxu0 0.0
    %3968 = vmatpush1.msra.mxu0 %v2906
    %3969 = vmatprep.subr.mxu0 0.0
    %3970 = vmatpush1.msra.mxu0 0.0
    %3971 = vmatprep.subr.mxu0 0.0
    %3972 = vmatpush1.msra.mxu0 0.0
    %3973 = vmatprep.subr.mxu0 0.0
    %3974 = vmatpush1.msra.mxu0 0.0
    %3975 = vmatprep.subr.mxu0 0.0
    %3976 = vmatpush1.msra.mxu0 0.0
    %3977 = vmatprep.subr.mxu0 0.0
    %3978 = vmatpush1.msra.mxu0 0.0
    %3979 = vmatprep.subr.mxu0 0.0
    %3980 = vmatpush1.msra.mxu0 0.0
    %3981 = vmatprep.subr.mxu0 0.0
    %3982 = vmatpush1.msra.mxu0 0.0
    %3983 = vmatprep.subr.mxu0 0.0
    %3984 = vmatpush1.msra.mxu0 0.0
    %3985 = vmatprep.subr.mxu0 0.0
    %3986 = vmatpush1.msra.mxu0 0.0
    %3987 = vmatprep.subr.mxu0 0.0
    %3988 = vmatpush1.msra.mxu0 0.0
    %3989 = vmatprep.subr.mxu0 0.0
    %3990 = vmatpush1.msra.mxu0 0.0
    %3991 = vmatprep.subr.mxu0 0.0
    %3992 = vmatpush1.msra.mxu0 0.0
    %3993 = vmatprep.subr.mxu0 0.0
    %3994 = vmatpush1.msra.mxu0 0.0
    %3995 = vmatprep.subr.mxu0 0.0
    %3996 = vmatpush1.msra.mxu0 0.0
    %3997 = vmatprep.subr.mxu0 0.0
    %3998 = vmatpush1.msra.mxu0 0.0
    %3999 = vmatprep.subr.mxu0 0.0
    %4000 = vmatpush1.msra.mxu0 0.0
    %4001 = vmatprep.subr.mxu0 0.0
    %4002 = vmatpush1.msra.mxu0 0.0
    %4003 = vmatprep.subr.mxu0 0.0
    %4004 = vmatpush1.msra.mxu0 0.0
    %4005 = vmatprep.subr.mxu0 0.0
    %4006 = vmatpush1.msra.mxu0 0.0
    %4007 = vmatprep.subr.mxu0 0.0
    %4008 = vmatpush1.msra.mxu0 0.0
    %4009 = vmatprep.subr.mxu0 0.0
    %4010 = vmatpush1.msra.mxu0 0.0
    %4011 = vmatprep.subr.mxu0 0.0
    %4012 = vmatpush1.msra.mxu0 0.0
    %4013 = vmatprep.subr.mxu0 0.0
    %4014 = vmatpush1.msra.mxu0 0.0
    %4015 = vmatprep.subr.mxu0 0.0
    %4016 = vmatpush1.msra.mxu0 0.0
    %4017 = vmatprep.subr.mxu0 0.0
    %4018 = vmatpush1.msra.mxu0 0.0
    %4019 = vmatprep.subr.mxu0 0.0
    %4020 = vmatpush1.msra.mxu0 0.0
    %4021 = vmatprep.subr.mxu0 0.0
    %4022 = vmatpush1.msra.mxu0 0.0
    %4023 = vmatprep.subr.mxu0 0.0
    %4024 = vmatpush1.msra.mxu0 0.0
    %4025 = vmatprep.subr.mxu0 0.0
    %4026 = vmatpush1.msra.mxu0 0.0
    %4027 = vmatprep.subr.mxu0 0.0
    %4028 = vmatpush1.msra.mxu0 0.0
    %4029 = vmatprep.mubr.f32.mxu0 0.0
    %4030 = vmatmul.mubr.f32.gmra.mrb[0].mxu0 %v2801
    %v4031 = vpop.f32.mrb[0].mxu0
    %v4032 = vadd.f32 0.0, %v4031
    %v4033 = vpop.f32.mrb[0].mxu0
    %4034 = vdwg.mxu0
    %4036 = vrot.lane.b32.xlu0 %v3964, 112
    %v4037 = vpop.permute.xlu0 %4036
    %v4038 = vsel %vm118, %v4037, 0
    %4040 = vmatprep.subr.mxu0 0.0
    %4041 = vmatpush1.msra.mxu0 %v2907
    %4042 = vmatprep.subr.mxu0 0.0
    %4043 = vmatpush1.msra.mxu0 %v2908
    %4044 = vmatprep.subr.mxu0 0.0
    %4045 = vmatpush1.msra.mxu0 0.0
    %4046 = vmatprep.subr.mxu0 0.0
    %4047 = vmatpush1.msra.mxu0 0.0
    %4048 = vmatprep.subr.mxu0 0.0
    %4049 = vmatpush1.msra.mxu0 0.0
    %4050 = vmatprep.subr.mxu0 0.0
    %4051 = vmatpush1.msra.mxu0 0.0
    %4052 = vmatprep.subr.mxu0 0.0
    %4053 = vmatpush1.msra.mxu0 0.0
    %4054 = vmatprep.subr.mxu0 0.0
    %4055 = vmatpush1.msra.mxu0 0.0
    %4056 = vmatprep.subr.mxu0 0.0
    %4057 = vmatpush1.msra.mxu0 0.0
    %4058 = vmatprep.subr.mxu0 0.0
    %4059 = vmatpush1.msra.mxu0 0.0
    %4060 = vmatprep.subr.mxu0 0.0
    %4061 = vmatpush1.msra.mxu0 0.0
    %4062 = vmatprep.subr.mxu0 0.0
    %4063 = vmatpush1.msra.mxu0 0.0
    %4064 = vmatprep.subr.mxu0 0.0
    %4065 = vmatpush1.msra.mxu0 0.0
    %4066 = vmatprep.subr.mxu0 0.0
    %4067 = vmatpush1.msra.mxu0 0.0
    %4068 = vmatprep.subr.mxu0 0.0
    %4069 = vmatpush1.msra.mxu0 0.0
    %4070 = vmatprep.subr.mxu0 0.0
    %4071 = vmatpush1.msra.mxu0 0.0
    %4072 = vmatprep.subr.mxu0 0.0
    %4073 = vmatpush1.msra.mxu0 0.0
    %4074 = vmatprep.subr.mxu0 0.0
    %4075 = vmatpush1.msra.mxu0 0.0
    %4076 = vmatprep.subr.mxu0 0.0
    %4077 = vmatpush1.msra.mxu0 0.0
    %4078 = vmatprep.subr.mxu0 0.0
    %4079 = vmatpush1.msra.mxu0 0.0
    %4080 = vmatprep.subr.mxu0 0.0
    %4081 = vmatpush1.msra.mxu0 0.0
    %4082 = vmatprep.subr.mxu0 0.0
    %4083 = vmatpush1.msra.mxu0 0.0
    %4084 = vmatprep.subr.mxu0 0.0
    %4085 = vmatpush1.msra.mxu0 0.0
    %4086 = vmatprep.subr.mxu0 0.0
    %4087 = vmatpush1.msra.mxu0 0.0
    %4088 = vmatprep.subr.mxu0 0.0
    %4089 = vmatpush1.msra.mxu0 0.0
    %4090 = vmatprep.subr.mxu0 0.0
    %4091 = vmatpush1.msra.mxu0 0.0
    %4092 = vmatprep.subr.mxu0 0.0
    %4093 = vmatpush1.msra.mxu0 0.0
    %4094 = vmatprep.subr.mxu0 0.0
    %4095 = vmatpush1.msra.mxu0 0.0
    %4096 = vmatprep.subr.mxu0 0.0
    %4097 = vmatpush1.msra.mxu0 0.0
    %4098 = vmatprep.subr.mxu0 0.0
    %4099 = vmatpush1.msra.mxu0 0.0
    %4100 = vmatprep.subr.mxu0 0.0
    %4101 = vmatpush1.msra.mxu0 0.0
    %4102 = vmatprep.subr.mxu0 0.0
    %4103 = vmatpush1.msra.mxu0 0.0
    %4104 = vmatprep.mubr.f32.mxu0 0.0
    %4105 = vmatmul.mubr.f32.gmra.mrb[0].mxu0 %v4038
    %v4106 = vpop.f32.mrb[0].mxu0
    %v4107 = vadd.f32 0.0, %v4106
    %v4108 = vpop.f32.mrb[0].mxu0
    %4109 = vdwg.mxu0
    %v4110 = vadd.f32 %v4032, %v4107
    %v4111 = vadd.f32 %v4110, %v3058
    %v4112 = vxor.u32 %v4111, 2147483648
    %v4113 = vmul.f32 %v4112, 1.442695
    %v4114 = vpow.pop %v4113
    %v4115 = vadd.f32 %v4114, 1.0
    %v4116 = vrcp.pop %v4115
    %v4117 = vmul.f32 1.0, %v4116
    %v4118 = vadd.f32 %v4032, %v3069
    %v4119 = vadd.f32 %v4107, %v3074
    %4121 = vrot.lane.b32.xlu0 %v4119, 96
    %v4122 = vpop.permute.xlu0 %4121
    %v4124 = vmul.f32 %v4117, %v4122
    %4126 = vrot.lane.b32.xlu0 %v4124, 32
    %v4127 = vpop.permute.xlu0 %4126
    %v4129 = vadd.f32 %v4118, %v4127
    %v4130 = vtanh.pop %v4129
    %v4131 = vsub.f32 1.0, %v4117
    %4133 = vrot.lane.b32.xlu0 %v4130, 112
    %v4134 = vpop.permute.xlu0 %4133
    %v4136 = vmul.f32 %v4131, %v4134
    %v4137 = vmul.f32 %v4117, %v3964
    %v4138 = vadd.f32 %v4136, %v4137
    %4140 = vrot.lane.b32.xlu0 %v2901, 112
    %v4141 = vpop.permute.xlu0 %4140
    %v4142 = vsel %vm118, %v4141, 0
    %4144 = vmatprep.subr.mxu0 0.0
    %4145 = vmatpush1.msra.mxu0 %v2905
    %4146 = vmatprep.subr.mxu0 0.0
    %4147 = vmatpush1.msra.mxu0 %v2906
    %4148 = vmatprep.subr.mxu0 0.0
    %4149 = vmatpush1.msra.mxu0 0.0
    %4150 = vmatprep.subr.mxu0 0.0
    %4151 = vmatpush1.msra.mxu0 0.0
    %4152 = vmatprep.subr.mxu0 0.0
    %4153 = vmatpush1.msra.mxu0 0.0
    %4154 = vmatprep.subr.mxu0 0.0
    %4155 = vmatpush1.msra.mxu0 0.0
    %4156 = vmatprep.subr.mxu0 0.0
    %4157 = vmatpush1.msra.mxu0 0.0
    %4158 = vmatprep.subr.mxu0 0.0
    %4159 = vmatpush1.msra.mxu0 0.0
    %4160 = vmatprep.subr.mxu0 0.0
    %4161 = vmatpush1.msra.mxu0 0.0
    %4162 = vmatprep.subr.mxu0 0.0
    %4163 = vmatpush1.msra.mxu0 0.0
    %4164 = vmatprep.subr.mxu0 0.0
    %4165 = vmatpush1.msra.mxu0 0.0
    %4166 = vmatprep.subr.mxu0 0.0
    %4167 = vmatpush1.msra.mxu0 0.0
    %4168 = vmatprep.subr.mxu0 0.0
    %4169 = vmatpush1.msra.mxu0 0.0
    %4170 = vmatprep.subr.mxu0 0.0
    %4171 = vmatpush1.msra.mxu0 0.0
    %4172 = vmatprep.subr.mxu0 0.0
    %4173 = vmatpush1.msra.mxu0 0.0
    %4174 = vmatprep.subr.mxu0 0.0
    %4175 = vmatpush1.msra.mxu0 0.0
    %4176 = vmatprep.subr.mxu0 0.0
    %4177 = vmatpush1.msra.mxu0 0.0
    %4178 = vmatprep.subr.mxu0 0.0
    %4179 = vmatpush1.msra.mxu0 0.0
    %4180 = vmatprep.subr.mxu0 0.0
    %4181 = vmatpush1.msra.mxu0 0.0
    %4182 = vmatprep.subr.mxu0 0.0
    %4183 = vmatpush1.msra.mxu0 0.0
    %4184 = vmatprep.subr.mxu0 0.0
    %4185 = vmatpush1.msra.mxu0 0.0
    %4186 = vmatprep.subr.mxu0 0.0
    %4187 = vmatpush1.msra.mxu0 0.0
    %4188 = vmatprep.subr.mxu0 0.0
    %4189 = vmatpush1.msra.mxu0 0.0
    %4190 = vmatprep.subr.mxu0 0.0
    %4191 = vmatpush1.msra.mxu0 0.0
    %4192 = vmatprep.subr.mxu0 0.0
    %4193 = vmatpush1.msra.mxu0 0.0
    %4194 = vmatprep.subr.mxu0 0.0
    %4195 = vmatpush1.msra.mxu0 0.0
    %4196 = vmatprep.subr.mxu0 0.0
    %4197 = vmatpush1.msra.mxu0 0.0
    %4198 = vmatprep.subr.mxu0 0.0
    %4199 = vmatpush1.msra.mxu0 0.0
    %4200 = vmatprep.subr.mxu0 0.0
    %4201 = vmatpush1.msra.mxu0 0.0
    %4202 = vmatprep.subr.mxu0 0.0
    %4203 = vmatpush1.msra.mxu0 0.0
    %4204 = vmatprep.subr.mxu0 0.0
    %4205 = vmatpush1.msra.mxu0 0.0
    %4206 = vmatprep.subr.mxu0 0.0
    %4207 = vmatpush1.msra.mxu0 0.0
    %4208 = vmatprep.mubr.f32.mxu0 0.0
    %4209 = vmatmul.mubr.f32.gmra.mrb[0].mxu0 %v4142
    %v4210 = vpop.f32.mrb[0].mxu0
    %v4211 = vadd.f32 0.0, %v4210
    %v4212 = vpop.f32.mrb[0].mxu0
    %4213 = vdwg.mxu0
    %4215 = vrot.lane.b32.xlu0 %v4138, 112
    %v4216 = vpop.permute.xlu0 %4215
    %v4217 = vsel %vm118, %v4216, 0
    %4219 = vmatprep.subr.mxu0 0.0
    %4220 = vmatpush1.msra.mxu0 %v2907
    %4221 = vmatprep.subr.mxu0 0.0
    %4222 = vmatpush1.msra.mxu0 %v2908
    %4223 = vmatprep.subr.mxu0 0.0
    %4224 = vmatpush1.msra.mxu0 0.0
    %4225 = vmatprep.subr.mxu0 0.0
    %4226 = vmatpush1.msra.mxu0 0.0
    %4227 = vmatprep.subr.mxu0 0.0
    %4228 = vmatpush1.msra.mxu0 0.0
    %4229 = vmatprep.subr.mxu0 0.0
    %4230 = vmatpush1.msra.mxu0 0.0
    %4231 = vmatprep.subr.mxu0 0.0
    %4232 = vmatpush1.msra.mxu0 0.0
    %4233 = vmatprep.subr.mxu0 0.0
    %4234 = vmatpush1.msra.mxu0 0.0
    %4235 = vmatprep.subr.mxu0 0.0
    %4236 = vmatpush1.msra.mxu0 0.0
    %4237 = vmatprep.subr.mxu0 0.0
    %4238 = vmatpush1.msra.mxu0 0.0
    %4239 = vmatprep.subr.mxu0 0.0
    %4240 = vmatpush1.msra.mxu0 0.0
    %4241 = vmatprep.subr.mxu0 0.0
    %4242 = vmatpush1.msra.mxu0 0.0
    %4243 = vmatprep.subr.mxu0 0.0
    %4244 = vmatpush1.msra.mxu0 0.0
    %4245 = vmatprep.subr.mxu0 0.0
    %4246 = vmatpush1.msra.mxu0 0.0
    %4247 = vmatprep.subr.mxu0 0.0
    %4248 = vmatpush1.msra.mxu0 0.0
    %4249 = vmatprep.subr.mxu0 0.0
    %4250 = vmatpush1.msra.mxu0 0.0
    %4251 = vmatprep.subr.mxu0 0.0
    %4252 = vmatpush1.msra.mxu0 0.0
    %4253 = vmatprep.subr.mxu0 0.0
    %4254 = vmatpush1.msra.mxu0 0.0
    %4255 = vmatprep.subr.mxu0 0.0
    %4256 = vmatpush1.msra.mxu0 0.0
    %4257 = vmatprep.subr.mxu0 0.0
    %4258 = vmatpush1.msra.mxu0 0.0
    %4259 = vmatprep.subr.mxu0 0.0
    %4260 = vmatpush1.msra.mxu0 0.0
    %4261 = vmatprep.subr.mxu0 0.0
    %4262 = vmatpush1.msra.mxu0 0.0
    %4263 = vmatprep.subr.mxu0 0.0
    %4264 = vmatpush1.msra.mxu0 0.0
    %4265 = vmatprep.subr.mxu0 0.0
    %4266 = vmatpush1.msra.mxu0 0.0
    %4267 = vmatprep.subr.mxu0 0.0
    %4268 = vmatpush1.msra.mxu0 0.0
    %4269 = vmatprep.subr.mxu0 0.0
    %4270 = vmatpush1.msra.mxu0 0.0
    %4271 = vmatprep.subr.mxu0 0.0
    %4272 = vmatpush1.msra.mxu0 0.0
    %4273 = vmatprep.subr.mxu0 0.0
    %4274 = vmatpush1.msra.mxu0 0.0
    %4275 = vmatprep.subr.mxu0 0.0
    %4276 = vmatpush1.msra.mxu0 0.0
    %4277 = vmatprep.subr.mxu0 0.0
    %4278 = vmatpush1.msra.mxu0 0.0
    %4279 = vmatprep.subr.mxu0 0.0
    %4280 = vmatpush1.msra.mxu0 0.0
    %4281 = vmatprep.subr.mxu0 0.0
    %4282 = vmatpush1.msra.mxu0 0.0
    %4283 = vmatprep.mubr.f32.mxu0 0.0
    %4284 = vmatmul.mubr.f32.gmra.mrb[0].mxu0 %v4217
    %v4285 = vpop.f32.mrb[0].mxu0
    %v4286 = vadd.f32 0.0, %v4285
    %v4287 = vpop.f32.mrb[0].mxu0
    %4288 = vdwg.mxu0
    %v4289 = vadd.f32 %v4211, %v4286
    %v4290 = vadd.f32 %v4289, %v3058
    %v4291 = vxor.u32 %v4290, 2147483648
    %v4292 = vmul.f32 %v4291, 1.442695
    %v4293 = vpow.pop %v4292
    %v4294 = vadd.f32 %v4293, 1.0
    %v4295 = vrcp.pop %v4294
    %v4296 = vmul.f32 1.0, %v4295
    %v4297 = vadd.f32 %v4211, %v3069
    %v4298 = vadd.f32 %v4286, %v3074
    %4300 = vrot.lane.b32.xlu0 %v4298, 96
    %v4301 = vpop.permute.xlu0 %4300
    %v4303 = vmul.f32 %v4296, %v4301
    %4305 = vrot.lane.b32.xlu0 %v4303, 32
    %v4306 = vpop.permute.xlu0 %4305
    %v4308 = vadd.f32 %v4297, %v4306
    %v4309 = vtanh.pop %v4308
    %v4310 = vsub.f32 1.0, %v4296
    %4312 = vrot.lane.b32.xlu0 %v4309, 112
    %v4313 = vpop.permute.xlu0 %4312
    %v4315 = vmul.f32 %v4310, %v4313
    %v4316 = vmul.f32 %v4296, %v4138
    %v4317 = vadd.f32 %v4315, %v4316
    %4319 = vrot.lane.b32.xlu0 %v4317, 16
    %v4320 = vpop.permute.xlu0 %4319
    %vm4322 = vcmask 386304
    %4323 = vst.msk [vmem:[#allocation5] sm:$0x3] %vm4322, %v4320
    // Predicated region
    $region14: #{node_attribute_forward.1} parent=1 // pred_check
      _
    $region15: #{node_attribute_forward.1} parent=1 // pred_check_branch
      %4325 = sbr.rel (0) target = $region17
    $region16: #{node_attribute_forward.1} parent=1 // pred_region
      %s4327 = ssub.s32 32, 32
      %4328 = vsyncadd [#allocation4], %s4327
      %s4330 = sshll.u32 [#allocation5], 4
      %s4331 = int_to_ptr.vmem [resolvable:$true] %s4330
      %4333 = dma.vmem_to_hbm [thread:$0]  %s4331, 32, %s2, [#allocation4]
    $region17: #{node_attribute_forward.1} parent=1 // pred_fallthru
      _
    // Predicated region
    $region18: #{node_attribute_forward.1} parent=1 // pred_check
      _
    $region19: #{node_attribute_forward.1} parent=1 // pred_check_branch
      %4335 = sbr.rel (0) target = $region21
    $region20: #{node_attribute_forward.1} parent=1 // pred_region
      %4336 = dma.done [#allocation4], 32
    $region21: #{node_attribute_forward.1} parent=1 // pred_fallthru
      _
    %4337 = vsyncpa [#allocation3], 1
    %4338 = vsyncpa [#allocation4], 1

</llo_original>
